<compile_context>
chip_gen: v5e
topology: v5e:2x2
jax: 0.10.0
libtpu: 0.0.40
codegen_flags: <defaults>
</compile_context>

<pallas_src>
import jax
import jax.numpy as jnp
from jax.experimental import pallas as pl
from jax.experimental.pallas import tpu as pltpu

C_MID = 256   # conv_1x1_D_1 out channels
C_OUT = 64    # conv_3x3_D_num / residual out channels
EPS = 1e-5


def make_kernel(H, W, Cin2, d):
    HW = H * W

    def kernel(xf_ref, wbd_ref, sh1_ref, shr_ref, w3c_ref, sh2_ref,
               out_ref, c_ref, y_ref, z_ref, acc_ref):
        # ---- fused 1x1 convs (main + residual) via block-diagonal weight ----
        xf = xf_ref[0].reshape(HW, Cin2)
        c_ref[...] = jnp.dot(xf, wbd_ref[...], preferred_element_type=jnp.float32)

        # ---- BN1 shift (scale folded into weight) + ReLU ----
        y_ref[...] = jnp.maximum(c_ref[:, 0:C_MID] + sh1_ref[...], 0.0)

        # ---- dilated 3x3 conv: one wide matmul over all 9 taps -> VMEM ----
        z_ref[...] = jnp.dot(y_ref[...], w3c_ref[...],
                             preferred_element_type=jnp.float32)

        # ---- scatter-accumulate taps into padded C_OUT accumulator ----
        acc_ref[...] = jnp.zeros_like(acc_ref)
        for k in range(9):
            ky, kx = k // 3, k % 3
            sy, sx = (2 - ky) * d, (2 - kx) * d
            zk = z_ref[:, k * C_OUT:(k + 1) * C_OUT].reshape(H, W, C_OUT)
            acc_ref[sy:sy + H, sx:sx + W, :] += zk

        # ---- BN2 shift, residual add, lane-dense combined write ----
        out = acc_ref[d:d + H, d:d + W, :] + sh2_ref[...]                 # (H,W,64)
        ident = (c_ref[:, C_MID:C_MID + C_OUT] + shr_ref[...]).reshape(H, W, C_OUT)
        out_ref[0] = jnp.concatenate([out, out + ident],
                                     axis=-1).astype(out_ref.dtype)
    return kernel


def dsnet_basic_block(x_nhwc, fwd_nhwc, p, dilation):
    N, H, W, Cin = x_nhwc.shape
    d = int(dilation)
    xf = jnp.concatenate([x_nhwc, fwd_nhwc], axis=-1)          # (N, H, W, 2*Cin)
    kernel = make_kernel(H, W, 2 * Cin, d)

    out_shape = jax.ShapeDtypeStruct((N, H, W, 2 * C_OUT), jnp.float32)
    grid_spec = pltpu.PrefetchScalarGridSpec(
        num_scalar_prefetch=0,
        grid=(N,),
        in_specs=[
            pl.BlockSpec((1, H, W, 2 * Cin), lambda n: (n, 0, 0, 0)),      # [x|fwd]
            pl.BlockSpec((2 * Cin, C_MID + C_OUT), lambda n: (0, 0)),      # block-diag 1x1 w
            pl.BlockSpec((1, C_MID), lambda n: (0, 0)),                    # bn1 shift
            pl.BlockSpec((1, C_OUT), lambda n: (0, 0)),                    # bnr shift
            pl.BlockSpec((C_MID, 9 * C_OUT), lambda n: (0, 0)),            # w3 taps concat
            pl.BlockSpec((1, C_OUT), lambda n: (0, 0)),                    # bn2 shift
        ],
        out_specs=pl.BlockSpec((1, H, W, 2 * C_OUT), lambda n: (n, 0, 0, 0)),
        scratch_shapes=[
            pltpu.VMEM((H * W, C_MID + C_OUT), jnp.float32),               # fused 1x1 result
            pltpu.VMEM((H * W, C_MID), jnp.float32),                       # relu(y)
            pltpu.VMEM((H * W, 9 * C_OUT), jnp.float32),                   # wide conv result
            pltpu.VMEM((H + 2 * d, W + 2 * d, C_OUT), jnp.float32),        # padded acc
        ],
    )
    res = pl.pallas_call(
        kernel,
        out_shape=out_shape,
        grid_spec=grid_spec,
        compiler_params=pltpu.CompilerParams(dimension_semantics=("parallel",)),
    )(xf, p["wbd"], p["sh1"], p["shr"], p["w3c"], p["sh2"])
    final = res[..., C_OUT:]
    out = res[..., :C_OUT]
    return final, out


# ------------------------ parameter setup (plain JAX glue) ------------------------
def init_params(key, Cin):
    ks = jax.random.split(key, 18)

    def u(k, shape, lo=-0.5, hi=0.5):
        return jax.random.uniform(k, shape, jnp.float32, lo, hi)

    raw = {}
    raw["w1"] = u(ks[0], (C_MID, Cin, 1, 1)) * (1.0 / Cin) ** 0.5     # OIHW
    raw["b1"] = u(ks[1], (C_MID,))
    raw["g1"], raw["be1"] = u(ks[2], (C_MID,), 0.5, 1.5), u(ks[3], (C_MID,))
    raw["m1"], raw["v1"] = u(ks[4], (C_MID,)), u(ks[5], (C_MID,), 0.5, 1.5)

    raw["w3"] = u(ks[6], (C_OUT, C_MID, 3, 3)) * (1.0 / (9 * C_MID)) ** 0.5
    raw["b3"] = u(ks[7], (C_OUT,))
    raw["g2"], raw["be2"] = u(ks[8], (C_OUT,), 0.5, 1.5), u(ks[9], (C_OUT,))
    raw["m2"], raw["v2"] = u(ks[10], (C_OUT,)), u(ks[11], (C_OUT,), 0.5, 1.5)

    raw["wr"] = u(ks[12], (C_OUT, Cin, 1, 1)) * (1.0 / Cin) ** 0.5
    raw["br"] = u(ks[13], (C_OUT,))
    raw["gr"], raw["ber"] = u(ks[14], (C_OUT,), 0.5, 1.5), u(ks[15], (C_OUT,))
    raw["mr"], raw["vr"] = u(ks[16], (C_OUT,)), u(ks[17], (C_OUT,), 0.5, 1.5)
    return raw


def fold_params(raw, Cin):
    def scale_shift(b, g, be, m, v):
        s = g / jnp.sqrt(v + EPS)
        return s, (b - m) * s + be

    s1, sh1 = scale_shift(raw["b1"], raw["g1"], raw["be1"], raw["m1"], raw["v1"])
    s2, sh2 = scale_shift(raw["b3"], raw["g2"], raw["be2"], raw["m2"], raw["v2"])
    sr, shr = scale_shift(raw["br"], raw["gr"], raw["ber"], raw["mr"], raw["vr"])

    # 1x1 convs: OIHW (O, Cin, 1, 1) -> (Cin, O), BN scale folded into weights,
    # packed block-diagonally so one matmul does both branches.
    w1 = jnp.transpose(raw["w1"][:, :, 0, 0]) * s1[None, :]          # (Cin, 256)
    wr = jnp.transpose(raw["wr"][:, :, 0, 0]) * sr[None, :]          # (Cin, 64)
    wbd = jnp.zeros((2 * Cin, C_MID + C_OUT), jnp.float32)
    wbd = wbd.at[:Cin, :C_MID].set(w1)
    wbd = wbd.at[Cin:, C_MID:].set(wr)

    # 3x3 conv: OIHW (64, 256, 3, 3) -> HWIO, BN2 scale folded, taps concatenated
    # along output columns so the kernel does a single (256, 576) matmul.
    w3 = jnp.transpose(raw["w3"], (2, 3, 1, 0)) * s2[None, None, None, :]   # (3,3,256,64)
    w3c = w3.reshape(9, C_MID, C_OUT).transpose(1, 0, 2).reshape(C_MID, 9 * C_OUT)

    return {
        "wbd": wbd,                                # (2*Cin, 320)
        "sh1": sh1.reshape(1, C_MID),              # (1, 256)
        "shr": shr.reshape(1, C_OUT),              # (1, 64)
        "w3c": w3c,                                # (256, 576)
        "sh2": sh2.reshape(1, C_OUT),              # (1, 64)
    }


# ------------------------ pure-JAX reference for validation ------------------------
def _conv(x, w_oihw, b, d=1, pad=0):
    w = jnp.transpose(w_oihw, (2, 3, 1, 0))
    y = jax.lax.conv_general_dilated(
        x, w, window_strides=(1, 1),
        padding=[(pad, pad), (pad, pad)],
        rhs_dilation=(d, d),
        dimension_numbers=('NHWC', 'HWIO', 'NHWC'))
    return y + b


def _bn(y, g, be, m, v):
    return (y - m) / jnp.sqrt(v + EPS) * g + be


def reference(x, fwd, raw, d):
    y = jnp.maximum(_bn(_conv(x, raw["w1"], raw["b1"]),
                        raw["g1"], raw["be1"], raw["m1"], raw["v1"]), 0.0)
    out = _bn(_conv(y, raw["w3"], raw["b3"], d=d, pad=d),
              raw["g2"], raw["be2"], raw["m2"], raw["v2"])
    ident = _bn(_conv(fwd, raw["wr"], raw["br"]),
                raw["gr"], raw["ber"], raw["mr"], raw["vr"])
    return out + ident, out


if __name__ == "__main__":
    key = jax.random.PRNGKey(0)
    N, Cin, H, W = 2, 4, 16, 16
    dilation = 1

    kx_, kf_, kp_ = jax.random.split(key, 3)
    x_nchw = jax.random.normal(kx_, (N, Cin, H, W), jnp.float32)      # PyTorch NCHW
    fwd_nchw = jax.random.normal(kf_, (N, Cin, H, W), jnp.float32)
    raw = init_params(kp_, Cin)
    p = fold_params(raw, Cin)

    # NCHW -> NHWC for the kernel
    x = jnp.transpose(x_nchw, (0, 2, 3, 1))
    fwd = jnp.transpose(fwd_nchw, (0, 2, 3, 1))

    final, out = dsnet_basic_block(x, fwd, p, dilation)
    final = jax.block_until_ready(final)
    out = jax.block_until_ready(out)

    ref_final, ref_out = reference(x, fwd, raw, dilation)
    assert jnp.allclose(out, ref_out, atol=2e-3, rtol=2e-3), \
        float(jnp.max(jnp.abs(out - ref_out)))
    assert jnp.allclose(final, ref_final, atol=2e-3, rtol=2e-3), \
        float(jnp.max(jnp.abs(final - ref_final)))
    print("KERNEL_OK")
</pallas_src>

<mosaic_0001>
module attributes {stable_mosaic.version = 11 : i64} {
  func.func @kernel(%arg0: i32, %arg1: memref<1x16x16x8xf32, #tpu.memory_space<vmem>>, %arg2: memref<8x320xf32, #tpu.memory_space<vmem>>, %arg3: memref<1x256xf32, #tpu.memory_space<vmem>>, %arg4: memref<1x64xf32, #tpu.memory_space<vmem>>, %arg5: memref<256x576xf32, #tpu.memory_space<vmem>>, %arg6: memref<1x64xf32, #tpu.memory_space<vmem>>, %arg7: memref<1x16x16x128xf32, #tpu.memory_space<vmem>>, %arg8: memref<256x320xf32, #tpu.memory_space<vmem>>, %arg9: memref<256x256xf32, #tpu.memory_space<vmem>>, %arg10: memref<256x576xf32, #tpu.memory_space<vmem>>, %arg11: memref<18x18x64xf32, #tpu.memory_space<vmem>>) attributes {dimension_semantics = [#tpu.dimension_semantics<parallel>], iteration_bounds = array<i64: 2>, scalar_prefetch = 0 : i64, scratch_operands = 4 : i64, tpu.core_type = #tpu.core_type<tc>, window_params = [{transform_indices = @transform_0, window_bounds = array<i64: 1, 16, 16, 8>}, {pipeline_mode = #tpu.pipeline_mode<synchronous>, transform_indices = @transform_1, window_bounds = array<i64: 8, 320>}, {pipeline_mode = #tpu.pipeline_mode<synchronous>, transform_indices = @transform_2, window_bounds = array<i64: 1, 256>}, {pipeline_mode = #tpu.pipeline_mode<synchronous>, transform_indices = @transform_3, window_bounds = array<i64: 1, 64>}, {pipeline_mode = #tpu.pipeline_mode<synchronous>, transform_indices = @transform_4, window_bounds = array<i64: 256, 576>}, {pipeline_mode = #tpu.pipeline_mode<synchronous>, transform_indices = @transform_5, window_bounds = array<i64: 1, 64>}, {transform_indices = @transform_6, window_bounds = array<i64: 1, 16, 16, 128>}]} {
    %c0 = arith.constant 0 : index
    %c0_0 = arith.constant 0 : index
    %c0_1 = arith.constant 0 : index
    %c0_2 = arith.constant 0 : index
    %0 = vector.load %arg1[%c0, %c0_0, %c0_1, %c0_2] : memref<1x16x16x8xf32, #tpu.memory_space<vmem>>, vector<1x16x16x8xf32>
    %1 = vector.shape_cast %0 : vector<1x16x16x8xf32> to vector<16x16x8xf32>
    %2 = vector.shape_cast %1 : vector<16x16x8xf32> to vector<256x8xf32>
    %c0_3 = arith.constant 0 : index
    %c0_4 = arith.constant 0 : index
    %3 = vector.load %arg2[%c0_3, %c0_4] : memref<8x320xf32, #tpu.memory_space<vmem>>, vector<8x320xf32>
    %cst = arith.constant dense<0.000000e+00> : vector<256x320xf32>
    %4 = tpu.matmul %2, %3, %cst {dimension_numbers = #tpu.dot_dimension_numbers<[1], [0], [0], [1], [0, 0, 1, 1], [], []>} : vector<256x8xf32>, vector<8x320xf32>, vector<256x320xf32> -> vector<256x320xf32>
    %c0_5 = arith.constant 0 : index
    %c0_6 = arith.constant 0 : index
    %5 = vector.load %arg8[%c0_5, %c0_6] : memref<256x320xf32, #tpu.memory_space<vmem>>, vector<256x320xf32>
    tpu.vector_store %arg8[%c0_5, %c0_6], %4 {strides = array<i32>} : memref<256x320xf32, #tpu.memory_space<vmem>>, vector<256x320xf32>,
    %c0_7 = arith.constant 0 : index
    %c0_8 = arith.constant 0 : index
    %6 = vector.load %arg8[%c0_7, %c0_8] : memref<256x320xf32, #tpu.memory_space<vmem>>, vector<256x256xf32>
    %c0_9 = arith.constant 0 : index
    %c0_10 = arith.constant 0 : index
    %7 = vector.load %arg3[%c0_9, %c0_10] : memref<1x256xf32, #tpu.memory_space<vmem>>, vector<1x256xf32>
    %8 = vector.broadcast %7 : vector<1x256xf32> to vector<256x256xf32>
    %9 = arith.addf %6, %8 : vector<256x256xf32>
    %cst_11 = arith.constant 0.000000e+00 : f32
    %10 = vector.broadcast %cst_11 : f32 to vector<256x256xf32>
    %11 = arith.maximumf %9, %10 : vector<256x256xf32>
    %c0_12 = arith.constant 0 : index
    %c0_13 = arith.constant 0 : index
    %12 = vector.load %arg9[%c0_12, %c0_13] : memref<256x256xf32, #tpu.memory_space<vmem>>, vector<256x256xf32>
    tpu.vector_store %arg9[%c0_12, %c0_13], %11 {strides = array<i32>} : memref<256x256xf32, #tpu.memory_space<vmem>>, vector<256x256xf32>,
    %c0_14 = arith.constant 0 : index
    %c0_15 = arith.constant 0 : index
    %13 = vector.load %arg9[%c0_14, %c0_15] : memref<256x256xf32, #tpu.memory_space<vmem>>, vector<256x256xf32>
    %c0_16 = arith.constant 0 : index
    %c0_17 = arith.constant 0 : index
    %14 = vector.load %arg5[%c0_16, %c0_17] : memref<256x576xf32, #tpu.memory_space<vmem>>, vector<256x576xf32>
    %cst_18 = arith.constant dense<0.000000e+00> : vector<256x576xf32>
    %15 = tpu.matmul %13, %14, %cst_18 {dimension_numbers = #tpu.dot_dimension_numbers<[1], [0], [0], [1], [0, 0, 1, 1], [], []>} : vector<256x256xf32>, vector<256x576xf32>, vector<256x576xf32> -> vector<256x576xf32>
    %c0_19 = arith.constant 0 : index
    %c0_20 = arith.constant 0 : index
    %16 = vector.load %arg10[%c0_19, %c0_20] : memref<256x576xf32, #tpu.memory_space<vmem>>, vector<256x576xf32>
    tpu.vector_store %arg10[%c0_19, %c0_20], %15 {strides = array<i32>} : memref<256x576xf32, #tpu.memory_space<vmem>>, vector<256x576xf32>,
    %cst_21 = arith.constant 0.000000e+00 : f32
    %17 = vector.broadcast %cst_21 : f32 to vector<18x18x64xf32>
    %c0_22 = arith.constant 0 : index
    %c0_23 = arith.constant 0 : index
    %c0_24 = arith.constant 0 : index
    %18 = vector.load %arg11[%c0_22, %c0_23, %c0_24] : memref<18x18x64xf32, #tpu.memory_space<vmem>>, vector<18x18x64xf32>
    tpu.vector_store %arg11[%c0_22, %c0_23, %c0_24], %17 {strides = array<i32>} : memref<18x18x64xf32, #tpu.memory_space<vmem>>, vector<18x18x64xf32>,
    %c0_25 = arith.constant 0 : index
    %c0_26 = arith.constant 0 : index
    %19 = vector.load %arg10[%c0_25, %c0_26] : memref<256x576xf32, #tpu.memory_space<vmem>>, vector<256x64xf32>
    %20 = vector.shape_cast %19 : vector<256x64xf32> to vector<16x16x64xf32>
    %c2 = arith.constant 2 : index
    %c2_27 = arith.constant 2 : index
    %c0_28 = arith.constant 0 : index
    %21 = vector.load %arg11[%c2, %c2_27, %c0_28] : memref<18x18x64xf32, #tpu.memory_space<vmem>>, vector<16x16x64xf32>
    %22 = arith.addf %21, %20 : vector<16x16x64xf32>
    %c2_29 = arith.constant 2 : index
    %c2_30 = arith.constant 2 : index
    %c0_31 = arith.constant 0 : index
    %23 = vector.load %arg11[%c2_29, %c2_30, %c0_31] : memref<18x18x64xf32, #tpu.memory_space<vmem>>, vector<16x16x64xf32>
    tpu.vector_store %arg11[%c2_29, %c2_30, %c0_31], %22 {strides = array<i32>} : memref<18x18x64xf32, #tpu.memory_space<vmem>>, vector<16x16x64xf32>,
    %c0_32 = arith.constant 0 : index
    %c64 = arith.constant 64 : index
    %24 = vector.load %arg10[%c0_32, %c64] : memref<256x576xf32, #tpu.memory_space<vmem>>, vector<256x64xf32>
    %25 = vector.shape_cast %24 : vector<256x64xf32> to vector<16x16x64xf32>
    %c2_33 = arith.constant 2 : index
    %c1 = arith.constant 1 : index
    %c0_34 = arith.constant 0 : index
    %26 = vector.load %arg11[%c2_33, %c1, %c0_34] : memref<18x18x64xf32, #tpu.memory_space<vmem>>, vector<16x16x64xf32>
    %27 = arith.addf %26, %25 : vector<16x16x64xf32>
    %c2_35 = arith.constant 2 : index
    %c1_36 = arith.constant 1 : index
    %c0_37 = arith.constant 0 : index
    %28 = vector.load %arg11[%c2_35, %c1_36, %c0_37] : memref<18x18x64xf32, #tpu.memory_space<vmem>>, vector<16x16x64xf32>
    tpu.vector_store %arg11[%c2_35, %c1_36, %c0_37], %27 {strides = array<i32>} : memref<18x18x64xf32, #tpu.memory_space<vmem>>, vector<16x16x64xf32>,
    %c0_38 = arith.constant 0 : index
    %c128 = arith.constant 128 : index
    %29 = vector.load %arg10[%c0_38, %c128] : memref<256x576xf32, #tpu.memory_space<vmem>>, vector<256x64xf32>
    %30 = vector.shape_cast %29 : vector<256x64xf32> to vector<16x16x64xf32>
    %c2_39 = arith.constant 2 : index
    %c0_40 = arith.constant 0 : index
    %c0_41 = arith.constant 0 : index
    %31 = vector.load %arg11[%c2_39, %c0_40, %c0_41] : memref<18x18x64xf32, #tpu.memory_space<vmem>>, vector<16x16x64xf32>
    %32 = arith.addf %31, %30 : vector<16x16x64xf32>
    %c2_42 = arith.constant 2 : index
    %c0_43 = arith.constant 0 : index
    %c0_44 = arith.constant 0 : index
    %33 = vector.load %arg11[%c2_42, %c0_43, %c0_44] : memref<18x18x64xf32, #tpu.memory_space<vmem>>, vector<16x16x64xf32>
    tpu.vector_store %arg11[%c2_42, %c0_43, %c0_44], %32 {strides = array<i32>} : memref<18x18x64xf32, #tpu.memory_space<vmem>>, vector<16x16x64xf32>,
    %c0_45 = arith.constant 0 : index
    %c192 = arith.constant 192 : index
    %34 = vector.load %arg10[%c0_45, %c192] : memref<256x576xf32, #tpu.memory_space<vmem>>, vector<256x64xf32>
    %35 = vector.shape_cast %34 : vector<256x64xf32> to vector<16x16x64xf32>
    %c1_46 = arith.constant 1 : index
    %c2_47 = arith.constant 2 : index
    %c0_48 = arith.constant 0 : index
    %36 = vector.load %arg11[%c1_46, %c2_47, %c0_48] : memref<18x18x64xf32, #tpu.memory_space<vmem>>, vector<16x16x64xf32>
    %37 = arith.addf %36, %35 : vector<16x16x64xf32>
    %c1_49 = arith.constant 1 : index
    %c2_50 = arith.constant 2 : index
    %c0_51 = arith.constant 0 : index
    %38 = vector.load %arg11[%c1_49, %c2_50, %c0_51] : memref<18x18x64xf32, #tpu.memory_space<vmem>>, vector<16x16x64xf32>
    tpu.vector_store %arg11[%c1_49, %c2_50, %c0_51], %37 {strides = array<i32>} : memref<18x18x64xf32, #tpu.memory_space<vmem>>, vector<16x16x64xf32>,
    %c0_52 = arith.constant 0 : index
    %c256 = arith.constant 256 : index
    %39 = vector.load %arg10[%c0_52, %c256] : memref<256x576xf32, #tpu.memory_space<vmem>>, vector<256x64xf32>
    %40 = vector.shape_cast %39 : vector<256x64xf32> to vector<16x16x64xf32>
    %c1_53 = arith.constant 1 : index
    %c1_54 = arith.constant 1 : index
    %c0_55 = arith.constant 0 : index
    %41 = vector.load %arg11[%c1_53, %c1_54, %c0_55] : memref<18x18x64xf32, #tpu.memory_space<vmem>>, vector<16x16x64xf32>
    %42 = arith.addf %41, %40 : vector<16x16x64xf32>
    %c1_56 = arith.constant 1 : index
    %c1_57 = arith.constant 1 : index
    %c0_58 = arith.constant 0 : index
    %43 = vector.load %arg11[%c1_56, %c1_57, %c0_58] : memref<18x18x64xf32, #tpu.memory_space<vmem>>, vector<16x16x64xf32>
    tpu.vector_store %arg11[%c1_56, %c1_57, %c0_58], %42 {strides = array<i32>} : memref<18x18x64xf32, #tpu.memory_space<vmem>>, vector<16x16x64xf32>,
    %c0_59 = arith.constant 0 : index
    %c320 = arith.constant 320 : index
    %44 = vector.load %arg10[%c0_59, %c320] : memref<256x576xf32, #tpu.memory_space<vmem>>, vector<256x64xf32>
    %45 = vector.shape_cast %44 : vector<256x64xf32> to vector<16x16x64xf32>
    %c1_60 = arith.constant 1 : index
    %c0_61 = arith.constant 0 : index
    %c0_62 = arith.constant 0 : index
    %46 = vector.load %arg11[%c1_60, %c0_61, %c0_62] : memref<18x18x64xf32, #tpu.memory_space<vmem>>, vector<16x16x64xf32>
    %47 = arith.addf %46, %45 : vector<16x16x64xf32>
    %c1_63 = arith.constant 1 : index
    %c0_64 = arith.constant 0 : index
    %c0_65 = arith.constant 0 : index
    %48 = vector.load %arg11[%c1_63, %c0_64, %c0_65] : memref<18x18x64xf32, #tpu.memory_space<vmem>>, vector<16x16x64xf32>
    tpu.vector_store %arg11[%c1_63, %c0_64, %c0_65], %47 {strides = array<i32>} : memref<18x18x64xf32, #tpu.memory_space<vmem>>, vector<16x16x64xf32>,
    %c0_66 = arith.constant 0 : index
    %c384 = arith.constant 384 : index
    %49 = vector.load %arg10[%c0_66, %c384] : memref<256x576xf32, #tpu.memory_space<vmem>>, vector<256x64xf32>
    %50 = vector.shape_cast %49 : vector<256x64xf32> to vector<16x16x64xf32>
    %c0_67 = arith.constant 0 : index
    %c2_68 = arith.constant 2 : index
    %c0_69 = arith.constant 0 : index
    %51 = vector.load %arg11[%c0_67, %c2_68, %c0_69] : memref<18x18x64xf32, #tpu.memory_space<vmem>>, vector<16x16x64xf32>
    %52 = arith.addf %51, %50 : vector<16x16x64xf32>
    %c0_70 = arith.constant 0 : index
    %c2_71 = arith.constant 2 : index
    %c0_72 = arith.constant 0 : index
    %53 = vector.load %arg11[%c0_70, %c2_71, %c0_72] : memref<18x18x64xf32, #tpu.memory_space<vmem>>, vector<16x16x64xf32>
    tpu.vector_store %arg11[%c0_70, %c2_71, %c0_72], %52 {strides = array<i32>} : memref<18x18x64xf32, #tpu.memory_space<vmem>>, vector<16x16x64xf32>,
    %c0_73 = arith.constant 0 : index
    %c448 = arith.constant 448 : index
    %54 = vector.load %arg10[%c0_73, %c448] : memref<256x576xf32, #tpu.memory_space<vmem>>, vector<256x64xf32>
    %55 = vector.shape_cast %54 : vector<256x64xf32> to vector<16x16x64xf32>
    %c0_74 = arith.constant 0 : index
    %c1_75 = arith.constant 1 : index
    %c0_76 = arith.constant 0 : index
    %56 = vector.load %arg11[%c0_74, %c1_75, %c0_76] : memref<18x18x64xf32, #tpu.memory_space<vmem>>, vector<16x16x64xf32>
    %57 = arith.addf %56, %55 : vector<16x16x64xf32>
    %c0_77 = arith.constant 0 : index
    %c1_78 = arith.constant 1 : index
    %c0_79 = arith.constant 0 : index
    %58 = vector.load %arg11[%c0_77, %c1_78, %c0_79] : memref<18x18x64xf32, #tpu.memory_space<vmem>>, vector<16x16x64xf32>
    tpu.vector_store %arg11[%c0_77, %c1_78, %c0_79], %57 {strides = array<i32>} : memref<18x18x64xf32, #tpu.memory_space<vmem>>, vector<16x16x64xf32>,
    %c0_80 = arith.constant 0 : index
    %c512 = arith.constant 512 : index
    %59 = vector.load %arg10[%c0_80, %c512] : memref<256x576xf32, #tpu.memory_space<vmem>>, vector<256x64xf32>
    %60 = vector.shape_cast %59 : vector<256x64xf32> to vector<16x16x64xf32>
    %c0_81 = arith.constant 0 : index
    %c0_82 = arith.constant 0 : index
    %c0_83 = arith.constant 0 : index
    %61 = vector.load %arg11[%c0_81, %c0_82, %c0_83] : memref<18x18x64xf32, #tpu.memory_space<vmem>>, vector<16x16x64xf32>
    %62 = arith.addf %61, %60 : vector<16x16x64xf32>
    %c0_84 = arith.constant 0 : index
    %c0_85 = arith.constant 0 : index
    %c0_86 = arith.constant 0 : index
    %63 = vector.load %arg11[%c0_84, %c0_85, %c0_86] : memref<18x18x64xf32, #tpu.memory_space<vmem>>, vector<16x16x64xf32>
    tpu.vector_store %arg11[%c0_84, %c0_85, %c0_86], %62 {strides = array<i32>} : memref<18x18x64xf32, #tpu.memory_space<vmem>>, vector<16x16x64xf32>,
    %c1_87 = arith.constant 1 : index
    %c1_88 = arith.constant 1 : index
    %c0_89 = arith.constant 0 : index
    %64 = vector.load %arg11[%c1_87, %c1_88, %c0_89] : memref<18x18x64xf32, #tpu.memory_space<vmem>>, vector<16x16x64xf32>
    %c0_90 = arith.constant 0 : index
    %c0_91 = arith.constant 0 : index
    %65 = vector.load %arg6[%c0_90, %c0_91] : memref<1x64xf32, #tpu.memory_space<vmem>>, vector<1x64xf32>
    %66 = vector.shape_cast %65 : vector<1x64xf32> to vector<1x1x64xf32>
    %67 = vector.broadcast %66 : vector<1x1x64xf32> to vector<16x16x64xf32>
    %68 = arith.addf %64, %67 : vector<16x16x64xf32>
    %c0_92 = arith.constant 0 : index
    %c256_93 = arith.constant 256 : index
    %69 = vector.load %arg8[%c0_92, %c256_93] : memref<256x320xf32, #tpu.memory_space<vmem>>, vector<256x64xf32>
    %c0_94 = arith.constant 0 : index
    %c0_95 = arith.constant 0 : index
    %70 = vector.load %arg4[%c0_94, %c0_95] : memref<1x64xf32, #tpu.memory_space<vmem>>, vector<1x64xf32>
    %71 = vector.broadcast %70 : vector<1x64xf32> to vector<256x64xf32>
    %72 = arith.addf %69, %71 : vector<256x64xf32>
    %73 = vector.shape_cast %72 : vector<256x64xf32> to vector<16x16x64xf32>
    %74 = arith.addf %68, %73 : vector<16x16x64xf32>
    %75 = tpu.concatenate %68, %74 in 2 : vector<16x16x64xf32>, vector<16x16x64xf32> -> vector<16x16x128xf32>
    %c0_96 = arith.constant 0 : index
    %c0_97 = arith.constant 0 : index
    %c0_98 = arith.constant 0 : index
    %c0_99 = arith.constant 0 : index
    %76 = vector.load %arg7[%c0_96, %c0_97, %c0_98, %c0_99] : memref<1x16x16x128xf32, #tpu.memory_space<vmem>>, vector<1x16x16x128xf32>
    %77 = vector.shape_cast %76 : vector<1x16x16x128xf32> to vector<16x16x128xf32>
    %78 = vector.shape_cast %75 : vector<16x16x128xf32> to vector<1x16x16x128xf32>
    tpu.vector_store %arg7[%c0_96, %c0_97, %c0_98, %c0_99], %78 {strides = array<i32>} : memref<1x16x16x128xf32, #tpu.memory_space<vmem>>, vector<1x16x16x128xf32>,
    return
  }
  func.func @transform_0(%arg0: i32) -> (i32, i32, i32, i32) {
    %c0_i32 = arith.constant 0 : i32
    %c0_i32_0 = arith.constant 0 : i32
    %c0_i32_1 = arith.constant 0 : i32
    %c0_i32_2 = arith.constant 0 : i32
    return %arg0, %c0_i32, %c0_i32_0, %c0_i32_1 : i32, i32, i32, i32
  }
  func.func @transform_1(%arg0: i32) -> (i32, i32) {
    %c0_i32 = arith.constant 0 : i32
    %c0_i32_0 = arith.constant 0 : i32
    %c0_i32_1 = arith.constant 0 : i32
    return %c0_i32, %c0_i32_0 : i32, i32
  }
  func.func @transform_2(%arg0: i32) -> (i32, i32) {
    %c0_i32 = arith.constant 0 : i32
    %c0_i32_0 = arith.constant 0 : i32
    %c0_i32_1 = arith.constant 0 : i32
    return %c0_i32, %c0_i32_0 : i32, i32
  }
  func.func @transform_3(%arg0: i32) -> (i32, i32) {
    %c0_i32 = arith.constant 0 : i32
    %c0_i32_0 = arith.constant 0 : i32
    %c0_i32_1 = arith.constant 0 : i32
    return %c0_i32, %c0_i32_0 : i32, i32
  }
  func.func @transform_4(%arg0: i32) -> (i32, i32) {
    %c0_i32 = arith.constant 0 : i32
    %c0_i32_0 = arith.constant 0 : i32
    %c0_i32_1 = arith.constant 0 : i32
    return %c0_i32, %c0_i32_0 : i32, i32
  }
  func.func @transform_5(%arg0: i32) -> (i32, i32) {
    %c0_i32 = arith.constant 0 : i32
    %c0_i32_0 = arith.constant 0 : i32
    %c0_i32_1 = arith.constant 0 : i32
    return %c0_i32, %c0_i32_0 : i32, i32
  }
  func.func @transform_6(%arg0: i32) -> (i32, i32, i32, i32) {
    %c0_i32 = arith.constant 0 : i32
    %c0_i32_0 = arith.constant 0 : i32
    %c0_i32_1 = arith.constant 0 : i32
    %c0_i32_2 = arith.constant 0 : i32
    return %arg0, %c0_i32, %c0_i32_0, %c0_i32_1 : i32, i32, i32, i32
  }
}

</mosaic_0001>

<llo_original>
// kernel: tpu_custom_call.1
$region0: #{tpu_custom_call.1}
  #allocation0 [shape = 'u32[]', space=smem, size = 0x4, offset = 0x4, fixed_abs, tag = 'smem constant byte address 0x4 - core index']
  #allocation1 [shape = 'u32[72,128]{1,0:T(1,128)}', space=vmem, size = 0x9000, scoped, tag = 'internal scratch']
  #allocation2 [shape = 'f32[256,320]{1,0:T(8,128)}', space=vmem, size = 0x60000, scoped, tag = 'scratch operand']
  #allocation3 [shape = 'f32[256,256]{1,0:T(8,128)}', space=vmem, size = 0x40000, scoped, tag = 'scratch operand']
  #allocation4 [shape = 'f32[256,576]{1,0:T(8,128)}', space=vmem, size = 0xa0000, scoped, tag = 'scratch operand']
  #allocation5 [shape = 'f32[18,18,64]{2,1,0:T(8,128)}', space=vmem, size = 0x36000, scoped, tag = 'scratch operand']
  %s0 = inlined_call_operand.vmem [shape: f32[2,16,16,8], index: 0, kind: input, shape index: {}]
  %s1 = inlined_call_operand.vmem [shape: f32[8,320], index: 1, kind: input, shape index: {}]
  %s2 = inlined_call_operand.vmem [shape: f32[1,256], index: 2, kind: input, shape index: {}]
  %s3 = inlined_call_operand.vmem [shape: f32[1,64], index: 3, kind: input, shape index: {}]
  %s4 = inlined_call_operand.vmem [shape: f32[256,576], index: 4, kind: input, shape index: {}]
  %s5 = inlined_call_operand.vmem [shape: f32[1,64], index: 5, kind: input, shape index: {}]
  %s6 = inlined_call_operand.hbm [shape: f32[2,16,16,128], index: 6, kind: output, shape index: {}]
  %s7 = sld [smem:[#allocation0]]
  $region57: #{tpu_custom_call.1} parent=0
    _
  %s9 = ssub.s32 1, %s7
  %s10 = scalar_select 0, %s9, %s7
  $region1: #{tpu_custom_call.1} parent=0
    #allocation6 [shape = 'u8[262144]{0}', space=vmem, size = 0x40000, scoped, tag = 'output window, operand 0']
    #allocation7 [shape = 's32[2]{0}', space=sflag, size = 0x8, scoped, tag = 'scoped memory for tpu_custom_call.1']
    %11 = vsyncpa [#allocation7], 0
    %s12 = scalar_lea.sflag [#allocation7], 1
    %13 = vsyncpa %s12, 0
    loop: start=0, step=1, limit=4
    $region2: #{tpu_custom_call.1} parent=1 // loop_pre_header
      _
    $region3: #{tpu_custom_call.1} parent=1 // loop_header
      %s15 = sphi 0, %s19
      %p16 = scmp.ge.s32.totalorder %s15, 4
      %s25 = sphi 0, %s27
      %s28 = sphi 0, %s25
      %s29 = sphi 0, %s28
      %s45 = sphi 0, %s29
      %s49 = sphi 0, %s49
      %s51 = sphi 0, %s49
      %s52 = sphi 0, %s51
      %s66 = sphi 0, %s52
      %s70 = sphi 0, %s70
      %s72 = sphi 0, %s70
      %s73 = sphi 0, %s72
      %s87 = sphi 0, %s73
      %s91 = sphi 0, %s91
      %s93 = sphi 0, %s91
      %s94 = sphi 0, %s93
      %s108 = sphi 0, %s94
      %s112 = sphi 0, %s112
      %s114 = sphi 0, %s112
      %s115 = sphi 0, %s114
      %s129 = sphi 0, %s115
      %s133 = sphi 0, %s133
      %s135 = sphi 0, %s133
      %s136 = sphi 0, %s135
      %s150 = sphi 0, %s136
      %s156 = sphi 0, %s158
      %s159 = sphi 0, %s156
      %s160 = sphi 0, %s159
      %s176 = sphi 0, %s160
    $region4: #{tpu_custom_call.1} parent=1 // loop_header_branch
      %18 = sbr.rel (%p16) target = $region8
    $region5: #{tpu_custom_call.1} parent=1 // loop_body
      %s20 = ssub.s32 %s15, 1
      %s21 = ssub.s32 %s15, 2
      %s22 = sadd.s32 %s15, 1
      %s23 = ssub.s32 %s15, %s22
      %p24 = scmp.eq.s32.totalorder %s23, 0
      %s26 = sadd.s32 %s25, 1
      %s27 = scalar_select %p24, %s25, %s26
      %p30 = pneg %p24
      %p31 = scmp.eq.s32.totalorder %s15, 1
      %p32 = por %p30, %p31
      %p33 = scmp.ne.s32.totalorder %s25, %s28
      %p34 = scmp.eq.s32.totalorder %s15, 0
      %p35 = por %p33, %p34
      %p36 = scmp.ne.s32.totalorder %s25, %s28
      %p37 = scmp.eq.s32.totalorder %s20, 1
      %p38 = por %p36, %p37
      %p39 = scmp.ne.s32.totalorder %s28, %s29
      %p40 = scmp.eq.s32.totalorder %s20, 0
      %p41 = por %p39, %p40
      %p42 = scmp.ne.s32.totalorder %s28, %s29
      %p43 = scmp.eq.s32.totalorder %s21, 1
      %p44 = por %p42, %p43
      %p46 = scmp.ne.s32.totalorder %s29, %s45
      %p47 = scmp.eq.s32.totalorder %s21, 0
      %p48 = por %p46, %p47
      %s50 = sadd.s32 %s49, 1
      %p53 = scmp.eq.s32.totalorder %s15, 1
      %p54 = scmp.ne.s32.totalorder %s49, %s51
      %p55 = scmp.eq.s32.totalorder %s15, 0
      %p56 = por %p54, %p55
      %p57 = scmp.ne.s32.totalorder %s49, %s51
      %p58 = scmp.eq.s32.totalorder %s20, 1
      %p59 = por %p57, %p58
      %p60 = scmp.ne.s32.totalorder %s51, %s52
      %p61 = scmp.eq.s32.totalorder %s20, 0
      %p62 = por %p60, %p61
      %p63 = scmp.ne.s32.totalorder %s51, %s52
      %p64 = scmp.eq.s32.totalorder %s21, 1
      %p65 = por %p63, %p64
      %p67 = scmp.ne.s32.totalorder %s52, %s66
      %p68 = scmp.eq.s32.totalorder %s21, 0
      %p69 = por %p67, %p68
      %s71 = sadd.s32 %s70, 1
      %p74 = scmp.eq.s32.totalorder %s15, 1
      %p75 = scmp.ne.s32.totalorder %s70, %s72
      %p76 = scmp.eq.s32.totalorder %s15, 0
      %p77 = por %p75, %p76
      %p78 = scmp.ne.s32.totalorder %s70, %s72
      %p79 = scmp.eq.s32.totalorder %s20, 1
      %p80 = por %p78, %p79
      %p81 = scmp.ne.s32.totalorder %s72, %s73
      %p82 = scmp.eq.s32.totalorder %s20, 0
      %p83 = por %p81, %p82
      %p84 = scmp.ne.s32.totalorder %s72, %s73
      %p85 = scmp.eq.s32.totalorder %s21, 1
      %p86 = por %p84, %p85
      %p88 = scmp.ne.s32.totalorder %s73, %s87
      %p89 = scmp.eq.s32.totalorder %s21, 0
      %p90 = por %p88, %p89
      %s92 = sadd.s32 %s91, 1
      %p95 = scmp.eq.s32.totalorder %s15, 1
      %p96 = scmp.ne.s32.totalorder %s91, %s93
      %p97 = scmp.eq.s32.totalorder %s15, 0
      %p98 = por %p96, %p97
      %p99 = scmp.ne.s32.totalorder %s91, %s93
      %p100 = scmp.eq.s32.totalorder %s20, 1
      %p101 = por %p99, %p100
      %p102 = scmp.ne.s32.totalorder %s93, %s94
      %p103 = scmp.eq.s32.totalorder %s20, 0
      %p104 = por %p102, %p103
      %p105 = scmp.ne.s32.totalorder %s93, %s94
      %p106 = scmp.eq.s32.totalorder %s21, 1
      %p107 = por %p105, %p106
      %p109 = scmp.ne.s32.totalorder %s94, %s108
      %p110 = scmp.eq.s32.totalorder %s21, 0
      %p111 = por %p109, %p110
      %s113 = sadd.s32 %s112, 1
      %p116 = scmp.eq.s32.totalorder %s15, 1
      %p117 = scmp.ne.s32.totalorder %s112, %s114
      %p118 = scmp.eq.s32.totalorder %s15, 0
      %p119 = por %p117, %p118
      %p120 = scmp.ne.s32.totalorder %s112, %s114
      %p121 = scmp.eq.s32.totalorder %s20, 1
      %p122 = por %p120, %p121
      %p123 = scmp.ne.s32.totalorder %s114, %s115
      %p124 = scmp.eq.s32.totalorder %s20, 0
      %p125 = por %p123, %p124
      %p126 = scmp.ne.s32.totalorder %s114, %s115
      %p127 = scmp.eq.s32.totalorder %s21, 1
      %p128 = por %p126, %p127
      %p130 = scmp.ne.s32.totalorder %s115, %s129
      %p131 = scmp.eq.s32.totalorder %s21, 0
      %p132 = por %p130, %p131
      %s134 = sadd.s32 %s133, 1
      %p137 = scmp.eq.s32.totalorder %s15, 1
      %p138 = scmp.ne.s32.totalorder %s133, %s135
      %p139 = scmp.eq.s32.totalorder %s15, 0
      %p140 = por %p138, %p139
      %p141 = scmp.ne.s32.totalorder %s133, %s135
      %p142 = scmp.eq.s32.totalorder %s20, 1
      %p143 = por %p141, %p142
      %p144 = scmp.ne.s32.totalorder %s135, %s136
      %p145 = scmp.eq.s32.totalorder %s20, 0
      %p146 = por %p144, %p145
      %p147 = scmp.ne.s32.totalorder %s135, %s136
      %p148 = scmp.eq.s32.totalorder %s21, 1
      %p149 = por %p147, %p148
      %p151 = scmp.ne.s32.totalorder %s136, %s150
      %p152 = scmp.eq.s32.totalorder %s21, 0
      %p153 = por %p151, %p152
      %s154 = ssub.s32 %s15, %s22
      %p155 = scmp.eq.s32.totalorder %s154, 0
      %s157 = sadd.s32 %s156, 1
      %s158 = scalar_select %p155, %s156, %s157
      %p161 = pneg %p155
      %p162 = scmp.eq.s32.totalorder %s15, 1
      %p163 = por %p161, %p162
      %p164 = scmp.ne.s32.totalorder %s156, %s159
      %p165 = scmp.eq.s32.totalorder %s15, 0
      %p166 = por %p164, %p165
      %p167 = scmp.ne.s32.totalorder %s156, %s159
      %p168 = scmp.eq.s32.totalorder %s20, 1
      %p169 = por %p167, %p168
      %p170 = scmp.ne.s32.totalorder %s159, %s160
      %p171 = scmp.eq.s32.totalorder %s20, 0
      %p172 = por %p170, %p171
      %p173 = scmp.ne.s32.totalorder %s159, %s160
      %p174 = scmp.eq.s32.totalorder %s21, 1
      %p175 = por %p173, %p174
      %p177 = scmp.ne.s32.totalorder %s160, %s176
      %p178 = scmp.eq.s32.totalorder %s21, 0
      %p179 = por %p177, %p178
      %p180 = scmp.le.s32.totalorder 1, %s15
      %p181 = scmp.lt.s32.totalorder %s15, 3
      %p182 = pnand %p180, %p181
      %p183 = pneg %p182
      // Predicated region
      $region9: #{tpu_custom_call.1} parent=5 // pred_check
        _
      $region10: #{tpu_custom_call.1} parent=5 // pred_check_branch
        %185 = sbr.rel (%p182) target = $region12
      $region11: #{tpu_custom_call.1} parent=5 // pred_region
        %s186 = ssub.s32 %s15, 1
        // Predicated region
        $region13: #{tpu_custom_call.1} parent=11 // pred_check
          %p187 = pneg %p62
        $region14: #{tpu_custom_call.1} parent=11 // pred_check_branch
          %189 = sbr.rel (%p187) target = $region16
        $region15: #{tpu_custom_call.1} parent=11 // pred_region
          _
        $region16: #{tpu_custom_call.1} parent=11 // pred_fallthru
          _
        // Predicated region
        $region17: #{tpu_custom_call.1} parent=11 // pred_check
          %p190 = pneg %p83
        $region18: #{tpu_custom_call.1} parent=11 // pred_check_branch
          %192 = sbr.rel (%p190) target = $region20
        $region19: #{tpu_custom_call.1} parent=11 // pred_region
          _
        $region20: #{tpu_custom_call.1} parent=11 // pred_fallthru
          _
        // Predicated region
        $region21: #{tpu_custom_call.1} parent=11 // pred_check
          %p193 = pneg %p104
        $region22: #{tpu_custom_call.1} parent=11 // pred_check_branch
          %195 = sbr.rel (%p193) target = $region24
        $region23: #{tpu_custom_call.1} parent=11 // pred_region
          _
        $region24: #{tpu_custom_call.1} parent=11 // pred_fallthru
          _
        // Predicated region
        $region25: #{tpu_custom_call.1} parent=11 // pred_check
          %p196 = pneg %p125
        $region26: #{tpu_custom_call.1} parent=11 // pred_check_branch
          %198 = sbr.rel (%p196) target = $region28
        $region27: #{tpu_custom_call.1} parent=11 // pred_region
          _
        $region28: #{tpu_custom_call.1} parent=11 // pred_fallthru
          _
        // Predicated region
        $region29: #{tpu_custom_call.1} parent=11 // pred_check
          %p199 = pneg %p146
        $region30: #{tpu_custom_call.1} parent=11 // pred_check_branch
          %201 = sbr.rel (%p199) target = $region32
        $region31: #{tpu_custom_call.1} parent=11 // pred_region
          _
        $region32: #{tpu_custom_call.1} parent=11 // pred_fallthru
          _
      $region12: #{tpu_custom_call.1} parent=5 // pred_fallthru
        _
      %p202 = scmp.lt.s32.totalorder %s15, 2
      // Predicated region
      $region33: #{tpu_custom_call.1} parent=5 // pred_check
        %p203 = pneg %p202
      $region34: #{tpu_custom_call.1} parent=5 // pred_check_branch
        %205 = sbr.rel (%p203) target = $region36
      $region35: #{tpu_custom_call.1} parent=5 // pred_region
        // Predicated region
        $region37: #{tpu_custom_call.1} parent=35 // pred_check
          %p206 = pneg %p35
        $region38: #{tpu_custom_call.1} parent=35 // pred_check_branch
          %208 = sbr.rel (%p206) target = $region40
        $region39: #{tpu_custom_call.1} parent=35 // pred_region
          %p209 = scmp.lt.s32.totalorder %s15, 1
          %s210 = scalar_select %p209, %s15, 1
          %s211 = smul.addr %s210, 32
          %s212 = smul.addr %s211, 8
          %s213 = scalar_lea.vmem %s0, %s212
        $region40: #{tpu_custom_call.1} parent=35 // pred_fallthru
          _
      $region36: #{tpu_custom_call.1} parent=5 // pred_fallthru
        _
      %p214 = scmp.le.s32.totalorder 1, %s15
      %p215 = scmp.lt.s32.totalorder %s15, 3
      %p216 = pnand %p214, %p215
      %p217 = pneg %p216
      // Predicated region
      $region41: #{tpu_custom_call.1} parent=5 // pred_check
        _
      $region42: #{tpu_custom_call.1} parent=5 // pred_check_branch
        %219 = sbr.rel (%p216) target = $region44
      $region43: #{tpu_custom_call.1} parent=5 // pred_region
        %s220 = ssub.s32 %s15, 1
        %p221 = scmp.lt.s32.totalorder %s20, 1
        %s222 = scalar_select %p221, %s20, 1
        %s223 = smul.addr %s222, 32
        %s224 = smul.addr %s223, 8
        %s225 = scalar_lea.vmem %s0, %s224
        %p226 = pneg %p41
        %p227 = pneg %p38
        %p228 = pneg %p62
        %p229 = pneg %p59
        %p230 = pneg %p83
        %p231 = pneg %p80
        %p232 = pneg %p104
        %p233 = pneg %p101
        %p234 = pneg %p125
        %p235 = pneg %p122
        %p236 = pneg %p146
        %p237 = pneg %p143
        %p238 = pneg %p172
        %p239 = pneg %p169
        %s240 = sand.u32 %s159, 1
        %s241 = scalar_lea.sflag [#allocation7], %s240
        %s242 = sand.u32 %s159, 1
        %s243 = smul.addr %s242, 256
        %s244 = scalar_lea.vmem [#allocation6], %s243
        %p245 = scmp.lt.s32.totalorder %s20, 1
        %s246 = scalar_select %p245, %s20, 1
        %s247 = smul.addr %s246, 32
        %s248 = smul.addr %s247, 8
        %s249 = scalar_lea.vmem %s0, %s248
        %v250 = vld [vmem:[%s249] sm:$0xff]
        %v251 = vld [vmem:[%s249 + $0x8] sm:$0xff]
        %v252 = vld [vmem:[%s249 + $0x10] sm:$0xff]
        %v253 = vld [vmem:[%s249 + $0x18] sm:$0xff]
        %v254 = vld [vmem:[%s249 + $0x20] sm:$0xff]
        %v255 = vld [vmem:[%s249 + $0x28] sm:$0xff]
        %v256 = vld [vmem:[%s249 + $0x30] sm:$0xff]
        %v257 = vld [vmem:[%s249 + $0x38] sm:$0xff]
        %v258 = vld [vmem:[%s249 + $0x40] sm:$0xff]
        %v259 = vld [vmem:[%s249 + $0x48] sm:$0xff]
        %v260 = vld [vmem:[%s249 + $0x50] sm:$0xff]
        %v261 = vld [vmem:[%s249 + $0x58] sm:$0xff]
        %v262 = vld [vmem:[%s249 + $0x60] sm:$0xff]
        %v263 = vld [vmem:[%s249 + $0x68] sm:$0xff]
        %v264 = vld [vmem:[%s249 + $0x70] sm:$0xff]
        %v265 = vld [vmem:[%s249 + $0x78] sm:$0xff]
        %v266 = vld [vmem:[%s249 + $0x80] sm:$0xff]
        %v267 = vld [vmem:[%s249 + $0x88] sm:$0xff]
        %v268 = vld [vmem:[%s249 + $0x90] sm:$0xff]
        %v269 = vld [vmem:[%s249 + $0x98] sm:$0xff]
        %v270 = vld [vmem:[%s249 + $0xa0] sm:$0xff]
        %v271 = vld [vmem:[%s249 + $0xa8] sm:$0xff]
        %v272 = vld [vmem:[%s249 + $0xb0] sm:$0xff]
        %v273 = vld [vmem:[%s249 + $0xb8] sm:$0xff]
        %v274 = vld [vmem:[%s249 + $0xc0] sm:$0xff]
        %v275 = vld [vmem:[%s249 + $0xc8] sm:$0xff]
        %v276 = vld [vmem:[%s249 + $0xd0] sm:$0xff]
        %v277 = vld [vmem:[%s249 + $0xd8] sm:$0xff]
        %v278 = vld [vmem:[%s249 + $0xe0] sm:$0xff]
        %v279 = vld [vmem:[%s249 + $0xe8] sm:$0xff]
        %v280 = vld [vmem:[%s249 + $0xf0] sm:$0xff]
        %v281 = vld [vmem:[%s249 + $0xf8] sm:$0xff]
        %v282 = vld [vmem:[%s1] sm:$0xff]
        %v283 = vld [vmem:[%s1 + $0x8] sm:$0xff]
        %v284 = vld [vmem:[%s1 + $0x10] sm:$0xff]
        %vm285 = vcmask 64512
        %v287 = vsel %vm285, %v250, 0
        %v290 = vsel %vm285, %v251, 0
        %v293 = vsel %vm285, %v252, 0
        %v296 = vsel %vm285, %v253, 0
        %v299 = vsel %vm285, %v254, 0
        %v302 = vsel %vm285, %v255, 0
        %v305 = vsel %vm285, %v256, 0
        %v308 = vsel %vm285, %v257, 0
        %v311 = vsel %vm285, %v258, 0
        %v314 = vsel %vm285, %v259, 0
        %v317 = vsel %vm285, %v260, 0
        %v320 = vsel %vm285, %v261, 0
        %v323 = vsel %vm285, %v262, 0
        %v326 = vsel %vm285, %v263, 0
        %v329 = vsel %vm285, %v264, 0
        %v332 = vsel %vm285, %v265, 0
        %v335 = vsel %vm285, %v266, 0
        %v338 = vsel %vm285, %v267, 0
        %v341 = vsel %vm285, %v268, 0
        %v344 = vsel %vm285, %v269, 0
        %v347 = vsel %vm285, %v270, 0
        %v350 = vsel %vm285, %v271, 0
        %v353 = vsel %vm285, %v272, 0
        %v356 = vsel %vm285, %v273, 0
        %v359 = vsel %vm285, %v274, 0
        %v362 = vsel %vm285, %v275, 0
        %v365 = vsel %vm285, %v276, 0
        %v368 = vsel %vm285, %v277, 0
        %v371 = vsel %vm285, %v278, 0
        %v374 = vsel %vm285, %v279, 0
        %v377 = vsel %vm285, %v280, 0
        %v380 = vsel %vm285, %v281, 0
        %382 = vmatpush.msra.mxu0 0.0
        %383 = vmatpush.msra.mxu0 0.0
        %384 = vmatpush.msra.mxu0 0.0
        %385 = vmatpush.msra.mxu0 0.0
        %386 = vmatpush.msra.mxu0 0.0
        %387 = vmatpush.msra.mxu0 0.0
        %388 = vmatpush.msra.mxu0 0.0
        %389 = vmatpush.msra.mxu0 0.0
        %390 = vmatpush.msra.mxu0 0.0
        %391 = vmatpush.msra.mxu0 0.0
        %392 = vmatpush.msra.mxu0 0.0
        %393 = vmatpush.msra.mxu0 0.0
        %394 = vmatpush.msra.mxu0 0.0
        %395 = vmatpush.msra.mxu0 0.0
        %396 = vmatpush.msra.mxu0 0.0
        %397 = vmatpush.msra.mxu0 %v282
        %398 = vmatmul.f32.gmra.mxu0 %v287
        %v399 = vpop.f32.mrf.mxu0
        %v400 = vadd.f32 0.0, %v399
        %401 = vmatmul.f32.gmra.mxu0 %v290
        %v402 = vpop.f32.mrf.mxu0
        %v403 = vadd.f32 0.0, %v402
        %404 = vmatmul.f32.gmra.mxu0 %v293
        %v405 = vpop.f32.mrf.mxu0
        %v406 = vadd.f32 0.0, %v405
        %407 = vmatmul.f32.gmra.mxu0 %v296
        %v408 = vpop.f32.mrf.mxu0
        %v409 = vadd.f32 0.0, %v408
        %410 = vmatmul.f32.gmra.mxu0 %v299
        %v411 = vpop.f32.mrf.mxu0
        %v412 = vadd.f32 0.0, %v411
        %413 = vmatmul.f32.gmra.mxu0 %v302
        %v414 = vpop.f32.mrf.mxu0
        %v415 = vadd.f32 0.0, %v414
        %416 = vmatmul.f32.gmra.mxu0 %v305
        %v417 = vpop.f32.mrf.mxu0
        %v418 = vadd.f32 0.0, %v417
        %419 = vmatmul.f32.gmra.mxu0 %v308
        %v420 = vpop.f32.mrf.mxu0
        %v421 = vadd.f32 0.0, %v420
        %422 = vmatmul.f32.gmra.mxu0 %v311
        %v423 = vpop.f32.mrf.mxu0
        %v424 = vadd.f32 0.0, %v423
        %425 = vmatmul.f32.gmra.mxu0 %v314
        %v426 = vpop.f32.mrf.mxu0
        %v427 = vadd.f32 0.0, %v426
        %428 = vmatmul.f32.gmra.mxu0 %v317
        %v429 = vpop.f32.mrf.mxu0
        %v430 = vadd.f32 0.0, %v429
        %431 = vmatmul.f32.gmra.mxu0 %v320
        %v432 = vpop.f32.mrf.mxu0
        %v433 = vadd.f32 0.0, %v432
        %434 = vmatmul.f32.gmra.mxu0 %v323
        %v435 = vpop.f32.mrf.mxu0
        %v436 = vadd.f32 0.0, %v435
        %437 = vmatmul.f32.gmra.mxu0 %v326
        %v438 = vpop.f32.mrf.mxu0
        %v439 = vadd.f32 0.0, %v438
        %440 = vmatmul.f32.gmra.mxu0 %v329
        %v441 = vpop.f32.mrf.mxu0
        %v442 = vadd.f32 0.0, %v441
        %443 = vmatmul.f32.gmra.mxu0 %v332
        %v444 = vpop.f32.mrf.mxu0
        %v445 = vadd.f32 0.0, %v444
        %446 = vmatmul.f32.gmra.mxu0 %v335
        %v447 = vpop.f32.mrf.mxu0
        %v448 = vadd.f32 0.0, %v447
        %449 = vmatmul.f32.gmra.mxu0 %v338
        %v450 = vpop.f32.mrf.mxu0
        %v451 = vadd.f32 0.0, %v450
        %452 = vmatmul.f32.gmra.mxu0 %v341
        %v453 = vpop.f32.mrf.mxu0
        %v454 = vadd.f32 0.0, %v453
        %455 = vmatmul.f32.gmra.mxu0 %v344
        %v456 = vpop.f32.mrf.mxu0
        %v457 = vadd.f32 0.0, %v456
        %458 = vmatmul.f32.gmra.mxu0 %v347
        %v459 = vpop.f32.mrf.mxu0
        %v460 = vadd.f32 0.0, %v459
        %461 = vmatmul.f32.gmra.mxu0 %v350
        %v462 = vpop.f32.mrf.mxu0
        %v463 = vadd.f32 0.0, %v462
        %464 = vmatmul.f32.gmra.mxu0 %v353
        %v465 = vpop.f32.mrf.mxu0
        %v466 = vadd.f32 0.0, %v465
        %467 = vmatmul.f32.gmra.mxu0 %v356
        %v468 = vpop.f32.mrf.mxu0
        %v469 = vadd.f32 0.0, %v468
        %470 = vmatmul.f32.gmra.mxu0 %v359
        %v471 = vpop.f32.mrf.mxu0
        %v472 = vadd.f32 0.0, %v471
        %473 = vmatmul.f32.gmra.mxu0 %v362
        %v474 = vpop.f32.mrf.mxu0
        %v475 = vadd.f32 0.0, %v474
        %476 = vmatmul.f32.gmra.mxu0 %v365
        %v477 = vpop.f32.mrf.mxu0
        %v478 = vadd.f32 0.0, %v477
        %479 = vmatmul.f32.gmra.mxu0 %v368
        %v480 = vpop.f32.mrf.mxu0
        %v481 = vadd.f32 0.0, %v480
        %482 = vmatmul.f32.gmra.mxu0 %v371
        %v483 = vpop.f32.mrf.mxu0
        %v484 = vadd.f32 0.0, %v483
        %485 = vmatmul.f32.gmra.mxu0 %v374
        %v486 = vpop.f32.mrf.mxu0
        %v487 = vadd.f32 0.0, %v486
        %488 = vmatmul.f32.gmra.mxu0 %v377
        %v489 = vpop.f32.mrf.mxu0
        %v490 = vadd.f32 0.0, %v489
        %491 = vmatmul.f32.gmra.mxu0 %v380
        %v492 = vpop.f32.mrf.mxu0
        %v493 = vadd.f32 0.0, %v492
        %494 = vdwg.mxu0
        %495 = vmatpush.msra.mxu0 0.0
        %496 = vmatpush.msra.mxu0 0.0
        %497 = vmatpush.msra.mxu0 0.0
        %498 = vmatpush.msra.mxu0 0.0
        %499 = vmatpush.msra.mxu0 0.0
        %500 = vmatpush.msra.mxu0 0.0
        %501 = vmatpush.msra.mxu0 0.0
        %502 = vmatpush.msra.mxu0 0.0
        %503 = vmatpush.msra.mxu0 0.0
        %504 = vmatpush.msra.mxu0 0.0
        %505 = vmatpush.msra.mxu0 0.0
        %506 = vmatpush.msra.mxu0 0.0
        %507 = vmatpush.msra.mxu0 0.0
        %508 = vmatpush.msra.mxu0 0.0
        %509 = vmatpush.msra.mxu0 0.0
        %510 = vmatpush.msra.mxu0 %v283
        %511 = vmatmul.f32.gmra.mxu0 %v287
        %v512 = vpop.f32.mrf.mxu0
        %v513 = vadd.f32 0.0, %v512
        %514 = vmatmul.f32.gmra.mxu0 %v290
        %v515 = vpop.f32.mrf.mxu0
        %v516 = vadd.f32 0.0, %v515
        %517 = vmatmul.f32.gmra.mxu0 %v293
        %v518 = vpop.f32.mrf.mxu0
        %v519 = vadd.f32 0.0, %v518
        %520 = vmatmul.f32.gmra.mxu0 %v296
        %v521 = vpop.f32.mrf.mxu0
        %v522 = vadd.f32 0.0, %v521
        %523 = vmatmul.f32.gmra.mxu0 %v299
        %v524 = vpop.f32.mrf.mxu0
        %v525 = vadd.f32 0.0, %v524
        %526 = vmatmul.f32.gmra.mxu0 %v302
        %v527 = vpop.f32.mrf.mxu0
        %v528 = vadd.f32 0.0, %v527
        %529 = vmatmul.f32.gmra.mxu0 %v305
        %v530 = vpop.f32.mrf.mxu0
        %v531 = vadd.f32 0.0, %v530
        %532 = vmatmul.f32.gmra.mxu0 %v308
        %v533 = vpop.f32.mrf.mxu0
        %v534 = vadd.f32 0.0, %v533
        %535 = vmatmul.f32.gmra.mxu0 %v311
        %v536 = vpop.f32.mrf.mxu0
        %v537 = vadd.f32 0.0, %v536
        %538 = vmatmul.f32.gmra.mxu0 %v314
        %v539 = vpop.f32.mrf.mxu0
        %v540 = vadd.f32 0.0, %v539
        %541 = vmatmul.f32.gmra.mxu0 %v317
        %v542 = vpop.f32.mrf.mxu0
        %v543 = vadd.f32 0.0, %v542
        %544 = vmatmul.f32.gmra.mxu0 %v320
        %v545 = vpop.f32.mrf.mxu0
        %v546 = vadd.f32 0.0, %v545
        %547 = vmatmul.f32.gmra.mxu0 %v323
        %v548 = vpop.f32.mrf.mxu0
        %v549 = vadd.f32 0.0, %v548
        %550 = vmatmul.f32.gmra.mxu0 %v326
        %v551 = vpop.f32.mrf.mxu0
        %v552 = vadd.f32 0.0, %v551
        %553 = vmatmul.f32.gmra.mxu0 %v329
        %v554 = vpop.f32.mrf.mxu0
        %v555 = vadd.f32 0.0, %v554
        %556 = vmatmul.f32.gmra.mxu0 %v332
        %v557 = vpop.f32.mrf.mxu0
        %v558 = vadd.f32 0.0, %v557
        %559 = vmatmul.f32.gmra.mxu0 %v335
        %v560 = vpop.f32.mrf.mxu0
        %v561 = vadd.f32 0.0, %v560
        %562 = vmatmul.f32.gmra.mxu0 %v338
        %v563 = vpop.f32.mrf.mxu0
        %v564 = vadd.f32 0.0, %v563
        %565 = vmatmul.f32.gmra.mxu0 %v341
        %v566 = vpop.f32.mrf.mxu0
        %v567 = vadd.f32 0.0, %v566
        %568 = vmatmul.f32.gmra.mxu0 %v344
        %v569 = vpop.f32.mrf.mxu0
        %v570 = vadd.f32 0.0, %v569
        %571 = vmatmul.f32.gmra.mxu0 %v347
        %v572 = vpop.f32.mrf.mxu0
        %v573 = vadd.f32 0.0, %v572
        %574 = vmatmul.f32.gmra.mxu0 %v350
        %v575 = vpop.f32.mrf.mxu0
        %v576 = vadd.f32 0.0, %v575
        %577 = vmatmul.f32.gmra.mxu0 %v353
        %v578 = vpop.f32.mrf.mxu0
        %v579 = vadd.f32 0.0, %v578
        %580 = vmatmul.f32.gmra.mxu0 %v356
        %v581 = vpop.f32.mrf.mxu0
        %v582 = vadd.f32 0.0, %v581
        %583 = vmatmul.f32.gmra.mxu0 %v359
        %v584 = vpop.f32.mrf.mxu0
        %v585 = vadd.f32 0.0, %v584
        %586 = vmatmul.f32.gmra.mxu0 %v362
        %v587 = vpop.f32.mrf.mxu0
        %v588 = vadd.f32 0.0, %v587
        %589 = vmatmul.f32.gmra.mxu0 %v365
        %v590 = vpop.f32.mrf.mxu0
        %v591 = vadd.f32 0.0, %v590
        %592 = vmatmul.f32.gmra.mxu0 %v368
        %v593 = vpop.f32.mrf.mxu0
        %v594 = vadd.f32 0.0, %v593
        %595 = vmatmul.f32.gmra.mxu0 %v371
        %v596 = vpop.f32.mrf.mxu0
        %v597 = vadd.f32 0.0, %v596
        %598 = vmatmul.f32.gmra.mxu0 %v374
        %v599 = vpop.f32.mrf.mxu0
        %v600 = vadd.f32 0.0, %v599
        %601 = vmatmul.f32.gmra.mxu0 %v377
        %v602 = vpop.f32.mrf.mxu0
        %v603 = vadd.f32 0.0, %v602
        %604 = vmatmul.f32.gmra.mxu0 %v380
        %v605 = vpop.f32.mrf.mxu0
        %v606 = vadd.f32 0.0, %v605
        %607 = vdwg.mxu0
        %608 = vmatpush.msra.mxu0 0.0
        %609 = vmatpush.msra.mxu0 0.0
        %610 = vmatpush.msra.mxu0 0.0
        %611 = vmatpush.msra.mxu0 0.0
        %612 = vmatpush.msra.mxu0 0.0
        %613 = vmatpush.msra.mxu0 0.0
        %614 = vmatpush.msra.mxu0 0.0
        %615 = vmatpush.msra.mxu0 0.0
        %616 = vmatpush.msra.mxu0 0.0
        %617 = vmatpush.msra.mxu0 0.0
        %618 = vmatpush.msra.mxu0 0.0
        %619 = vmatpush.msra.mxu0 0.0
        %620 = vmatpush.msra.mxu0 0.0
        %621 = vmatpush.msra.mxu0 0.0
        %622 = vmatpush.msra.mxu0 0.0
        %623 = vmatpush.msra.mxu0 %v284
        %624 = vmatmul.f32.gmra.mxu0 %v287
        %v625 = vpop.f32.mrf.mxu0
        %v626 = vadd.f32 0.0, %v625
        %627 = vmatmul.f32.gmra.mxu0 %v290
        %v628 = vpop.f32.mrf.mxu0
        %v629 = vadd.f32 0.0, %v628
        %630 = vmatmul.f32.gmra.mxu0 %v293
        %v631 = vpop.f32.mrf.mxu0
        %v632 = vadd.f32 0.0, %v631
        %633 = vmatmul.f32.gmra.mxu0 %v296
        %v634 = vpop.f32.mrf.mxu0
        %v635 = vadd.f32 0.0, %v634
        %636 = vmatmul.f32.gmra.mxu0 %v299
        %v637 = vpop.f32.mrf.mxu0
        %v638 = vadd.f32 0.0, %v637
        %639 = vmatmul.f32.gmra.mxu0 %v302
        %v640 = vpop.f32.mrf.mxu0
        %v641 = vadd.f32 0.0, %v640
        %642 = vmatmul.f32.gmra.mxu0 %v305
        %v643 = vpop.f32.mrf.mxu0
        %v644 = vadd.f32 0.0, %v643
        %645 = vmatmul.f32.gmra.mxu0 %v308
        %v646 = vpop.f32.mrf.mxu0
        %v647 = vadd.f32 0.0, %v646
        %648 = vmatmul.f32.gmra.mxu0 %v311
        %v649 = vpop.f32.mrf.mxu0
        %v650 = vadd.f32 0.0, %v649
        %651 = vmatmul.f32.gmra.mxu0 %v314
        %v652 = vpop.f32.mrf.mxu0
        %v653 = vadd.f32 0.0, %v652
        %654 = vmatmul.f32.gmra.mxu0 %v317
        %v655 = vpop.f32.mrf.mxu0
        %v656 = vadd.f32 0.0, %v655
        %657 = vmatmul.f32.gmra.mxu0 %v320
        %v658 = vpop.f32.mrf.mxu0
        %v659 = vadd.f32 0.0, %v658
        %660 = vmatmul.f32.gmra.mxu0 %v323
        %v661 = vpop.f32.mrf.mxu0
        %v662 = vadd.f32 0.0, %v661
        %663 = vmatmul.f32.gmra.mxu0 %v326
        %v664 = vpop.f32.mrf.mxu0
        %v665 = vadd.f32 0.0, %v664
        %666 = vmatmul.f32.gmra.mxu0 %v329
        %v667 = vpop.f32.mrf.mxu0
        %v668 = vadd.f32 0.0, %v667
        %669 = vmatmul.f32.gmra.mxu0 %v332
        %v670 = vpop.f32.mrf.mxu0
        %v671 = vadd.f32 0.0, %v670
        %672 = vmatmul.f32.gmra.mxu0 %v335
        %v673 = vpop.f32.mrf.mxu0
        %v674 = vadd.f32 0.0, %v673
        %675 = vmatmul.f32.gmra.mxu0 %v338
        %v676 = vpop.f32.mrf.mxu0
        %v677 = vadd.f32 0.0, %v676
        %678 = vmatmul.f32.gmra.mxu0 %v341
        %v679 = vpop.f32.mrf.mxu0
        %v680 = vadd.f32 0.0, %v679
        %681 = vmatmul.f32.gmra.mxu0 %v344
        %v682 = vpop.f32.mrf.mxu0
        %v683 = vadd.f32 0.0, %v682
        %684 = vmatmul.f32.gmra.mxu0 %v347
        %v685 = vpop.f32.mrf.mxu0
        %v686 = vadd.f32 0.0, %v685
        %687 = vmatmul.f32.gmra.mxu0 %v350
        %v688 = vpop.f32.mrf.mxu0
        %v689 = vadd.f32 0.0, %v688
        %690 = vmatmul.f32.gmra.mxu0 %v353
        %v691 = vpop.f32.mrf.mxu0
        %v692 = vadd.f32 0.0, %v691
        %693 = vmatmul.f32.gmra.mxu0 %v356
        %v694 = vpop.f32.mrf.mxu0
        %v695 = vadd.f32 0.0, %v694
        %696 = vmatmul.f32.gmra.mxu0 %v359
        %v697 = vpop.f32.mrf.mxu0
        %v698 = vadd.f32 0.0, %v697
        %699 = vmatmul.f32.gmra.mxu0 %v362
        %v700 = vpop.f32.mrf.mxu0
        %v701 = vadd.f32 0.0, %v700
        %702 = vmatmul.f32.gmra.mxu0 %v365
        %v703 = vpop.f32.mrf.mxu0
        %v704 = vadd.f32 0.0, %v703
        %705 = vmatmul.f32.gmra.mxu0 %v368
        %v706 = vpop.f32.mrf.mxu0
        %v707 = vadd.f32 0.0, %v706
        %708 = vmatmul.f32.gmra.mxu0 %v371
        %v709 = vpop.f32.mrf.mxu0
        %v710 = vadd.f32 0.0, %v709
        %711 = vmatmul.f32.gmra.mxu0 %v374
        %v712 = vpop.f32.mrf.mxu0
        %v713 = vadd.f32 0.0, %v712
        %714 = vmatmul.f32.gmra.mxu0 %v377
        %v715 = vpop.f32.mrf.mxu0
        %v716 = vadd.f32 0.0, %v715
        %717 = vmatmul.f32.gmra.mxu0 %v380
        %v718 = vpop.f32.mrf.mxu0
        %v719 = vadd.f32 0.0, %v718
        %720 = vdwg.mxu0
        %721 = vst [vmem:[#allocation2] sm:$0xff] %v400
        %722 = vst [vmem:[#allocation2 + $0x8] sm:$0xff] %v513
        %vm723 = vcmask 523264
        %724 = vst.msk [vmem:[#allocation2 + $0x10] sm:$0xff] %vm723, %v626
        %725 = vst [vmem:[#allocation2 + $0x18] sm:$0xff] %v403
        %726 = vst [vmem:[#allocation2 + $0x20] sm:$0xff] %v516
        %727 = vst.msk [vmem:[#allocation2 + $0x28] sm:$0xff] %vm723, %v629
        %728 = vst [vmem:[#allocation2 + $0x30] sm:$0xff] %v406
        %729 = vst [vmem:[#allocation2 + $0x38] sm:$0xff] %v519
        %730 = vst.msk [vmem:[#allocation2 + $0x40] sm:$0xff] %vm723, %v632
        %731 = vst [vmem:[#allocation2 + $0x48] sm:$0xff] %v409
        %732 = vst [vmem:[#allocation2 + $0x50] sm:$0xff] %v522
        %733 = vst.msk [vmem:[#allocation2 + $0x58] sm:$0xff] %vm723, %v635
        %734 = vst [vmem:[#allocation2 + $0x60] sm:$0xff] %v412
        %735 = vst [vmem:[#allocation2 + $0x68] sm:$0xff] %v525
        %736 = vst.msk [vmem:[#allocation2 + $0x70] sm:$0xff] %vm723, %v638
        %737 = vst [vmem:[#allocation2 + $0x78] sm:$0xff] %v415
        %738 = vst [vmem:[#allocation2 + $0x80] sm:$0xff] %v528
        %739 = vst.msk [vmem:[#allocation2 + $0x88] sm:$0xff] %vm723, %v641
        %740 = vst [vmem:[#allocation2 + $0x90] sm:$0xff] %v418
        %741 = vst [vmem:[#allocation2 + $0x98] sm:$0xff] %v531
        %742 = vst.msk [vmem:[#allocation2 + $0xa0] sm:$0xff] %vm723, %v644
        %743 = vst [vmem:[#allocation2 + $0xa8] sm:$0xff] %v421
        %744 = vst [vmem:[#allocation2 + $0xb0] sm:$0xff] %v534
        %745 = vst.msk [vmem:[#allocation2 + $0xb8] sm:$0xff] %vm723, %v647
        %746 = vst [vmem:[#allocation2 + $0xc0] sm:$0xff] %v424
        %747 = vst [vmem:[#allocation2 + $0xc8] sm:$0xff] %v537
        %748 = vst.msk [vmem:[#allocation2 + $0xd0] sm:$0xff] %vm723, %v650
        %749 = vst [vmem:[#allocation2 + $0xd8] sm:$0xff] %v427
        %750 = vst [vmem:[#allocation2 + $0xe0] sm:$0xff] %v540
        %751 = vst.msk [vmem:[#allocation2 + $0xe8] sm:$0xff] %vm723, %v653
        %752 = vst [vmem:[#allocation2 + $0xf0] sm:$0xff] %v430
        %753 = vst [vmem:[#allocation2 + $0xf8] sm:$0xff] %v543
        %754 = vst.msk [vmem:[#allocation2 + $0x100] sm:$0xff] %vm723, %v656
        %755 = vst [vmem:[#allocation2 + $0x108] sm:$0xff] %v433
        %756 = vst [vmem:[#allocation2 + $0x110] sm:$0xff] %v546
        %757 = vst.msk [vmem:[#allocation2 + $0x118] sm:$0xff] %vm723, %v659
        %758 = vst [vmem:[#allocation2 + $0x120] sm:$0xff] %v436
        %759 = vst [vmem:[#allocation2 + $0x128] sm:$0xff] %v549
        %760 = vst.msk [vmem:[#allocation2 + $0x130] sm:$0xff] %vm723, %v662
        %761 = vst [vmem:[#allocation2 + $0x138] sm:$0xff] %v439
        %762 = vst [vmem:[#allocation2 + $0x140] sm:$0xff] %v552
        %763 = vst.msk [vmem:[#allocation2 + $0x148] sm:$0xff] %vm723, %v665
        %764 = vst [vmem:[#allocation2 + $0x150] sm:$0xff] %v442
        %765 = vst [vmem:[#allocation2 + $0x158] sm:$0xff] %v555
        %766 = vst.msk [vmem:[#allocation2 + $0x160] sm:$0xff] %vm723, %v668
        %767 = vst [vmem:[#allocation2 + $0x168] sm:$0xff] %v445
        %768 = vst [vmem:[#allocation2 + $0x170] sm:$0xff] %v558
        %769 = vst.msk [vmem:[#allocation2 + $0x178] sm:$0xff] %vm723, %v671
        %770 = vst [vmem:[#allocation2 + $0x180] sm:$0xff] %v448
        %771 = vst [vmem:[#allocation2 + $0x188] sm:$0xff] %v561
        %772 = vst.msk [vmem:[#allocation2 + $0x190] sm:$0xff] %vm723, %v674
        %773 = vst [vmem:[#allocation2 + $0x198] sm:$0xff] %v451
        %774 = vst [vmem:[#allocation2 + $0x1a0] sm:$0xff] %v564
        %775 = vst.msk [vmem:[#allocation2 + $0x1a8] sm:$0xff] %vm723, %v677
        %776 = vst [vmem:[#allocation2 + $0x1b0] sm:$0xff] %v454
        %777 = vst [vmem:[#allocation2 + $0x1b8] sm:$0xff] %v567
        %778 = vst.msk [vmem:[#allocation2 + $0x1c0] sm:$0xff] %vm723, %v680
        %779 = vst [vmem:[#allocation2 + $0x1c8] sm:$0xff] %v457
        %780 = vst [vmem:[#allocation2 + $0x1d0] sm:$0xff] %v570
        %781 = vst.msk [vmem:[#allocation2 + $0x1d8] sm:$0xff] %vm723, %v683
        %782 = vst [vmem:[#allocation2 + $0x1e0] sm:$0xff] %v460
        %783 = vst [vmem:[#allocation2 + $0x1e8] sm:$0xff] %v573
        %784 = vst.msk [vmem:[#allocation2 + $0x1f0] sm:$0xff] %vm723, %v686
        %785 = vst [vmem:[#allocation2 + $0x1f8] sm:$0xff] %v463
        %786 = vst [vmem:[#allocation2 + $0x200] sm:$0xff] %v576
        %787 = vst.msk [vmem:[#allocation2 + $0x208] sm:$0xff] %vm723, %v689
        %788 = vst [vmem:[#allocation2 + $0x210] sm:$0xff] %v466
        %789 = vst [vmem:[#allocation2 + $0x218] sm:$0xff] %v579
        %790 = vst.msk [vmem:[#allocation2 + $0x220] sm:$0xff] %vm723, %v692
        %791 = vst [vmem:[#allocation2 + $0x228] sm:$0xff] %v469
        %792 = vst [vmem:[#allocation2 + $0x230] sm:$0xff] %v582
        %793 = vst.msk [vmem:[#allocation2 + $0x238] sm:$0xff] %vm723, %v695
        %794 = vst [vmem:[#allocation2 + $0x240] sm:$0xff] %v472
        %795 = vst [vmem:[#allocation2 + $0x248] sm:$0xff] %v585
        %796 = vst.msk [vmem:[#allocation2 + $0x250] sm:$0xff] %vm723, %v698
        %797 = vst [vmem:[#allocation2 + $0x258] sm:$0xff] %v475
        %798 = vst [vmem:[#allocation2 + $0x260] sm:$0xff] %v588
        %799 = vst.msk [vmem:[#allocation2 + $0x268] sm:$0xff] %vm723, %v701
        %800 = vst [vmem:[#allocation2 + $0x270] sm:$0xff] %v478
        %801 = vst [vmem:[#allocation2 + $0x278] sm:$0xff] %v591
        %802 = vst.msk [vmem:[#allocation2 + $0x280] sm:$0xff] %vm723, %v704
        %803 = vst [vmem:[#allocation2 + $0x288] sm:$0xff] %v481
        %804 = vst [vmem:[#allocation2 + $0x290] sm:$0xff] %v594
        %805 = vst.msk [vmem:[#allocation2 + $0x298] sm:$0xff] %vm723, %v707
        %806 = vst [vmem:[#allocation2 + $0x2a0] sm:$0xff] %v484
        %807 = vst [vmem:[#allocation2 + $0x2a8] sm:$0xff] %v597
        %808 = vst.msk [vmem:[#allocation2 + $0x2b0] sm:$0xff] %vm723, %v710
        %809 = vst [vmem:[#allocation2 + $0x2b8] sm:$0xff] %v487
        %810 = vst [vmem:[#allocation2 + $0x2c0] sm:$0xff] %v600
        %811 = vst.msk [vmem:[#allocation2 + $0x2c8] sm:$0xff] %vm723, %v713
        %812 = vst [vmem:[#allocation2 + $0x2d0] sm:$0xff] %v490
        %813 = vst [vmem:[#allocation2 + $0x2d8] sm:$0xff] %v603
        %814 = vst.msk [vmem:[#allocation2 + $0x2e0] sm:$0xff] %vm723, %v716
        %815 = vst [vmem:[#allocation2 + $0x2e8] sm:$0xff] %v493
        %816 = vst [vmem:[#allocation2 + $0x2f0] sm:$0xff] %v606
        %817 = vst.msk [vmem:[#allocation2 + $0x2f8] sm:$0xff] %vm723, %v719
        %v818 = vld [vmem:[#allocation2] sm:$0xff]
        %v819 = vld [vmem:[#allocation2 + $0x8] sm:$0xff]
        %v820 = vld [vmem:[#allocation2 + $0x18] sm:$0xff]
        %v821 = vld [vmem:[#allocation2 + $0x20] sm:$0xff]
        %v822 = vld [vmem:[#allocation2 + $0x30] sm:$0xff]
        %v823 = vld [vmem:[#allocation2 + $0x38] sm:$0xff]
        %v824 = vld [vmem:[#allocation2 + $0x48] sm:$0xff]
        %v825 = vld [vmem:[#allocation2 + $0x50] sm:$0xff]
        %v826 = vld [vmem:[#allocation2 + $0x60] sm:$0xff]
        %v827 = vld [vmem:[#allocation2 + $0x68] sm:$0xff]
        %v828 = vld [vmem:[#allocation2 + $0x78] sm:$0xff]
        %v829 = vld [vmem:[#allocation2 + $0x80] sm:$0xff]
        %v830 = vld [vmem:[#allocation2 + $0x90] sm:$0xff]
        %v831 = vld [vmem:[#allocation2 + $0x98] sm:$0xff]
        %v832 = vld [vmem:[#allocation2 + $0xa8] sm:$0xff]
        %v833 = vld [vmem:[#allocation2 + $0xb0] sm:$0xff]
        %v834 = vld [vmem:[#allocation2 + $0xc0] sm:$0xff]
        %v835 = vld [vmem:[#allocation2 + $0xc8] sm:$0xff]
        %v836 = vld [vmem:[#allocation2 + $0xd8] sm:$0xff]
        %v837 = vld [vmem:[#allocation2 + $0xe0] sm:$0xff]
        %v838 = vld [vmem:[#allocation2 + $0xf0] sm:$0xff]
        %v839 = vld [vmem:[#allocation2 + $0xf8] sm:$0xff]
        %v840 = vld [vmem:[#allocation2 + $0x108] sm:$0xff]
        %v841 = vld [vmem:[#allocation2 + $0x110] sm:$0xff]
        %v842 = vld [vmem:[#allocation2 + $0x120] sm:$0xff]
        %v843 = vld [vmem:[#allocation2 + $0x128] sm:$0xff]
        %v844 = vld [vmem:[#allocation2 + $0x138] sm:$0xff]
        %v845 = vld [vmem:[#allocation2 + $0x140] sm:$0xff]
        %v846 = vld [vmem:[#allocation2 + $0x150] sm:$0xff]
        %v847 = vld [vmem:[#allocation2 + $0x158] sm:$0xff]
        %v848 = vld [vmem:[#allocation2 + $0x168] sm:$0xff]
        %v849 = vld [vmem:[#allocation2 + $0x170] sm:$0xff]
        %v850 = vld [vmem:[#allocation2 + $0x180] sm:$0xff]
        %v851 = vld [vmem:[#allocation2 + $0x188] sm:$0xff]
        %v852 = vld [vmem:[#allocation2 + $0x198] sm:$0xff]
        %v853 = vld [vmem:[#allocation2 + $0x1a0] sm:$0xff]
        %v854 = vld [vmem:[#allocation2 + $0x1b0] sm:$0xff]
        %v855 = vld [vmem:[#allocation2 + $0x1b8] sm:$0xff]
        %v856 = vld [vmem:[#allocation2 + $0x1c8] sm:$0xff]
        %v857 = vld [vmem:[#allocation2 + $0x1d0] sm:$0xff]
        %v858 = vld [vmem:[#allocation2 + $0x1e0] sm:$0xff]
        %v859 = vld [vmem:[#allocation2 + $0x1e8] sm:$0xff]
        %v860 = vld [vmem:[#allocation2 + $0x1f8] sm:$0xff]
        %v861 = vld [vmem:[#allocation2 + $0x200] sm:$0xff]
        %v862 = vld [vmem:[#allocation2 + $0x210] sm:$0xff]
        %v863 = vld [vmem:[#allocation2 + $0x218] sm:$0xff]
        %v864 = vld [vmem:[#allocation2 + $0x228] sm:$0xff]
        %v865 = vld [vmem:[#allocation2 + $0x230] sm:$0xff]
        %v866 = vld [vmem:[#allocation2 + $0x240] sm:$0xff]
        %v867 = vld [vmem:[#allocation2 + $0x248] sm:$0xff]
        %v868 = vld [vmem:[#allocation2 + $0x258] sm:$0xff]
        %v869 = vld [vmem:[#allocation2 + $0x260] sm:$0xff]
        %v870 = vld [vmem:[#allocation2 + $0x270] sm:$0xff]
        %v871 = vld [vmem:[#allocation2 + $0x278] sm:$0xff]
        %v872 = vld [vmem:[#allocation2 + $0x288] sm:$0xff]
        %v873 = vld [vmem:[#allocation2 + $0x290] sm:$0xff]
        %v874 = vld [vmem:[#allocation2 + $0x2a0] sm:$0xff]
        %v875 = vld [vmem:[#allocation2 + $0x2a8] sm:$0xff]
        %v876 = vld [vmem:[#allocation2 + $0x2b8] sm:$0xff]
        %v877 = vld [vmem:[#allocation2 + $0x2c0] sm:$0xff]
        %v878 = vld [vmem:[#allocation2 + $0x2d0] sm:$0xff]
        %v879 = vld [vmem:[#allocation2 + $0x2d8] sm:$0xff]
        %v880 = vld [vmem:[#allocation2 + $0x2e8] sm:$0xff]
        %v881 = vld [vmem:[#allocation2 + $0x2f0] sm:$0xff]
        %v882 = vld [vmem:[%s2] sm:$0x3]
        %v884 = vperm.slane %v882, 0
        %v885 = vperm.slane %v882, 1
        %v888 = vadd.f32 %v818, %v884
        %v889 = vadd.f32 %v819, %v885
        %v890 = vadd.f32 %v820, %v884
        %v891 = vadd.f32 %v821, %v885
        %v892 = vadd.f32 %v822, %v884
        %v893 = vadd.f32 %v823, %v885
        %v894 = vadd.f32 %v824, %v884
        %v895 = vadd.f32 %v825, %v885
        %v896 = vadd.f32 %v826, %v884
        %v897 = vadd.f32 %v827, %v885
        %v898 = vadd.f32 %v828, %v884
        %v899 = vadd.f32 %v829, %v885
        %v900 = vadd.f32 %v830, %v884
        %v901 = vadd.f32 %v831, %v885
        %v902 = vadd.f32 %v832, %v884
        %v903 = vadd.f32 %v833, %v885
        %v904 = vadd.f32 %v834, %v884
        %v905 = vadd.f32 %v835, %v885
        %v906 = vadd.f32 %v836, %v884
        %v907 = vadd.f32 %v837, %v885
        %v908 = vadd.f32 %v838, %v884
        %v909 = vadd.f32 %v839, %v885
        %v910 = vadd.f32 %v840, %v884
        %v911 = vadd.f32 %v841, %v885
        %v912 = vadd.f32 %v842, %v884
        %v913 = vadd.f32 %v843, %v885
        %v914 = vadd.f32 %v844, %v884
        %v915 = vadd.f32 %v845, %v885
        %v916 = vadd.f32 %v846, %v884
        %v917 = vadd.f32 %v847, %v885
        %v918 = vadd.f32 %v848, %v884
        %v919 = vadd.f32 %v849, %v885
        %v920 = vadd.f32 %v850, %v884
        %v921 = vadd.f32 %v851, %v885
        %v922 = vadd.f32 %v852, %v884
        %v923 = vadd.f32 %v853, %v885
        %v924 = vadd.f32 %v854, %v884
        %v925 = vadd.f32 %v855, %v885
        %v926 = vadd.f32 %v856, %v884
        %v927 = vadd.f32 %v857, %v885
        %v928 = vadd.f32 %v858, %v884
        %v929 = vadd.f32 %v859, %v885
        %v930 = vadd.f32 %v860, %v884
        %v931 = vadd.f32 %v861, %v885
        %v932 = vadd.f32 %v862, %v884
        %v933 = vadd.f32 %v863, %v885
        %v934 = vadd.f32 %v864, %v884
        %v935 = vadd.f32 %v865, %v885
        %v936 = vadd.f32 %v866, %v884
        %v937 = vadd.f32 %v867, %v885
        %v938 = vadd.f32 %v868, %v884
        %v939 = vadd.f32 %v869, %v885
        %v940 = vadd.f32 %v870, %v884
        %v941 = vadd.f32 %v871, %v885
        %v942 = vadd.f32 %v872, %v884
        %v943 = vadd.f32 %v873, %v885
        %v944 = vadd.f32 %v874, %v884
        %v945 = vadd.f32 %v875, %v885
        %v946 = vadd.f32 %v876, %v884
        %v947 = vadd.f32 %v877, %v885
        %v948 = vadd.f32 %v878, %v884
        %v949 = vadd.f32 %v879, %v885
        %v950 = vadd.f32 %v880, %v884
        %v951 = vadd.f32 %v881, %v885
        %v952 = vmax.f32 %v888, 0.0
        %v953 = vmax.f32 %v889, 0.0
        %v954 = vmax.f32 %v890, 0.0
        %v955 = vmax.f32 %v891, 0.0
        %v956 = vmax.f32 %v892, 0.0
        %v957 = vmax.f32 %v893, 0.0
        %v958 = vmax.f32 %v894, 0.0
        %v959 = vmax.f32 %v895, 0.0
        %v960 = vmax.f32 %v896, 0.0
        %v961 = vmax.f32 %v897, 0.0
        %v962 = vmax.f32 %v898, 0.0
        %v963 = vmax.f32 %v899, 0.0
        %v964 = vmax.f32 %v900, 0.0
        %v965 = vmax.f32 %v901, 0.0
        %v966 = vmax.f32 %v902, 0.0
        %v967 = vmax.f32 %v903, 0.0
        %v968 = vmax.f32 %v904, 0.0
        %v969 = vmax.f32 %v905, 0.0
        %v970 = vmax.f32 %v906, 0.0
        %v971 = vmax.f32 %v907, 0.0
        %v972 = vmax.f32 %v908, 0.0
        %v973 = vmax.f32 %v909, 0.0
        %v974 = vmax.f32 %v910, 0.0
        %v975 = vmax.f32 %v911, 0.0
        %v976 = vmax.f32 %v912, 0.0
        %v977 = vmax.f32 %v913, 0.0
        %v978 = vmax.f32 %v914, 0.0
        %v979 = vmax.f32 %v915, 0.0
        %v980 = vmax.f32 %v916, 0.0
        %v981 = vmax.f32 %v917, 0.0
        %v982 = vmax.f32 %v918, 0.0
        %v983 = vmax.f32 %v919, 0.0
        %v984 = vmax.f32 %v920, 0.0
        %v985 = vmax.f32 %v921, 0.0
        %v986 = vmax.f32 %v922, 0.0
        %v987 = vmax.f32 %v923, 0.0
        %v988 = vmax.f32 %v924, 0.0
        %v989 = vmax.f32 %v925, 0.0
        %v990 = vmax.f32 %v926, 0.0
        %v991 = vmax.f32 %v927, 0.0
        %v992 = vmax.f32 %v928, 0.0
        %v993 = vmax.f32 %v929, 0.0
        %v994 = vmax.f32 %v930, 0.0
        %v995 = vmax.f32 %v931, 0.0
        %v996 = vmax.f32 %v932, 0.0
        %v997 = vmax.f32 %v933, 0.0
        %v998 = vmax.f32 %v934, 0.0
        %v999 = vmax.f32 %v935, 0.0
        %v1000 = vmax.f32 %v936, 0.0
        %v1001 = vmax.f32 %v937, 0.0
        %v1002 = vmax.f32 %v938, 0.0
        %v1003 = vmax.f32 %v939, 0.0
        %v1004 = vmax.f32 %v940, 0.0
        %v1005 = vmax.f32 %v941, 0.0
        %v1006 = vmax.f32 %v942, 0.0
        %v1007 = vmax.f32 %v943, 0.0
        %v1008 = vmax.f32 %v944, 0.0
        %v1009 = vmax.f32 %v945, 0.0
        %v1010 = vmax.f32 %v946, 0.0
        %v1011 = vmax.f32 %v947, 0.0
        %v1012 = vmax.f32 %v948, 0.0
        %v1013 = vmax.f32 %v949, 0.0
        %v1014 = vmax.f32 %v950, 0.0
        %v1015 = vmax.f32 %v951, 0.0
        %1016 = vst [vmem:[#allocation3] sm:$0xff] %v952
        %1017 = vst [vmem:[#allocation3 + $0x8] sm:$0xff] %v953
        %1018 = vst [vmem:[#allocation3 + $0x10] sm:$0xff] %v954
        %1019 = vst [vmem:[#allocation3 + $0x18] sm:$0xff] %v955
        %1020 = vst [vmem:[#allocation3 + $0x20] sm:$0xff] %v956
        %1021 = vst [vmem:[#allocation3 + $0x28] sm:$0xff] %v957
        %1022 = vst [vmem:[#allocation3 + $0x30] sm:$0xff] %v958
        %1023 = vst [vmem:[#allocation3 + $0x38] sm:$0xff] %v959
        %1024 = vst [vmem:[#allocation3 + $0x40] sm:$0xff] %v960
        %1025 = vst [vmem:[#allocation3 + $0x48] sm:$0xff] %v961
        %1026 = vst [vmem:[#allocation3 + $0x50] sm:$0xff] %v962
        %1027 = vst [vmem:[#allocation3 + $0x58] sm:$0xff] %v963
        %1028 = vst [vmem:[#allocation3 + $0x60] sm:$0xff] %v964
        %1029 = vst [vmem:[#allocation3 + $0x68] sm:$0xff] %v965
        %1030 = vst [vmem:[#allocation3 + $0x70] sm:$0xff] %v966
        %1031 = vst [vmem:[#allocation3 + $0x78] sm:$0xff] %v967
        %1032 = vst [vmem:[#allocation3 + $0x80] sm:$0xff] %v968
        %1033 = vst [vmem:[#allocation3 + $0x88] sm:$0xff] %v969
        %1034 = vst [vmem:[#allocation3 + $0x90] sm:$0xff] %v970
        %1035 = vst [vmem:[#allocation3 + $0x98] sm:$0xff] %v971
        %1036 = vst [vmem:[#allocation3 + $0xa0] sm:$0xff] %v972
        %1037 = vst [vmem:[#allocation3 + $0xa8] sm:$0xff] %v973
        %1038 = vst [vmem:[#allocation3 + $0xb0] sm:$0xff] %v974
        %1039 = vst [vmem:[#allocation3 + $0xb8] sm:$0xff] %v975
        %1040 = vst [vmem:[#allocation3 + $0xc0] sm:$0xff] %v976
        %1041 = vst [vmem:[#allocation3 + $0xc8] sm:$0xff] %v977
        %1042 = vst [vmem:[#allocation3 + $0xd0] sm:$0xff] %v978
        %1043 = vst [vmem:[#allocation3 + $0xd8] sm:$0xff] %v979
        %1044 = vst [vmem:[#allocation3 + $0xe0] sm:$0xff] %v980
        %1045 = vst [vmem:[#allocation3 + $0xe8] sm:$0xff] %v981
        %1046 = vst [vmem:[#allocation3 + $0xf0] sm:$0xff] %v982
        %1047 = vst [vmem:[#allocation3 + $0xf8] sm:$0xff] %v983
        %1048 = vst [vmem:[#allocation3 + $0x100] sm:$0xff] %v984
        %1049 = vst [vmem:[#allocation3 + $0x108] sm:$0xff] %v985
        %1050 = vst [vmem:[#allocation3 + $0x110] sm:$0xff] %v986
        %1051 = vst [vmem:[#allocation3 + $0x118] sm:$0xff] %v987
        %1052 = vst [vmem:[#allocation3 + $0x120] sm:$0xff] %v988
        %1053 = vst [vmem:[#allocation3 + $0x128] sm:$0xff] %v989
        %1054 = vst [vmem:[#allocation3 + $0x130] sm:$0xff] %v990
        %1055 = vst [vmem:[#allocation3 + $0x138] sm:$0xff] %v991
        %1056 = vst [vmem:[#allocation3 + $0x140] sm:$0xff] %v992
        %1057 = vst [vmem:[#allocation3 + $0x148] sm:$0xff] %v993
        %1058 = vst [vmem:[#allocation3 + $0x150] sm:$0xff] %v994
        %1059 = vst [vmem:[#allocation3 + $0x158] sm:$0xff] %v995
        %1060 = vst [vmem:[#allocation3 + $0x160] sm:$0xff] %v996
        %1061 = vst [vmem:[#allocation3 + $0x168] sm:$0xff] %v997
        %1062 = vst [vmem:[#allocation3 + $0x170] sm:$0xff] %v998
        %1063 = vst [vmem:[#allocation3 + $0x178] sm:$0xff] %v999
        %1064 = vst [vmem:[#allocation3 + $0x180] sm:$0xff] %v1000
        %1065 = vst [vmem:[#allocation3 + $0x188] sm:$0xff] %v1001
        %1066 = vst [vmem:[#allocation3 + $0x190] sm:$0xff] %v1002
        %1067 = vst [vmem:[#allocation3 + $0x198] sm:$0xff] %v1003
        %1068 = vst [vmem:[#allocation3 + $0x1a0] sm:$0xff] %v1004
        %1069 = vst [vmem:[#allocation3 + $0x1a8] sm:$0xff] %v1005
        %1070 = vst [vmem:[#allocation3 + $0x1b0] sm:$0xff] %v1006
        %1071 = vst [vmem:[#allocation3 + $0x1b8] sm:$0xff] %v1007
        %1072 = vst [vmem:[#allocation3 + $0x1c0] sm:$0xff] %v1008
        %1073 = vst [vmem:[#allocation3 + $0x1c8] sm:$0xff] %v1009
        %1074 = vst [vmem:[#allocation3 + $0x1d0] sm:$0xff] %v1010
        %1075 = vst [vmem:[#allocation3 + $0x1d8] sm:$0xff] %v1011
        %1076 = vst [vmem:[#allocation3 + $0x1e0] sm:$0xff] %v1012
        %1077 = vst [vmem:[#allocation3 + $0x1e8] sm:$0xff] %v1013
        %1078 = vst [vmem:[#allocation3 + $0x1f0] sm:$0xff] %v1014
        %1079 = vst [vmem:[#allocation3 + $0x1f8] sm:$0xff] %v1015
        %v1080 = vld [vmem:[#allocation3] sm:$0xff]
        %v1081 = vld [vmem:[#allocation3 + $0x8] sm:$0xff]
        %v1082 = vld [vmem:[#allocation3 + $0x10] sm:$0xff]
        %v1083 = vld [vmem:[#allocation3 + $0x18] sm:$0xff]
        %v1084 = vld [vmem:[#allocation3 + $0x20] sm:$0xff]
        %v1085 = vld [vmem:[#allocation3 + $0x28] sm:$0xff]
        %v1086 = vld [vmem:[#allocation3 + $0x30] sm:$0xff]
        %v1087 = vld [vmem:[#allocation3 + $0x38] sm:$0xff]
        %v1088 = vld [vmem:[#allocation3 + $0x40] sm:$0xff]
        %v1089 = vld [vmem:[#allocation3 + $0x48] sm:$0xff]
        %v1090 = vld [vmem:[#allocation3 + $0x50] sm:$0xff]
        %v1091 = vld [vmem:[#allocation3 + $0x58] sm:$0xff]
        %v1092 = vld [vmem:[#allocation3 + $0x60] sm:$0xff]
        %v1093 = vld [vmem:[#allocation3 + $0x68] sm:$0xff]
        %v1094 = vld [vmem:[#allocation3 + $0x70] sm:$0xff]
        %v1095 = vld [vmem:[#allocation3 + $0x78] sm:$0xff]
        %v1096 = vld [vmem:[#allocation3 + $0x80] sm:$0xff]
        %v1097 = vld [vmem:[#allocation3 + $0x88] sm:$0xff]
        %v1098 = vld [vmem:[#allocation3 + $0x90] sm:$0xff]
        %v1099 = vld [vmem:[#allocation3 + $0x98] sm:$0xff]
        %v1100 = vld [vmem:[#allocation3 + $0xa0] sm:$0xff]
        %v1101 = vld [vmem:[#allocation3 + $0xa8] sm:$0xff]
        %v1102 = vld [vmem:[#allocation3 + $0xb0] sm:$0xff]
        %v1103 = vld [vmem:[#allocation3 + $0xb8] sm:$0xff]
        %v1104 = vld [vmem:[#allocation3 + $0xc0] sm:$0xff]
        %v1105 = vld [vmem:[#allocation3 + $0xc8] sm:$0xff]
        %v1106 = vld [vmem:[#allocation3 + $0xd0] sm:$0xff]
        %v1107 = vld [vmem:[#allocation3 + $0xd8] sm:$0xff]
        %v1108 = vld [vmem:[#allocation3 + $0xe0] sm:$0xff]
        %v1109 = vld [vmem:[#allocation3 + $0xe8] sm:$0xff]
        %v1110 = vld [vmem:[#allocation3 + $0xf0] sm:$0xff]
        %v1111 = vld [vmem:[#allocation3 + $0xf8] sm:$0xff]
        %v1112 = vld [vmem:[#allocation3 + $0x100] sm:$0xff]
        %v1113 = vld [vmem:[#allocation3 + $0x108] sm:$0xff]
        %v1114 = vld [vmem:[#allocation3 + $0x110] sm:$0xff]
        %v1115 = vld [vmem:[#allocation3 + $0x118] sm:$0xff]
        %v1116 = vld [vmem:[#allocation3 + $0x120] sm:$0xff]
        %v1117 = vld [vmem:[#allocation3 + $0x128] sm:$0xff]
        %v1118 = vld [vmem:[#allocation3 + $0x130] sm:$0xff]
        %v1119 = vld [vmem:[#allocation3 + $0x138] sm:$0xff]
        %v1120 = vld [vmem:[#allocation3 + $0x140] sm:$0xff]
        %v1121 = vld [vmem:[#allocation3 + $0x148] sm:$0xff]
        %v1122 = vld [vmem:[#allocation3 + $0x150] sm:$0xff]
        %v1123 = vld [vmem:[#allocation3 + $0x158] sm:$0xff]
        %v1124 = vld [vmem:[#allocation3 + $0x160] sm:$0xff]
        %v1125 = vld [vmem:[#allocation3 + $0x168] sm:$0xff]
        %v1126 = vld [vmem:[#allocation3 + $0x170] sm:$0xff]
        %v1127 = vld [vmem:[#allocation3 + $0x178] sm:$0xff]
        %v1128 = vld [vmem:[#allocation3 + $0x180] sm:$0xff]
        %v1129 = vld [vmem:[#allocation3 + $0x188] sm:$0xff]
        %v1130 = vld [vmem:[#allocation3 + $0x190] sm:$0xff]
        %v1131 = vld [vmem:[#allocation3 + $0x198] sm:$0xff]
        %v1132 = vld [vmem:[#allocation3 + $0x1a0] sm:$0xff]
        %v1133 = vld [vmem:[#allocation3 + $0x1a8] sm:$0xff]
        %v1134 = vld [vmem:[#allocation3 + $0x1b0] sm:$0xff]
        %v1135 = vld [vmem:[#allocation3 + $0x1b8] sm:$0xff]
        %v1136 = vld [vmem:[#allocation3 + $0x1c0] sm:$0xff]
        %v1137 = vld [vmem:[#allocation3 + $0x1c8] sm:$0xff]
        %v1138 = vld [vmem:[#allocation3 + $0x1d0] sm:$0xff]
        %v1139 = vld [vmem:[#allocation3 + $0x1d8] sm:$0xff]
        %v1140 = vld [vmem:[#allocation3 + $0x1e0] sm:$0xff]
        %v1141 = vld [vmem:[#allocation3 + $0x1e8] sm:$0xff]
        %v1142 = vld [vmem:[#allocation3 + $0x1f0] sm:$0xff]
        %v1143 = vld [vmem:[#allocation3 + $0x1f8] sm:$0xff]
        %v1144 = vld [vmem:[%s4] sm:$0xff]
        %v1145 = vld [vmem:[%s4 + $0x8] sm:$0xff]
        %v1146 = vld [vmem:[%s4 + $0x10] sm:$0xff]
        %v1147 = vld [vmem:[%s4 + $0x18] sm:$0xff]
        %v1148 = vld [vmem:[%s4 + $0x20] sm:$0xff]
        %v1149 = vld [vmem:[%s4 + $0x28] sm:$0xff]
        %v1150 = vld [vmem:[%s4 + $0x30] sm:$0xff]
        %v1151 = vld [vmem:[%s4 + $0x38] sm:$0xff]
        %v1152 = vld [vmem:[%s4 + $0x40] sm:$0xff]
        %v1153 = vld [vmem:[%s4 + $0x48] sm:$0xff]
        %v1154 = vld [vmem:[%s4 + $0x50] sm:$0xff]
        %v1155 = vld [vmem:[%s4 + $0x58] sm:$0xff]
        %v1156 = vld [vmem:[%s4 + $0x60] sm:$0xff]
        %v1157 = vld [vmem:[%s4 + $0x68] sm:$0xff]
        %v1158 = vld [vmem:[%s4 + $0x70] sm:$0xff]
        %v1159 = vld [vmem:[%s4 + $0x78] sm:$0xff]
        %v1160 = vld [vmem:[%s4 + $0x80] sm:$0xff]
        %v1161 = vld [vmem:[%s4 + $0x88] sm:$0xff]
        %v1162 = vld [vmem:[%s4 + $0x90] sm:$0xff]
        %v1163 = vld [vmem:[%s4 + $0x98] sm:$0xff]
        %v1164 = vld [vmem:[%s4 + $0xa0] sm:$0xff]
        %v1165 = vld [vmem:[%s4 + $0xa8] sm:$0xff]
        %v1166 = vld [vmem:[%s4 + $0xb0] sm:$0xff]
        %v1167 = vld [vmem:[%s4 + $0xb8] sm:$0xff]
        %v1168 = vld [vmem:[%s4 + $0xc0] sm:$0xff]
        %v1169 = vld [vmem:[%s4 + $0xc8] sm:$0xff]
        %v1170 = vld [vmem:[%s4 + $0xd0] sm:$0xff]
        %v1171 = vld [vmem:[%s4 + $0xd8] sm:$0xff]
        %v1172 = vld [vmem:[%s4 + $0xe0] sm:$0xff]
        %v1173 = vld [vmem:[%s4 + $0xe8] sm:$0xff]
        %v1174 = vld [vmem:[%s4 + $0xf0] sm:$0xff]
        %v1175 = vld [vmem:[%s4 + $0xf8] sm:$0xff]
        %v1176 = vld [vmem:[%s4 + $0x100] sm:$0xff]
        %v1177 = vld [vmem:[%s4 + $0x108] sm:$0xff]
        %v1178 = vld [vmem:[%s4 + $0x110] sm:$0xff]
        %v1179 = vld [vmem:[%s4 + $0x118] sm:$0xff]
        %v1180 = vld [vmem:[%s4 + $0x120] sm:$0xff]
        %v1181 = vld [vmem:[%s4 + $0x128] sm:$0xff]
        %v1182 = vld [vmem:[%s4 + $0x130] sm:$0xff]
        %v1183 = vld [vmem:[%s4 + $0x138] sm:$0xff]
        %v1184 = vld [vmem:[%s4 + $0x140] sm:$0xff]
        %v1185 = vld [vmem:[%s4 + $0x148] sm:$0xff]
        %v1186 = vld [vmem:[%s4 + $0x150] sm:$0xff]
        %v1187 = vld [vmem:[%s4 + $0x158] sm:$0xff]
        %v1188 = vld [vmem:[%s4 + $0x160] sm:$0xff]
        %v1189 = vld [vmem:[%s4 + $0x168] sm:$0xff]
        %v1190 = vld [vmem:[%s4 + $0x170] sm:$0xff]
        %v1191 = vld [vmem:[%s4 + $0x178] sm:$0xff]
        %v1192 = vld [vmem:[%s4 + $0x180] sm:$0xff]
        %v1193 = vld [vmem:[%s4 + $0x188] sm:$0xff]
        %v1194 = vld [vmem:[%s4 + $0x190] sm:$0xff]
        %v1195 = vld [vmem:[%s4 + $0x198] sm:$0xff]
        %v1196 = vld [vmem:[%s4 + $0x1a0] sm:$0xff]
        %v1197 = vld [vmem:[%s4 + $0x1a8] sm:$0xff]
        %v1198 = vld [vmem:[%s4 + $0x1b0] sm:$0xff]
        %v1199 = vld [vmem:[%s4 + $0x1b8] sm:$0xff]
        %v1200 = vld [vmem:[%s4 + $0x1c0] sm:$0xff]
        %v1201 = vld [vmem:[%s4 + $0x1c8] sm:$0xff]
        %v1202 = vld [vmem:[%s4 + $0x1d0] sm:$0xff]
        %v1203 = vld [vmem:[%s4 + $0x1d8] sm:$0xff]
        %v1204 = vld [vmem:[%s4 + $0x1e0] sm:$0xff]
        %v1205 = vld [vmem:[%s4 + $0x1e8] sm:$0xff]
        %v1206 = vld [vmem:[%s4 + $0x1f0] sm:$0xff]
        %v1207 = vld [vmem:[%s4 + $0x1f8] sm:$0xff]
        %v1208 = vld [vmem:[%s4 + $0x200] sm:$0xff]
        %v1209 = vld [vmem:[%s4 + $0x208] sm:$0xff]
        %v1210 = vld [vmem:[%s4 + $0x210] sm:$0xff]
        %v1211 = vld [vmem:[%s4 + $0x218] sm:$0xff]
        %v1212 = vld [vmem:[%s4 + $0x220] sm:$0xff]
        %v1213 = vld [vmem:[%s4 + $0x228] sm:$0xff]
        %v1214 = vld [vmem:[%s4 + $0x230] sm:$0xff]
        %v1215 = vld [vmem:[%s4 + $0x238] sm:$0xff]
        %v1216 = vld [vmem:[%s4 + $0x240] sm:$0xff]
        %v1217 = vld [vmem:[%s4 + $0x248] sm:$0xff]
        %v1218 = vld [vmem:[%s4 + $0x250] sm:$0xff]
        %v1219 = vld [vmem:[%s4 + $0x258] sm:$0xff]
        %v1220 = vld [vmem:[%s4 + $0x260] sm:$0xff]
        %v1221 = vld [vmem:[%s4 + $0x268] sm:$0xff]
        %v1222 = vld [vmem:[%s4 + $0x270] sm:$0xff]
        %v1223 = vld [vmem:[%s4 + $0x278] sm:$0xff]
        %v1224 = vld [vmem:[%s4 + $0x280] sm:$0xff]
        %v1225 = vld [vmem:[%s4 + $0x288] sm:$0xff]
        %v1226 = vld [vmem:[%s4 + $0x290] sm:$0xff]
        %v1227 = vld [vmem:[%s4 + $0x298] sm:$0xff]
        %v1228 = vld [vmem:[%s4 + $0x2a0] sm:$0xff]
        %v1229 = vld [vmem:[%s4 + $0x2a8] sm:$0xff]
        %v1230 = vld [vmem:[%s4 + $0x2b0] sm:$0xff]
        %v1231 = vld [vmem:[%s4 + $0x2b8] sm:$0xff]
        %v1232 = vld [vmem:[%s4 + $0x2c0] sm:$0xff]
        %v1233 = vld [vmem:[%s4 + $0x2c8] sm:$0xff]
        %v1234 = vld [vmem:[%s4 + $0x2d0] sm:$0xff]
        %v1235 = vld [vmem:[%s4 + $0x2d8] sm:$0xff]
        %v1236 = vld [vmem:[%s4 + $0x2e0] sm:$0xff]
        %v1237 = vld [vmem:[%s4 + $0x2e8] sm:$0xff]
        %v1238 = vld [vmem:[%s4 + $0x2f0] sm:$0xff]
        %v1239 = vld [vmem:[%s4 + $0x2f8] sm:$0xff]
        %v1240 = vld [vmem:[%s4 + $0x300] sm:$0xff]
        %v1241 = vld [vmem:[%s4 + $0x308] sm:$0xff]
        %v1242 = vld [vmem:[%s4 + $0x310] sm:$0xff]
        %v1243 = vld [vmem:[%s4 + $0x318] sm:$0xff]
        %v1244 = vld [vmem:[%s4 + $0x320] sm:$0xff]
        %v1245 = vld [vmem:[%s4 + $0x328] sm:$0xff]
        %v1246 = vld [vmem:[%s4 + $0x330] sm:$0xff]
        %v1247 = vld [vmem:[%s4 + $0x338] sm:$0xff]
        %v1248 = vld [vmem:[%s4 + $0x340] sm:$0xff]
        %v1249 = vld [vmem:[%s4 + $0x348] sm:$0xff]
        %v1250 = vld [vmem:[%s4 + $0x350] sm:$0xff]
        %v1251 = vld [vmem:[%s4 + $0x358] sm:$0xff]
        %v1252 = vld [vmem:[%s4 + $0x360] sm:$0xff]
        %v1253 = vld [vmem:[%s4 + $0x368] sm:$0xff]
        %v1254 = vld [vmem:[%s4 + $0x370] sm:$0xff]
        %v1255 = vld [vmem:[%s4 + $0x378] sm:$0xff]
        %v1256 = vld [vmem:[%s4 + $0x380] sm:$0xff]
        %v1257 = vld [vmem:[%s4 + $0x388] sm:$0xff]
        %v1258 = vld [vmem:[%s4 + $0x390] sm:$0xff]
        %v1259 = vld [vmem:[%s4 + $0x398] sm:$0xff]
        %v1260 = vld [vmem:[%s4 + $0x3a0] sm:$0xff]
        %v1261 = vld [vmem:[%s4 + $0x3a8] sm:$0xff]
        %v1262 = vld [vmem:[%s4 + $0x3b0] sm:$0xff]
        %v1263 = vld [vmem:[%s4 + $0x3b8] sm:$0xff]
        %v1264 = vld [vmem:[%s4 + $0x3c0] sm:$0xff]
        %v1265 = vld [vmem:[%s4 + $0x3c8] sm:$0xff]
        %v1266 = vld [vmem:[%s4 + $0x3d0] sm:$0xff]
        %v1267 = vld [vmem:[%s4 + $0x3d8] sm:$0xff]
        %v1268 = vld [vmem:[%s4 + $0x3e0] sm:$0xff]
        %v1269 = vld [vmem:[%s4 + $0x3e8] sm:$0xff]
        %v1270 = vld [vmem:[%s4 + $0x3f0] sm:$0xff]
        %v1271 = vld [vmem:[%s4 + $0x3f8] sm:$0xff]
        %v1272 = vld [vmem:[%s4 + $0x400] sm:$0xff]
        %v1273 = vld [vmem:[%s4 + $0x408] sm:$0xff]
        %v1274 = vld [vmem:[%s4 + $0x410] sm:$0xff]
        %v1275 = vld [vmem:[%s4 + $0x418] sm:$0xff]
        %v1276 = vld [vmem:[%s4 + $0x420] sm:$0xff]
        %v1277 = vld [vmem:[%s4 + $0x428] sm:$0xff]
        %v1278 = vld [vmem:[%s4 + $0x430] sm:$0xff]
        %v1279 = vld [vmem:[%s4 + $0x438] sm:$0xff]
        %v1280 = vld [vmem:[%s4 + $0x440] sm:$0xff]
        %v1281 = vld [vmem:[%s4 + $0x448] sm:$0xff]
        %v1282 = vld [vmem:[%s4 + $0x450] sm:$0xff]
        %v1283 = vld [vmem:[%s4 + $0x458] sm:$0xff]
        %v1284 = vld [vmem:[%s4 + $0x460] sm:$0xff]
        %v1285 = vld [vmem:[%s4 + $0x468] sm:$0xff]
        %v1286 = vld [vmem:[%s4 + $0x470] sm:$0xff]
        %v1287 = vld [vmem:[%s4 + $0x478] sm:$0xff]
        %v1288 = vld [vmem:[%s4 + $0x480] sm:$0xff]
        %v1289 = vld [vmem:[%s4 + $0x488] sm:$0xff]
        %v1290 = vld [vmem:[%s4 + $0x490] sm:$0xff]
        %v1291 = vld [vmem:[%s4 + $0x498] sm:$0xff]
        %v1292 = vld [vmem:[%s4 + $0x4a0] sm:$0xff]
        %v1293 = vld [vmem:[%s4 + $0x4a8] sm:$0xff]
        %v1294 = vld [vmem:[%s4 + $0x4b0] sm:$0xff]
        %v1295 = vld [vmem:[%s4 + $0x4b8] sm:$0xff]
        %v1296 = vld [vmem:[%s4 + $0x4c0] sm:$0xff]
        %v1297 = vld [vmem:[%s4 + $0x4c8] sm:$0xff]
        %v1298 = vld [vmem:[%s4 + $0x4d0] sm:$0xff]
        %v1299 = vld [vmem:[%s4 + $0x4d8] sm:$0xff]
        %v1300 = vld [vmem:[%s4 + $0x4e0] sm:$0xff]
        %v1301 = vld [vmem:[%s4 + $0x4e8] sm:$0xff]
        %v1302 = vld [vmem:[%s4 + $0x4f0] sm:$0xff]
        %v1303 = vld [vmem:[%s4 + $0x4f8] sm:$0xff]
        %1304 = vmatpush.msra.mxu0 %v1219
        %1305 = vmatpush.msra.mxu0 %v1214
        %1306 = vmatpush.msra.mxu0 %v1209
        %1307 = vmatpush.msra.mxu0 %v1204
        %1308 = vmatpush.msra.mxu0 %v1199
        %1309 = vmatpush.msra.mxu0 %v1194
        %1310 = vmatpush.msra.mxu0 %v1189
        %1311 = vmatpush.msra.mxu0 %v1184
        %1312 = vmatpush.msra.mxu0 %v1179
        %1313 = vmatpush.msra.mxu0 %v1174
        %1314 = vmatpush.msra.mxu0 %v1169
        %1315 = vmatpush.msra.mxu0 %v1164
        %1316 = vmatpush.msra.mxu0 %v1159
        %1317 = vmatpush.msra.mxu0 %v1154
        %1318 = vmatpush.msra.mxu0 %v1149
        %1319 = vmatpush.msra.mxu0 %v1144
        %1320 = vmatmul.f32.gmra.mxu0 %v1080
        %v1321 = vpop.f32.mrf.mxu0
        %v1322 = vadd.f32 0.0, %v1321
        %1323 = vmatmul.f32.gmra.mxu0 %v1082
        %v1324 = vpop.f32.mrf.mxu0
        %v1325 = vadd.f32 0.0, %v1324
        %1326 = vmatmul.f32.gmra.mxu0 %v1084
        %v1327 = vpop.f32.mrf.mxu0
        %v1328 = vadd.f32 0.0, %v1327
        %1329 = vmatmul.f32.gmra.mxu0 %v1086
        %v1330 = vpop.f32.mrf.mxu0
        %v1331 = vadd.f32 0.0, %v1330
        %1332 = vmatmul.f32.gmra.mxu0 %v1088
        %v1333 = vpop.f32.mrf.mxu0
        %v1334 = vadd.f32 0.0, %v1333
        %1335 = vmatmul.f32.gmra.mxu0 %v1090
        %v1336 = vpop.f32.mrf.mxu0
        %v1337 = vadd.f32 0.0, %v1336
        %1338 = vmatmul.f32.gmra.mxu0 %v1092
        %v1339 = vpop.f32.mrf.mxu0
        %v1340 = vadd.f32 0.0, %v1339
        %1341 = vmatmul.f32.gmra.mxu0 %v1094
        %v1342 = vpop.f32.mrf.mxu0
        %v1343 = vadd.f32 0.0, %v1342
        %1344 = vmatmul.f32.gmra.mxu0 %v1096
        %v1345 = vpop.f32.mrf.mxu0
        %v1346 = vadd.f32 0.0, %v1345
        %1347 = vmatmul.f32.gmra.mxu0 %v1098
        %v1348 = vpop.f32.mrf.mxu0
        %v1349 = vadd.f32 0.0, %v1348
        %1350 = vmatmul.f32.gmra.mxu0 %v1100
        %v1351 = vpop.f32.mrf.mxu0
        %v1352 = vadd.f32 0.0, %v1351
        %1353 = vmatmul.f32.gmra.mxu0 %v1102
        %v1354 = vpop.f32.mrf.mxu0
        %v1355 = vadd.f32 0.0, %v1354
        %1356 = vmatmul.f32.gmra.mxu0 %v1104
        %v1357 = vpop.f32.mrf.mxu0
        %v1358 = vadd.f32 0.0, %v1357
        %1359 = vmatmul.f32.gmra.mxu0 %v1106
        %v1360 = vpop.f32.mrf.mxu0
        %v1361 = vadd.f32 0.0, %v1360
        %1362 = vmatmul.f32.gmra.mxu0 %v1108
        %v1363 = vpop.f32.mrf.mxu0
        %v1364 = vadd.f32 0.0, %v1363
        %1365 = vmatmul.f32.gmra.mxu0 %v1110
        %v1366 = vpop.f32.mrf.mxu0
        %v1367 = vadd.f32 0.0, %v1366
        %1368 = vmatmul.f32.gmra.mxu0 %v1112
        %v1369 = vpop.f32.mrf.mxu0
        %v1370 = vadd.f32 0.0, %v1369
        %1371 = vmatmul.f32.gmra.mxu0 %v1114
        %v1372 = vpop.f32.mrf.mxu0
        %v1373 = vadd.f32 0.0, %v1372
        %1374 = vmatmul.f32.gmra.mxu0 %v1116
        %v1375 = vpop.f32.mrf.mxu0
        %v1376 = vadd.f32 0.0, %v1375
        %1377 = vmatmul.f32.gmra.mxu0 %v1118
        %v1378 = vpop.f32.mrf.mxu0
        %v1379 = vadd.f32 0.0, %v1378
        %1380 = vmatmul.f32.gmra.mxu0 %v1120
        %v1381 = vpop.f32.mrf.mxu0
        %v1382 = vadd.f32 0.0, %v1381
        %1383 = vmatmul.f32.gmra.mxu0 %v1122
        %v1384 = vpop.f32.mrf.mxu0
        %v1385 = vadd.f32 0.0, %v1384
        %1386 = vmatmul.f32.gmra.mxu0 %v1124
        %v1387 = vpop.f32.mrf.mxu0
        %v1388 = vadd.f32 0.0, %v1387
        %1389 = vmatmul.f32.gmra.mxu0 %v1126
        %v1390 = vpop.f32.mrf.mxu0
        %v1391 = vadd.f32 0.0, %v1390
        %1392 = vmatmul.f32.gmra.mxu0 %v1128
        %v1393 = vpop.f32.mrf.mxu0
        %v1394 = vadd.f32 0.0, %v1393
        %1395 = vmatmul.f32.gmra.mxu0 %v1130
        %v1396 = vpop.f32.mrf.mxu0
        %v1397 = vadd.f32 0.0, %v1396
        %1398 = vmatmul.f32.gmra.mxu0 %v1132
        %v1399 = vpop.f32.mrf.mxu0
        %v1400 = vadd.f32 0.0, %v1399
        %1401 = vmatmul.f32.gmra.mxu0 %v1134
        %v1402 = vpop.f32.mrf.mxu0
        %v1403 = vadd.f32 0.0, %v1402
        %1404 = vmatmul.f32.gmra.mxu0 %v1136
        %v1405 = vpop.f32.mrf.mxu0
        %v1406 = vadd.f32 0.0, %v1405
        %1407 = vmatmul.f32.gmra.mxu0 %v1138
        %v1408 = vpop.f32.mrf.mxu0
        %v1409 = vadd.f32 0.0, %v1408
        %1410 = vmatmul.f32.gmra.mxu0 %v1140
        %v1411 = vpop.f32.mrf.mxu0
        %v1412 = vadd.f32 0.0, %v1411
        %1413 = vmatmul.f32.gmra.mxu0 %v1142
        %v1414 = vpop.f32.mrf.mxu0
        %v1415 = vadd.f32 0.0, %v1414
        %1416 = vdwg.mxu0
        %1417 = vmatpush.msra.mxu0 %v1299
        %1418 = vmatpush.msra.mxu0 %v1294
        %1419 = vmatpush.msra.mxu0 %v1289
        %1420 = vmatpush.msra.mxu0 %v1284
        %1421 = vmatpush.msra.mxu0 %v1279
        %1422 = vmatpush.msra.mxu0 %v1274
        %1423 = vmatpush.msra.mxu0 %v1269
        %1424 = vmatpush.msra.mxu0 %v1264
        %1425 = vmatpush.msra.mxu0 %v1259
        %1426 = vmatpush.msra.mxu0 %v1254
        %1427 = vmatpush.msra.mxu0 %v1249
        %1428 = vmatpush.msra.mxu0 %v1244
        %1429 = vmatpush.msra.mxu0 %v1239
        %1430 = vmatpush.msra.mxu0 %v1234
        %1431 = vmatpush.msra.mxu0 %v1229
        %1432 = vmatpush.msra.mxu0 %v1224
        %1433 = vmatmul.f32.gmra.mxu0 %v1081
        %v1434 = vpop.f32.mrf.mxu0
        %v1435 = vadd.f32 %v1322, %v1434
        %1436 = vmatmul.f32.gmra.mxu0 %v1083
        %v1437 = vpop.f32.mrf.mxu0
        %v1438 = vadd.f32 %v1325, %v1437
        %1439 = vmatmul.f32.gmra.mxu0 %v1085
        %v1440 = vpop.f32.mrf.mxu0
        %v1441 = vadd.f32 %v1328, %v1440
        %1442 = vmatmul.f32.gmra.mxu0 %v1087
        %v1443 = vpop.f32.mrf.mxu0
        %v1444 = vadd.f32 %v1331, %v1443
        %1445 = vmatmul.f32.gmra.mxu0 %v1089
        %v1446 = vpop.f32.mrf.mxu0
        %v1447 = vadd.f32 %v1334, %v1446
        %1448 = vmatmul.f32.gmra.mxu0 %v1091
        %v1449 = vpop.f32.mrf.mxu0
        %v1450 = vadd.f32 %v1337, %v1449
        %1451 = vmatmul.f32.gmra.mxu0 %v1093
        %v1452 = vpop.f32.mrf.mxu0
        %v1453 = vadd.f32 %v1340, %v1452
        %1454 = vmatmul.f32.gmra.mxu0 %v1095
        %v1455 = vpop.f32.mrf.mxu0
        %v1456 = vadd.f32 %v1343, %v1455
        %1457 = vmatmul.f32.gmra.mxu0 %v1097
        %v1458 = vpop.f32.mrf.mxu0
        %v1459 = vadd.f32 %v1346, %v1458
        %1460 = vmatmul.f32.gmra.mxu0 %v1099
        %v1461 = vpop.f32.mrf.mxu0
        %v1462 = vadd.f32 %v1349, %v1461
        %1463 = vmatmul.f32.gmra.mxu0 %v1101
        %v1464 = vpop.f32.mrf.mxu0
        %v1465 = vadd.f32 %v1352, %v1464
        %1466 = vmatmul.f32.gmra.mxu0 %v1103
        %v1467 = vpop.f32.mrf.mxu0
        %v1468 = vadd.f32 %v1355, %v1467
        %1469 = vmatmul.f32.gmra.mxu0 %v1105
        %v1470 = vpop.f32.mrf.mxu0
        %v1471 = vadd.f32 %v1358, %v1470
        %1472 = vmatmul.f32.gmra.mxu0 %v1107
        %v1473 = vpop.f32.mrf.mxu0
        %v1474 = vadd.f32 %v1361, %v1473
        %1475 = vmatmul.f32.gmra.mxu0 %v1109
        %v1476 = vpop.f32.mrf.mxu0
        %v1477 = vadd.f32 %v1364, %v1476
        %1478 = vmatmul.f32.gmra.mxu0 %v1111
        %v1479 = vpop.f32.mrf.mxu0
        %v1480 = vadd.f32 %v1367, %v1479
        %1481 = vmatmul.f32.gmra.mxu0 %v1113
        %v1482 = vpop.f32.mrf.mxu0
        %v1483 = vadd.f32 %v1370, %v1482
        %1484 = vmatmul.f32.gmra.mxu0 %v1115
        %v1485 = vpop.f32.mrf.mxu0
        %v1486 = vadd.f32 %v1373, %v1485
        %1487 = vmatmul.f32.gmra.mxu0 %v1117
        %v1488 = vpop.f32.mrf.mxu0
        %v1489 = vadd.f32 %v1376, %v1488
        %1490 = vmatmul.f32.gmra.mxu0 %v1119
        %v1491 = vpop.f32.mrf.mxu0
        %v1492 = vadd.f32 %v1379, %v1491
        %1493 = vmatmul.f32.gmra.mxu0 %v1121
        %v1494 = vpop.f32.mrf.mxu0
        %v1495 = vadd.f32 %v1382, %v1494
        %1496 = vmatmul.f32.gmra.mxu0 %v1123
        %v1497 = vpop.f32.mrf.mxu0
        %v1498 = vadd.f32 %v1385, %v1497
        %1499 = vmatmul.f32.gmra.mxu0 %v1125
        %v1500 = vpop.f32.mrf.mxu0
        %v1501 = vadd.f32 %v1388, %v1500
        %1502 = vmatmul.f32.gmra.mxu0 %v1127
        %v1503 = vpop.f32.mrf.mxu0
        %v1504 = vadd.f32 %v1391, %v1503
        %1505 = vmatmul.f32.gmra.mxu0 %v1129
        %v1506 = vpop.f32.mrf.mxu0
        %v1507 = vadd.f32 %v1394, %v1506
        %1508 = vmatmul.f32.gmra.mxu0 %v1131
        %v1509 = vpop.f32.mrf.mxu0
        %v1510 = vadd.f32 %v1397, %v1509
        %1511 = vmatmul.f32.gmra.mxu0 %v1133
        %v1512 = vpop.f32.mrf.mxu0
        %v1513 = vadd.f32 %v1400, %v1512
        %1514 = vmatmul.f32.gmra.mxu0 %v1135
        %v1515 = vpop.f32.mrf.mxu0
        %v1516 = vadd.f32 %v1403, %v1515
        %1517 = vmatmul.f32.gmra.mxu0 %v1137
        %v1518 = vpop.f32.mrf.mxu0
        %v1519 = vadd.f32 %v1406, %v1518
        %1520 = vmatmul.f32.gmra.mxu0 %v1139
        %v1521 = vpop.f32.mrf.mxu0
        %v1522 = vadd.f32 %v1409, %v1521
        %1523 = vmatmul.f32.gmra.mxu0 %v1141
        %v1524 = vpop.f32.mrf.mxu0
        %v1525 = vadd.f32 %v1412, %v1524
        %1526 = vmatmul.f32.gmra.mxu0 %v1143
        %v1527 = vpop.f32.mrf.mxu0
        %v1528 = vadd.f32 %v1415, %v1527
        %1529 = vdwg.mxu0
        %1530 = vmatpush.msra.mxu0 %v1220
        %1531 = vmatpush.msra.mxu0 %v1215
        %1532 = vmatpush.msra.mxu0 %v1210
        %1533 = vmatpush.msra.mxu0 %v1205
        %1534 = vmatpush.msra.mxu0 %v1200
        %1535 = vmatpush.msra.mxu0 %v1195
        %1536 = vmatpush.msra.mxu0 %v1190
        %1537 = vmatpush.msra.mxu0 %v1185
        %1538 = vmatpush.msra.mxu0 %v1180
        %1539 = vmatpush.msra.mxu0 %v1175
        %1540 = vmatpush.msra.mxu0 %v1170
        %1541 = vmatpush.msra.mxu0 %v1165
        %1542 = vmatpush.msra.mxu0 %v1160
        %1543 = vmatpush.msra.mxu0 %v1155
        %1544 = vmatpush.msra.mxu0 %v1150
        %1545 = vmatpush.msra.mxu0 %v1145
        %1546 = vmatmul.f32.gmra.mxu0 %v1080
        %v1547 = vpop.f32.mrf.mxu0
        %v1548 = vadd.f32 0.0, %v1547
        %1549 = vmatmul.f32.gmra.mxu0 %v1082
        %v1550 = vpop.f32.mrf.mxu0
        %v1551 = vadd.f32 0.0, %v1550
        %1552 = vmatmul.f32.gmra.mxu0 %v1084
        %v1553 = vpop.f32.mrf.mxu0
        %v1554 = vadd.f32 0.0, %v1553
        %1555 = vmatmul.f32.gmra.mxu0 %v1086
        %v1556 = vpop.f32.mrf.mxu0
        %v1557 = vadd.f32 0.0, %v1556
        %1558 = vmatmul.f32.gmra.mxu0 %v1088
        %v1559 = vpop.f32.mrf.mxu0
        %v1560 = vadd.f32 0.0, %v1559
        %1561 = vmatmul.f32.gmra.mxu0 %v1090
        %v1562 = vpop.f32.mrf.mxu0
        %v1563 = vadd.f32 0.0, %v1562
        %1564 = vmatmul.f32.gmra.mxu0 %v1092
        %v1565 = vpop.f32.mrf.mxu0
        %v1566 = vadd.f32 0.0, %v1565
        %1567 = vmatmul.f32.gmra.mxu0 %v1094
        %v1568 = vpop.f32.mrf.mxu0
        %v1569 = vadd.f32 0.0, %v1568
        %1570 = vmatmul.f32.gmra.mxu0 %v1096
        %v1571 = vpop.f32.mrf.mxu0
        %v1572 = vadd.f32 0.0, %v1571
        %1573 = vmatmul.f32.gmra.mxu0 %v1098
        %v1574 = vpop.f32.mrf.mxu0
        %v1575 = vadd.f32 0.0, %v1574
        %1576 = vmatmul.f32.gmra.mxu0 %v1100
        %v1577 = vpop.f32.mrf.mxu0
        %v1578 = vadd.f32 0.0, %v1577
        %1579 = vmatmul.f32.gmra.mxu0 %v1102
        %v1580 = vpop.f32.mrf.mxu0
        %v1581 = vadd.f32 0.0, %v1580
        %1582 = vmatmul.f32.gmra.mxu0 %v1104
        %v1583 = vpop.f32.mrf.mxu0
        %v1584 = vadd.f32 0.0, %v1583
        %1585 = vmatmul.f32.gmra.mxu0 %v1106
        %v1586 = vpop.f32.mrf.mxu0
        %v1587 = vadd.f32 0.0, %v1586
        %1588 = vmatmul.f32.gmra.mxu0 %v1108
        %v1589 = vpop.f32.mrf.mxu0
        %v1590 = vadd.f32 0.0, %v1589
        %1591 = vmatmul.f32.gmra.mxu0 %v1110
        %v1592 = vpop.f32.mrf.mxu0
        %v1593 = vadd.f32 0.0, %v1592
        %1594 = vmatmul.f32.gmra.mxu0 %v1112
        %v1595 = vpop.f32.mrf.mxu0
        %v1596 = vadd.f32 0.0, %v1595
        %1597 = vmatmul.f32.gmra.mxu0 %v1114
        %v1598 = vpop.f32.mrf.mxu0
        %v1599 = vadd.f32 0.0, %v1598
        %1600 = vmatmul.f32.gmra.mxu0 %v1116
        %v1601 = vpop.f32.mrf.mxu0
        %v1602 = vadd.f32 0.0, %v1601
        %1603 = vmatmul.f32.gmra.mxu0 %v1118
        %v1604 = vpop.f32.mrf.mxu0
        %v1605 = vadd.f32 0.0, %v1604
        %1606 = vmatmul.f32.gmra.mxu0 %v1120
        %v1607 = vpop.f32.mrf.mxu0
        %v1608 = vadd.f32 0.0, %v1607
        %1609 = vmatmul.f32.gmra.mxu0 %v1122
        %v1610 = vpop.f32.mrf.mxu0
        %v1611 = vadd.f32 0.0, %v1610
        %1612 = vmatmul.f32.gmra.mxu0 %v1124
        %v1613 = vpop.f32.mrf.mxu0
        %v1614 = vadd.f32 0.0, %v1613
        %1615 = vmatmul.f32.gmra.mxu0 %v1126
        %v1616 = vpop.f32.mrf.mxu0
        %v1617 = vadd.f32 0.0, %v1616
        %1618 = vmatmul.f32.gmra.mxu0 %v1128
        %v1619 = vpop.f32.mrf.mxu0
        %v1620 = vadd.f32 0.0, %v1619
        %1621 = vmatmul.f32.gmra.mxu0 %v1130
        %v1622 = vpop.f32.mrf.mxu0
        %v1623 = vadd.f32 0.0, %v1622
        %1624 = vmatmul.f32.gmra.mxu0 %v1132
        %v1625 = vpop.f32.mrf.mxu0
        %v1626 = vadd.f32 0.0, %v1625
        %1627 = vmatmul.f32.gmra.mxu0 %v1134
        %v1628 = vpop.f32.mrf.mxu0
        %v1629 = vadd.f32 0.0, %v1628
        %1630 = vmatmul.f32.gmra.mxu0 %v1136
        %v1631 = vpop.f32.mrf.mxu0
        %v1632 = vadd.f32 0.0, %v1631
        %1633 = vmatmul.f32.gmra.mxu0 %v1138
        %v1634 = vpop.f32.mrf.mxu0
        %v1635 = vadd.f32 0.0, %v1634
        %1636 = vmatmul.f32.gmra.mxu0 %v1140
        %v1637 = vpop.f32.mrf.mxu0
        %v1638 = vadd.f32 0.0, %v1637
        %1639 = vmatmul.f32.gmra.mxu0 %v1142
        %v1640 = vpop.f32.mrf.mxu0
        %v1641 = vadd.f32 0.0, %v1640
        %1642 = vdwg.mxu0
        %1643 = vmatpush.msra.mxu0 %v1300
        %1644 = vmatpush.msra.mxu0 %v1295
        %1645 = vmatpush.msra.mxu0 %v1290
        %1646 = vmatpush.msra.mxu0 %v1285
        %1647 = vmatpush.msra.mxu0 %v1280
        %1648 = vmatpush.msra.mxu0 %v1275
        %1649 = vmatpush.msra.mxu0 %v1270
        %1650 = vmatpush.msra.mxu0 %v1265
        %1651 = vmatpush.msra.mxu0 %v1260
        %1652 = vmatpush.msra.mxu0 %v1255
        %1653 = vmatpush.msra.mxu0 %v1250
        %1654 = vmatpush.msra.mxu0 %v1245
        %1655 = vmatpush.msra.mxu0 %v1240
        %1656 = vmatpush.msra.mxu0 %v1235
        %1657 = vmatpush.msra.mxu0 %v1230
        %1658 = vmatpush.msra.mxu0 %v1225
        %1659 = vmatmul.f32.gmra.mxu0 %v1081
        %v1660 = vpop.f32.mrf.mxu0
        %v1661 = vadd.f32 %v1548, %v1660
        %1662 = vmatmul.f32.gmra.mxu0 %v1083
        %v1663 = vpop.f32.mrf.mxu0
        %v1664 = vadd.f32 %v1551, %v1663
        %1665 = vmatmul.f32.gmra.mxu0 %v1085
        %v1666 = vpop.f32.mrf.mxu0
        %v1667 = vadd.f32 %v1554, %v1666
        %1668 = vmatmul.f32.gmra.mxu0 %v1087
        %v1669 = vpop.f32.mrf.mxu0
        %v1670 = vadd.f32 %v1557, %v1669
        %1671 = vmatmul.f32.gmra.mxu0 %v1089
        %v1672 = vpop.f32.mrf.mxu0
        %v1673 = vadd.f32 %v1560, %v1672
        %1674 = vmatmul.f32.gmra.mxu0 %v1091
        %v1675 = vpop.f32.mrf.mxu0
        %v1676 = vadd.f32 %v1563, %v1675
        %1677 = vmatmul.f32.gmra.mxu0 %v1093
        %v1678 = vpop.f32.mrf.mxu0
        %v1679 = vadd.f32 %v1566, %v1678
        %1680 = vmatmul.f32.gmra.mxu0 %v1095
        %v1681 = vpop.f32.mrf.mxu0
        %v1682 = vadd.f32 %v1569, %v1681
        %1683 = vmatmul.f32.gmra.mxu0 %v1097
        %v1684 = vpop.f32.mrf.mxu0
        %v1685 = vadd.f32 %v1572, %v1684
        %1686 = vmatmul.f32.gmra.mxu0 %v1099
        %v1687 = vpop.f32.mrf.mxu0
        %v1688 = vadd.f32 %v1575, %v1687
        %1689 = vmatmul.f32.gmra.mxu0 %v1101
        %v1690 = vpop.f32.mrf.mxu0
        %v1691 = vadd.f32 %v1578, %v1690
        %1692 = vmatmul.f32.gmra.mxu0 %v1103
        %v1693 = vpop.f32.mrf.mxu0
        %v1694 = vadd.f32 %v1581, %v1693
        %1695 = vmatmul.f32.gmra.mxu0 %v1105
        %v1696 = vpop.f32.mrf.mxu0
        %v1697 = vadd.f32 %v1584, %v1696
        %1698 = vmatmul.f32.gmra.mxu0 %v1107
        %v1699 = vpop.f32.mrf.mxu0
        %v1700 = vadd.f32 %v1587, %v1699
        %1701 = vmatmul.f32.gmra.mxu0 %v1109
        %v1702 = vpop.f32.mrf.mxu0
        %v1703 = vadd.f32 %v1590, %v1702
        %1704 = vmatmul.f32.gmra.mxu0 %v1111
        %v1705 = vpop.f32.mrf.mxu0
        %v1706 = vadd.f32 %v1593, %v1705
        %1707 = vmatmul.f32.gmra.mxu0 %v1113
        %v1708 = vpop.f32.mrf.mxu0
        %v1709 = vadd.f32 %v1596, %v1708
        %1710 = vmatmul.f32.gmra.mxu0 %v1115
        %v1711 = vpop.f32.mrf.mxu0
        %v1712 = vadd.f32 %v1599, %v1711
        %1713 = vmatmul.f32.gmra.mxu0 %v1117
        %v1714 = vpop.f32.mrf.mxu0
        %v1715 = vadd.f32 %v1602, %v1714
        %1716 = vmatmul.f32.gmra.mxu0 %v1119
        %v1717 = vpop.f32.mrf.mxu0
        %v1718 = vadd.f32 %v1605, %v1717
        %1719 = vmatmul.f32.gmra.mxu0 %v1121
        %v1720 = vpop.f32.mrf.mxu0
        %v1721 = vadd.f32 %v1608, %v1720
        %1722 = vmatmul.f32.gmra.mxu0 %v1123
        %v1723 = vpop.f32.mrf.mxu0
        %v1724 = vadd.f32 %v1611, %v1723
        %1725 = vmatmul.f32.gmra.mxu0 %v1125
        %v1726 = vpop.f32.mrf.mxu0
        %v1727 = vadd.f32 %v1614, %v1726
        %1728 = vmatmul.f32.gmra.mxu0 %v1127
        %v1729 = vpop.f32.mrf.mxu0
        %v1730 = vadd.f32 %v1617, %v1729
        %1731 = vmatmul.f32.gmra.mxu0 %v1129
        %v1732 = vpop.f32.mrf.mxu0
        %v1733 = vadd.f32 %v1620, %v1732
        %1734 = vmatmul.f32.gmra.mxu0 %v1131
        %v1735 = vpop.f32.mrf.mxu0
        %v1736 = vadd.f32 %v1623, %v1735
        %1737 = vmatmul.f32.gmra.mxu0 %v1133
        %v1738 = vpop.f32.mrf.mxu0
        %v1739 = vadd.f32 %v1626, %v1738
        %1740 = vmatmul.f32.gmra.mxu0 %v1135
        %v1741 = vpop.f32.mrf.mxu0
        %v1742 = vadd.f32 %v1629, %v1741
        %1743 = vmatmul.f32.gmra.mxu0 %v1137
        %v1744 = vpop.f32.mrf.mxu0
        %v1745 = vadd.f32 %v1632, %v1744
        %1746 = vmatmul.f32.gmra.mxu0 %v1139
        %v1747 = vpop.f32.mrf.mxu0
        %v1748 = vadd.f32 %v1635, %v1747
        %1749 = vmatmul.f32.gmra.mxu0 %v1141
        %v1750 = vpop.f32.mrf.mxu0
        %v1751 = vadd.f32 %v1638, %v1750
        %1752 = vmatmul.f32.gmra.mxu0 %v1143
        %v1753 = vpop.f32.mrf.mxu0
        %v1754 = vadd.f32 %v1641, %v1753
        %1755 = vdwg.mxu0
        %1756 = vmatpush.msra.mxu0 %v1221
        %1757 = vmatpush.msra.mxu0 %v1216
        %1758 = vmatpush.msra.mxu0 %v1211
        %1759 = vmatpush.msra.mxu0 %v1206
        %1760 = vmatpush.msra.mxu0 %v1201
        %1761 = vmatpush.msra.mxu0 %v1196
        %1762 = vmatpush.msra.mxu0 %v1191
        %1763 = vmatpush.msra.mxu0 %v1186
        %1764 = vmatpush.msra.mxu0 %v1181
        %1765 = vmatpush.msra.mxu0 %v1176
        %1766 = vmatpush.msra.mxu0 %v1171
        %1767 = vmatpush.msra.mxu0 %v1166
        %1768 = vmatpush.msra.mxu0 %v1161
        %1769 = vmatpush.msra.mxu0 %v1156
        %1770 = vmatpush.msra.mxu0 %v1151
        %1771 = vmatpush.msra.mxu0 %v1146
        %1772 = vmatmul.f32.gmra.mxu0 %v1080
        %v1773 = vpop.f32.mrf.mxu0
        %v1774 = vadd.f32 0.0, %v1773
        %1775 = vmatmul.f32.gmra.mxu0 %v1082
        %v1776 = vpop.f32.mrf.mxu0
        %v1777 = vadd.f32 0.0, %v1776
        %1778 = vmatmul.f32.gmra.mxu0 %v1084
        %v1779 = vpop.f32.mrf.mxu0
        %v1780 = vadd.f32 0.0, %v1779
        %1781 = vmatmul.f32.gmra.mxu0 %v1086
        %v1782 = vpop.f32.mrf.mxu0
        %v1783 = vadd.f32 0.0, %v1782
        %1784 = vmatmul.f32.gmra.mxu0 %v1088
        %v1785 = vpop.f32.mrf.mxu0
        %v1786 = vadd.f32 0.0, %v1785
        %1787 = vmatmul.f32.gmra.mxu0 %v1090
        %v1788 = vpop.f32.mrf.mxu0
        %v1789 = vadd.f32 0.0, %v1788
        %1790 = vmatmul.f32.gmra.mxu0 %v1092
        %v1791 = vpop.f32.mrf.mxu0
        %v1792 = vadd.f32 0.0, %v1791
        %1793 = vmatmul.f32.gmra.mxu0 %v1094
        %v1794 = vpop.f32.mrf.mxu0
        %v1795 = vadd.f32 0.0, %v1794
        %1796 = vmatmul.f32.gmra.mxu0 %v1096
        %v1797 = vpop.f32.mrf.mxu0
        %v1798 = vadd.f32 0.0, %v1797
        %1799 = vmatmul.f32.gmra.mxu0 %v1098
        %v1800 = vpop.f32.mrf.mxu0
        %v1801 = vadd.f32 0.0, %v1800
        %1802 = vmatmul.f32.gmra.mxu0 %v1100
        %v1803 = vpop.f32.mrf.mxu0
        %v1804 = vadd.f32 0.0, %v1803
        %1805 = vmatmul.f32.gmra.mxu0 %v1102
        %v1806 = vpop.f32.mrf.mxu0
        %v1807 = vadd.f32 0.0, %v1806
        %1808 = vmatmul.f32.gmra.mxu0 %v1104
        %v1809 = vpop.f32.mrf.mxu0
        %v1810 = vadd.f32 0.0, %v1809
        %1811 = vmatmul.f32.gmra.mxu0 %v1106
        %v1812 = vpop.f32.mrf.mxu0
        %v1813 = vadd.f32 0.0, %v1812
        %1814 = vmatmul.f32.gmra.mxu0 %v1108
        %v1815 = vpop.f32.mrf.mxu0
        %v1816 = vadd.f32 0.0, %v1815
        %1817 = vmatmul.f32.gmra.mxu0 %v1110
        %v1818 = vpop.f32.mrf.mxu0
        %v1819 = vadd.f32 0.0, %v1818
        %1820 = vmatmul.f32.gmra.mxu0 %v1112
        %v1821 = vpop.f32.mrf.mxu0
        %v1822 = vadd.f32 0.0, %v1821
        %1823 = vmatmul.f32.gmra.mxu0 %v1114
        %v1824 = vpop.f32.mrf.mxu0
        %v1825 = vadd.f32 0.0, %v1824
        %1826 = vmatmul.f32.gmra.mxu0 %v1116
        %v1827 = vpop.f32.mrf.mxu0
        %v1828 = vadd.f32 0.0, %v1827
        %1829 = vmatmul.f32.gmra.mxu0 %v1118
        %v1830 = vpop.f32.mrf.mxu0
        %v1831 = vadd.f32 0.0, %v1830
        %1832 = vmatmul.f32.gmra.mxu0 %v1120
        %v1833 = vpop.f32.mrf.mxu0
        %v1834 = vadd.f32 0.0, %v1833
        %1835 = vmatmul.f32.gmra.mxu0 %v1122
        %v1836 = vpop.f32.mrf.mxu0
        %v1837 = vadd.f32 0.0, %v1836
        %1838 = vmatmul.f32.gmra.mxu0 %v1124
        %v1839 = vpop.f32.mrf.mxu0
        %v1840 = vadd.f32 0.0, %v1839
        %1841 = vmatmul.f32.gmra.mxu0 %v1126
        %v1842 = vpop.f32.mrf.mxu0
        %v1843 = vadd.f32 0.0, %v1842
        %1844 = vmatmul.f32.gmra.mxu0 %v1128
        %v1845 = vpop.f32.mrf.mxu0
        %v1846 = vadd.f32 0.0, %v1845
        %1847 = vmatmul.f32.gmra.mxu0 %v1130
        %v1848 = vpop.f32.mrf.mxu0
        %v1849 = vadd.f32 0.0, %v1848
        %1850 = vmatmul.f32.gmra.mxu0 %v1132
        %v1851 = vpop.f32.mrf.mxu0
        %v1852 = vadd.f32 0.0, %v1851
        %1853 = vmatmul.f32.gmra.mxu0 %v1134
        %v1854 = vpop.f32.mrf.mxu0
        %v1855 = vadd.f32 0.0, %v1854
        %1856 = vmatmul.f32.gmra.mxu0 %v1136
        %v1857 = vpop.f32.mrf.mxu0
        %v1858 = vadd.f32 0.0, %v1857
        %1859 = vmatmul.f32.gmra.mxu0 %v1138
        %v1860 = vpop.f32.mrf.mxu0
        %v1861 = vadd.f32 0.0, %v1860
        %1862 = vmatmul.f32.gmra.mxu0 %v1140
        %v1863 = vpop.f32.mrf.mxu0
        %v1864 = vadd.f32 0.0, %v1863
        %1865 = vmatmul.f32.gmra.mxu0 %v1142
        %v1866 = vpop.f32.mrf.mxu0
        %v1867 = vadd.f32 0.0, %v1866
        %1868 = vdwg.mxu0
        %1869 = vmatpush.msra.mxu0 %v1301
        %1870 = vmatpush.msra.mxu0 %v1296
        %1871 = vmatpush.msra.mxu0 %v1291
        %1872 = vmatpush.msra.mxu0 %v1286
        %1873 = vmatpush.msra.mxu0 %v1281
        %1874 = vmatpush.msra.mxu0 %v1276
        %1875 = vmatpush.msra.mxu0 %v1271
        %1876 = vmatpush.msra.mxu0 %v1266
        %1877 = vmatpush.msra.mxu0 %v1261
        %1878 = vmatpush.msra.mxu0 %v1256
        %1879 = vmatpush.msra.mxu0 %v1251
        %1880 = vmatpush.msra.mxu0 %v1246
        %1881 = vmatpush.msra.mxu0 %v1241
        %1882 = vmatpush.msra.mxu0 %v1236
        %1883 = vmatpush.msra.mxu0 %v1231
        %1884 = vmatpush.msra.mxu0 %v1226
        %1885 = vmatmul.f32.gmra.mxu0 %v1081
        %v1886 = vpop.f32.mrf.mxu0
        %v1887 = vadd.f32 %v1774, %v1886
        %1888 = vmatmul.f32.gmra.mxu0 %v1083
        %v1889 = vpop.f32.mrf.mxu0
        %v1890 = vadd.f32 %v1777, %v1889
        %1891 = vmatmul.f32.gmra.mxu0 %v1085
        %v1892 = vpop.f32.mrf.mxu0
        %v1893 = vadd.f32 %v1780, %v1892
        %1894 = vmatmul.f32.gmra.mxu0 %v1087
        %v1895 = vpop.f32.mrf.mxu0
        %v1896 = vadd.f32 %v1783, %v1895
        %1897 = vmatmul.f32.gmra.mxu0 %v1089
        %v1898 = vpop.f32.mrf.mxu0
        %v1899 = vadd.f32 %v1786, %v1898
        %1900 = vmatmul.f32.gmra.mxu0 %v1091
        %v1901 = vpop.f32.mrf.mxu0
        %v1902 = vadd.f32 %v1789, %v1901
        %1903 = vmatmul.f32.gmra.mxu0 %v1093
        %v1904 = vpop.f32.mrf.mxu0
        %v1905 = vadd.f32 %v1792, %v1904
        %1906 = vmatmul.f32.gmra.mxu0 %v1095
        %v1907 = vpop.f32.mrf.mxu0
        %v1908 = vadd.f32 %v1795, %v1907
        %1909 = vmatmul.f32.gmra.mxu0 %v1097
        %v1910 = vpop.f32.mrf.mxu0
        %v1911 = vadd.f32 %v1798, %v1910
        %1912 = vmatmul.f32.gmra.mxu0 %v1099
        %v1913 = vpop.f32.mrf.mxu0
        %v1914 = vadd.f32 %v1801, %v1913
        %1915 = vmatmul.f32.gmra.mxu0 %v1101
        %v1916 = vpop.f32.mrf.mxu0
        %v1917 = vadd.f32 %v1804, %v1916
        %1918 = vmatmul.f32.gmra.mxu0 %v1103
        %v1919 = vpop.f32.mrf.mxu0
        %v1920 = vadd.f32 %v1807, %v1919
        %1921 = vmatmul.f32.gmra.mxu0 %v1105
        %v1922 = vpop.f32.mrf.mxu0
        %v1923 = vadd.f32 %v1810, %v1922
        %1924 = vmatmul.f32.gmra.mxu0 %v1107
        %v1925 = vpop.f32.mrf.mxu0
        %v1926 = vadd.f32 %v1813, %v1925
        %1927 = vmatmul.f32.gmra.mxu0 %v1109
        %v1928 = vpop.f32.mrf.mxu0
        %v1929 = vadd.f32 %v1816, %v1928
        %1930 = vmatmul.f32.gmra.mxu0 %v1111
        %v1931 = vpop.f32.mrf.mxu0
        %v1932 = vadd.f32 %v1819, %v1931
        %1933 = vmatmul.f32.gmra.mxu0 %v1113
        %v1934 = vpop.f32.mrf.mxu0
        %v1935 = vadd.f32 %v1822, %v1934
        %1936 = vmatmul.f32.gmra.mxu0 %v1115
        %v1937 = vpop.f32.mrf.mxu0
        %v1938 = vadd.f32 %v1825, %v1937
        %1939 = vmatmul.f32.gmra.mxu0 %v1117
        %v1940 = vpop.f32.mrf.mxu0
        %v1941 = vadd.f32 %v1828, %v1940
        %1942 = vmatmul.f32.gmra.mxu0 %v1119
        %v1943 = vpop.f32.mrf.mxu0
        %v1944 = vadd.f32 %v1831, %v1943
        %1945 = vmatmul.f32.gmra.mxu0 %v1121
        %v1946 = vpop.f32.mrf.mxu0
        %v1947 = vadd.f32 %v1834, %v1946
        %1948 = vmatmul.f32.gmra.mxu0 %v1123
        %v1949 = vpop.f32.mrf.mxu0
        %v1950 = vadd.f32 %v1837, %v1949
        %1951 = vmatmul.f32.gmra.mxu0 %v1125
        %v1952 = vpop.f32.mrf.mxu0
        %v1953 = vadd.f32 %v1840, %v1952
        %1954 = vmatmul.f32.gmra.mxu0 %v1127
        %v1955 = vpop.f32.mrf.mxu0
        %v1956 = vadd.f32 %v1843, %v1955
        %1957 = vmatmul.f32.gmra.mxu0 %v1129
        %v1958 = vpop.f32.mrf.mxu0
        %v1959 = vadd.f32 %v1846, %v1958
        %1960 = vmatmul.f32.gmra.mxu0 %v1131
        %v1961 = vpop.f32.mrf.mxu0
        %v1962 = vadd.f32 %v1849, %v1961
        %1963 = vmatmul.f32.gmra.mxu0 %v1133
        %v1964 = vpop.f32.mrf.mxu0
        %v1965 = vadd.f32 %v1852, %v1964
        %1966 = vmatmul.f32.gmra.mxu0 %v1135
        %v1967 = vpop.f32.mrf.mxu0
        %v1968 = vadd.f32 %v1855, %v1967
        %1969 = vmatmul.f32.gmra.mxu0 %v1137
        %v1970 = vpop.f32.mrf.mxu0
        %v1971 = vadd.f32 %v1858, %v1970
        %1972 = vmatmul.f32.gmra.mxu0 %v1139
        %v1973 = vpop.f32.mrf.mxu0
        %v1974 = vadd.f32 %v1861, %v1973
        %1975 = vmatmul.f32.gmra.mxu0 %v1141
        %v1976 = vpop.f32.mrf.mxu0
        %v1977 = vadd.f32 %v1864, %v1976
        %1978 = vmatmul.f32.gmra.mxu0 %v1143
        %v1979 = vpop.f32.mrf.mxu0
        %v1980 = vadd.f32 %v1867, %v1979
        %1981 = vdwg.mxu0
        %1982 = vmatpush.msra.mxu0 %v1222
        %1983 = vmatpush.msra.mxu0 %v1217
        %1984 = vmatpush.msra.mxu0 %v1212
        %1985 = vmatpush.msra.mxu0 %v1207
        %1986 = vmatpush.msra.mxu0 %v1202
        %1987 = vmatpush.msra.mxu0 %v1197
        %1988 = vmatpush.msra.mxu0 %v1192
        %1989 = vmatpush.msra.mxu0 %v1187
        %1990 = vmatpush.msra.mxu0 %v1182
        %1991 = vmatpush.msra.mxu0 %v1177
        %1992 = vmatpush.msra.mxu0 %v1172
        %1993 = vmatpush.msra.mxu0 %v1167
        %1994 = vmatpush.msra.mxu0 %v1162
        %1995 = vmatpush.msra.mxu0 %v1157
        %1996 = vmatpush.msra.mxu0 %v1152
        %1997 = vmatpush.msra.mxu0 %v1147
        %1998 = vmatmul.f32.gmra.mxu0 %v1080
        %v1999 = vpop.f32.mrf.mxu0
        %v2000 = vadd.f32 0.0, %v1999
        %2001 = vmatmul.f32.gmra.mxu0 %v1082
        %v2002 = vpop.f32.mrf.mxu0
        %v2003 = vadd.f32 0.0, %v2002
        %2004 = vmatmul.f32.gmra.mxu0 %v1084
        %v2005 = vpop.f32.mrf.mxu0
        %v2006 = vadd.f32 0.0, %v2005
        %2007 = vmatmul.f32.gmra.mxu0 %v1086
        %v2008 = vpop.f32.mrf.mxu0
        %v2009 = vadd.f32 0.0, %v2008
        %2010 = vmatmul.f32.gmra.mxu0 %v1088
        %v2011 = vpop.f32.mrf.mxu0
        %v2012 = vadd.f32 0.0, %v2011
        %2013 = vmatmul.f32.gmra.mxu0 %v1090
        %v2014 = vpop.f32.mrf.mxu0
        %v2015 = vadd.f32 0.0, %v2014
        %2016 = vmatmul.f32.gmra.mxu0 %v1092
        %v2017 = vpop.f32.mrf.mxu0
        %v2018 = vadd.f32 0.0, %v2017
        %2019 = vmatmul.f32.gmra.mxu0 %v1094
        %v2020 = vpop.f32.mrf.mxu0
        %v2021 = vadd.f32 0.0, %v2020
        %2022 = vmatmul.f32.gmra.mxu0 %v1096
        %v2023 = vpop.f32.mrf.mxu0
        %v2024 = vadd.f32 0.0, %v2023
        %2025 = vmatmul.f32.gmra.mxu0 %v1098
        %v2026 = vpop.f32.mrf.mxu0
        %v2027 = vadd.f32 0.0, %v2026
        %2028 = vmatmul.f32.gmra.mxu0 %v1100
        %v2029 = vpop.f32.mrf.mxu0
        %v2030 = vadd.f32 0.0, %v2029
        %2031 = vmatmul.f32.gmra.mxu0 %v1102
        %v2032 = vpop.f32.mrf.mxu0
        %v2033 = vadd.f32 0.0, %v2032
        %2034 = vmatmul.f32.gmra.mxu0 %v1104
        %v2035 = vpop.f32.mrf.mxu0
        %v2036 = vadd.f32 0.0, %v2035
        %2037 = vmatmul.f32.gmra.mxu0 %v1106
        %v2038 = vpop.f32.mrf.mxu0
        %v2039 = vadd.f32 0.0, %v2038
        %2040 = vmatmul.f32.gmra.mxu0 %v1108
        %v2041 = vpop.f32.mrf.mxu0
        %v2042 = vadd.f32 0.0, %v2041
        %2043 = vmatmul.f32.gmra.mxu0 %v1110
        %v2044 = vpop.f32.mrf.mxu0
        %v2045 = vadd.f32 0.0, %v2044
        %2046 = vmatmul.f32.gmra.mxu0 %v1112
        %v2047 = vpop.f32.mrf.mxu0
        %v2048 = vadd.f32 0.0, %v2047
        %2049 = vmatmul.f32.gmra.mxu0 %v1114
        %v2050 = vpop.f32.mrf.mxu0
        %v2051 = vadd.f32 0.0, %v2050
        %2052 = vmatmul.f32.gmra.mxu0 %v1116
        %v2053 = vpop.f32.mrf.mxu0
        %v2054 = vadd.f32 0.0, %v2053
        %2055 = vmatmul.f32.gmra.mxu0 %v1118
        %v2056 = vpop.f32.mrf.mxu0
        %v2057 = vadd.f32 0.0, %v2056
        %2058 = vmatmul.f32.gmra.mxu0 %v1120
        %v2059 = vpop.f32.mrf.mxu0
        %v2060 = vadd.f32 0.0, %v2059
        %2061 = vmatmul.f32.gmra.mxu0 %v1122
        %v2062 = vpop.f32.mrf.mxu0
        %v2063 = vadd.f32 0.0, %v2062
        %2064 = vmatmul.f32.gmra.mxu0 %v1124
        %v2065 = vpop.f32.mrf.mxu0
        %v2066 = vadd.f32 0.0, %v2065
        %2067 = vmatmul.f32.gmra.mxu0 %v1126
        %v2068 = vpop.f32.mrf.mxu0
        %v2069 = vadd.f32 0.0, %v2068
        %2070 = vmatmul.f32.gmra.mxu0 %v1128
        %v2071 = vpop.f32.mrf.mxu0
        %v2072 = vadd.f32 0.0, %v2071
        %2073 = vmatmul.f32.gmra.mxu0 %v1130
        %v2074 = vpop.f32.mrf.mxu0
        %v2075 = vadd.f32 0.0, %v2074
        %2076 = vmatmul.f32.gmra.mxu0 %v1132
        %v2077 = vpop.f32.mrf.mxu0
        %v2078 = vadd.f32 0.0, %v2077
        %2079 = vmatmul.f32.gmra.mxu0 %v1134
        %v2080 = vpop.f32.mrf.mxu0
        %v2081 = vadd.f32 0.0, %v2080
        %2082 = vmatmul.f32.gmra.mxu0 %v1136
        %v2083 = vpop.f32.mrf.mxu0
        %v2084 = vadd.f32 0.0, %v2083
        %2085 = vmatmul.f32.gmra.mxu0 %v1138
        %v2086 = vpop.f32.mrf.mxu0
        %v2087 = vadd.f32 0.0, %v2086
        %2088 = vmatmul.f32.gmra.mxu0 %v1140
        %v2089 = vpop.f32.mrf.mxu0
        %v2090 = vadd.f32 0.0, %v2089
        %2091 = vmatmul.f32.gmra.mxu0 %v1142
        %v2092 = vpop.f32.mrf.mxu0
        %v2093 = vadd.f32 0.0, %v2092
        %2094 = vdwg.mxu0
        %2095 = vmatpush.msra.mxu0 %v1302
        %2096 = vmatpush.msra.mxu0 %v1297
        %2097 = vmatpush.msra.mxu0 %v1292
        %2098 = vmatpush.msra.mxu0 %v1287
        %2099 = vmatpush.msra.mxu0 %v1282
        %2100 = vmatpush.msra.mxu0 %v1277
        %2101 = vmatpush.msra.mxu0 %v1272
        %2102 = vmatpush.msra.mxu0 %v1267
        %2103 = vmatpush.msra.mxu0 %v1262
        %2104 = vmatpush.msra.mxu0 %v1257
        %2105 = vmatpush.msra.mxu0 %v1252
        %2106 = vmatpush.msra.mxu0 %v1247
        %2107 = vmatpush.msra.mxu0 %v1242
        %2108 = vmatpush.msra.mxu0 %v1237
        %2109 = vmatpush.msra.mxu0 %v1232
        %2110 = vmatpush.msra.mxu0 %v1227
        %2111 = vmatmul.f32.gmra.mxu0 %v1081
        %v2112 = vpop.f32.mrf.mxu0
        %v2113 = vadd.f32 %v2000, %v2112
        %2114 = vmatmul.f32.gmra.mxu0 %v1083
        %v2115 = vpop.f32.mrf.mxu0
        %v2116 = vadd.f32 %v2003, %v2115
        %2117 = vmatmul.f32.gmra.mxu0 %v1085
        %v2118 = vpop.f32.mrf.mxu0
        %v2119 = vadd.f32 %v2006, %v2118
        %2120 = vmatmul.f32.gmra.mxu0 %v1087
        %v2121 = vpop.f32.mrf.mxu0
        %v2122 = vadd.f32 %v2009, %v2121
        %2123 = vmatmul.f32.gmra.mxu0 %v1089
        %v2124 = vpop.f32.mrf.mxu0
        %v2125 = vadd.f32 %v2012, %v2124
        %2126 = vmatmul.f32.gmra.mxu0 %v1091
        %v2127 = vpop.f32.mrf.mxu0
        %v2128 = vadd.f32 %v2015, %v2127
        %2129 = vmatmul.f32.gmra.mxu0 %v1093
        %v2130 = vpop.f32.mrf.mxu0
        %v2131 = vadd.f32 %v2018, %v2130
        %2132 = vmatmul.f32.gmra.mxu0 %v1095
        %v2133 = vpop.f32.mrf.mxu0
        %v2134 = vadd.f32 %v2021, %v2133
        %2135 = vmatmul.f32.gmra.mxu0 %v1097
        %v2136 = vpop.f32.mrf.mxu0
        %v2137 = vadd.f32 %v2024, %v2136
        %2138 = vmatmul.f32.gmra.mxu0 %v1099
        %v2139 = vpop.f32.mrf.mxu0
        %v2140 = vadd.f32 %v2027, %v2139
        %2141 = vmatmul.f32.gmra.mxu0 %v1101
        %v2142 = vpop.f32.mrf.mxu0
        %v2143 = vadd.f32 %v2030, %v2142
        %2144 = vmatmul.f32.gmra.mxu0 %v1103
        %v2145 = vpop.f32.mrf.mxu0
        %v2146 = vadd.f32 %v2033, %v2145
        %2147 = vmatmul.f32.gmra.mxu0 %v1105
        %v2148 = vpop.f32.mrf.mxu0
        %v2149 = vadd.f32 %v2036, %v2148
        %2150 = vmatmul.f32.gmra.mxu0 %v1107
        %v2151 = vpop.f32.mrf.mxu0
        %v2152 = vadd.f32 %v2039, %v2151
        %2153 = vmatmul.f32.gmra.mxu0 %v1109
        %v2154 = vpop.f32.mrf.mxu0
        %v2155 = vadd.f32 %v2042, %v2154
        %2156 = vmatmul.f32.gmra.mxu0 %v1111
        %v2157 = vpop.f32.mrf.mxu0
        %v2158 = vadd.f32 %v2045, %v2157
        %2159 = vmatmul.f32.gmra.mxu0 %v1113
        %v2160 = vpop.f32.mrf.mxu0
        %v2161 = vadd.f32 %v2048, %v2160
        %2162 = vmatmul.f32.gmra.mxu0 %v1115
        %v2163 = vpop.f32.mrf.mxu0
        %v2164 = vadd.f32 %v2051, %v2163
        %2165 = vmatmul.f32.gmra.mxu0 %v1117
        %v2166 = vpop.f32.mrf.mxu0
        %v2167 = vadd.f32 %v2054, %v2166
        %2168 = vmatmul.f32.gmra.mxu0 %v1119
        %v2169 = vpop.f32.mrf.mxu0
        %v2170 = vadd.f32 %v2057, %v2169
        %2171 = vmatmul.f32.gmra.mxu0 %v1121
        %v2172 = vpop.f32.mrf.mxu0
        %v2173 = vadd.f32 %v2060, %v2172
        %2174 = vmatmul.f32.gmra.mxu0 %v1123
        %v2175 = vpop.f32.mrf.mxu0
        %v2176 = vadd.f32 %v2063, %v2175
        %2177 = vmatmul.f32.gmra.mxu0 %v1125
        %v2178 = vpop.f32.mrf.mxu0
        %v2179 = vadd.f32 %v2066, %v2178
        %2180 = vmatmul.f32.gmra.mxu0 %v1127
        %v2181 = vpop.f32.mrf.mxu0
        %v2182 = vadd.f32 %v2069, %v2181
        %2183 = vmatmul.f32.gmra.mxu0 %v1129
        %v2184 = vpop.f32.mrf.mxu0
        %v2185 = vadd.f32 %v2072, %v2184
        %2186 = vmatmul.f32.gmra.mxu0 %v1131
        %v2187 = vpop.f32.mrf.mxu0
        %v2188 = vadd.f32 %v2075, %v2187
        %2189 = vmatmul.f32.gmra.mxu0 %v1133
        %v2190 = vpop.f32.mrf.mxu0
        %v2191 = vadd.f32 %v2078, %v2190
        %2192 = vmatmul.f32.gmra.mxu0 %v1135
        %v2193 = vpop.f32.mrf.mxu0
        %v2194 = vadd.f32 %v2081, %v2193
        %2195 = vmatmul.f32.gmra.mxu0 %v1137
        %v2196 = vpop.f32.mrf.mxu0
        %v2197 = vadd.f32 %v2084, %v2196
        %2198 = vmatmul.f32.gmra.mxu0 %v1139
        %v2199 = vpop.f32.mrf.mxu0
        %v2200 = vadd.f32 %v2087, %v2199
        %2201 = vmatmul.f32.gmra.mxu0 %v1141
        %v2202 = vpop.f32.mrf.mxu0
        %v2203 = vadd.f32 %v2090, %v2202
        %2204 = vmatmul.f32.gmra.mxu0 %v1143
        %v2205 = vpop.f32.mrf.mxu0
        %v2206 = vadd.f32 %v2093, %v2205
        %2207 = vdwg.mxu0
        %2208 = vmatpush.msra.mxu0 %v1223
        %2209 = vmatpush.msra.mxu0 %v1218
        %2210 = vmatpush.msra.mxu0 %v1213
        %2211 = vmatpush.msra.mxu0 %v1208
        %2212 = vmatpush.msra.mxu0 %v1203
        %2213 = vmatpush.msra.mxu0 %v1198
        %2214 = vmatpush.msra.mxu0 %v1193
        %2215 = vmatpush.msra.mxu0 %v1188
        %2216 = vmatpush.msra.mxu0 %v1183
        %2217 = vmatpush.msra.mxu0 %v1178
        %2218 = vmatpush.msra.mxu0 %v1173
        %2219 = vmatpush.msra.mxu0 %v1168
        %2220 = vmatpush.msra.mxu0 %v1163
        %2221 = vmatpush.msra.mxu0 %v1158
        %2222 = vmatpush.msra.mxu0 %v1153
        %2223 = vmatpush.msra.mxu0 %v1148
        %2224 = vmatmul.f32.gmra.mxu0 %v1080
        %v2225 = vpop.f32.mrf.mxu0
        %v2226 = vadd.f32 0.0, %v2225
        %2227 = vmatmul.f32.gmra.mxu0 %v1082
        %v2228 = vpop.f32.mrf.mxu0
        %v2229 = vadd.f32 0.0, %v2228
        %2230 = vmatmul.f32.gmra.mxu0 %v1084
        %v2231 = vpop.f32.mrf.mxu0
        %v2232 = vadd.f32 0.0, %v2231
        %2233 = vmatmul.f32.gmra.mxu0 %v1086
        %v2234 = vpop.f32.mrf.mxu0
        %v2235 = vadd.f32 0.0, %v2234
        %2236 = vmatmul.f32.gmra.mxu0 %v1088
        %v2237 = vpop.f32.mrf.mxu0
        %v2238 = vadd.f32 0.0, %v2237
        %2239 = vmatmul.f32.gmra.mxu0 %v1090
        %v2240 = vpop.f32.mrf.mxu0
        %v2241 = vadd.f32 0.0, %v2240
        %2242 = vmatmul.f32.gmra.mxu0 %v1092
        %v2243 = vpop.f32.mrf.mxu0
        %v2244 = vadd.f32 0.0, %v2243
        %2245 = vmatmul.f32.gmra.mxu0 %v1094
        %v2246 = vpop.f32.mrf.mxu0
        %v2247 = vadd.f32 0.0, %v2246
        %2248 = vmatmul.f32.gmra.mxu0 %v1096
        %v2249 = vpop.f32.mrf.mxu0
        %v2250 = vadd.f32 0.0, %v2249
        %2251 = vmatmul.f32.gmra.mxu0 %v1098
        %v2252 = vpop.f32.mrf.mxu0
        %v2253 = vadd.f32 0.0, %v2252
        %2254 = vmatmul.f32.gmra.mxu0 %v1100
        %v2255 = vpop.f32.mrf.mxu0
        %v2256 = vadd.f32 0.0, %v2255
        %2257 = vmatmul.f32.gmra.mxu0 %v1102
        %v2258 = vpop.f32.mrf.mxu0
        %v2259 = vadd.f32 0.0, %v2258
        %2260 = vmatmul.f32.gmra.mxu0 %v1104
        %v2261 = vpop.f32.mrf.mxu0
        %v2262 = vadd.f32 0.0, %v2261
        %2263 = vmatmul.f32.gmra.mxu0 %v1106
        %v2264 = vpop.f32.mrf.mxu0
        %v2265 = vadd.f32 0.0, %v2264
        %2266 = vmatmul.f32.gmra.mxu0 %v1108
        %v2267 = vpop.f32.mrf.mxu0
        %v2268 = vadd.f32 0.0, %v2267
        %2269 = vmatmul.f32.gmra.mxu0 %v1110
        %v2270 = vpop.f32.mrf.mxu0
        %v2271 = vadd.f32 0.0, %v2270
        %2272 = vmatmul.f32.gmra.mxu0 %v1112
        %v2273 = vpop.f32.mrf.mxu0
        %v2274 = vadd.f32 0.0, %v2273
        %2275 = vmatmul.f32.gmra.mxu0 %v1114
        %v2276 = vpop.f32.mrf.mxu0
        %v2277 = vadd.f32 0.0, %v2276
        %2278 = vmatmul.f32.gmra.mxu0 %v1116
        %v2279 = vpop.f32.mrf.mxu0
        %v2280 = vadd.f32 0.0, %v2279
        %2281 = vmatmul.f32.gmra.mxu0 %v1118
        %v2282 = vpop.f32.mrf.mxu0
        %v2283 = vadd.f32 0.0, %v2282
        %2284 = vmatmul.f32.gmra.mxu0 %v1120
        %v2285 = vpop.f32.mrf.mxu0
        %v2286 = vadd.f32 0.0, %v2285
        %2287 = vmatmul.f32.gmra.mxu0 %v1122
        %v2288 = vpop.f32.mrf.mxu0
        %v2289 = vadd.f32 0.0, %v2288
        %2290 = vmatmul.f32.gmra.mxu0 %v1124
        %v2291 = vpop.f32.mrf.mxu0
        %v2292 = vadd.f32 0.0, %v2291
        %2293 = vmatmul.f32.gmra.mxu0 %v1126
        %v2294 = vpop.f32.mrf.mxu0
        %v2295 = vadd.f32 0.0, %v2294
        %2296 = vmatmul.f32.gmra.mxu0 %v1128
        %v2297 = vpop.f32.mrf.mxu0
        %v2298 = vadd.f32 0.0, %v2297
        %2299 = vmatmul.f32.gmra.mxu0 %v1130
        %v2300 = vpop.f32.mrf.mxu0
        %v2301 = vadd.f32 0.0, %v2300
        %2302 = vmatmul.f32.gmra.mxu0 %v1132
        %v2303 = vpop.f32.mrf.mxu0
        %v2304 = vadd.f32 0.0, %v2303
        %2305 = vmatmul.f32.gmra.mxu0 %v1134
        %v2306 = vpop.f32.mrf.mxu0
        %v2307 = vadd.f32 0.0, %v2306
        %2308 = vmatmul.f32.gmra.mxu0 %v1136
        %v2309 = vpop.f32.mrf.mxu0
        %v2310 = vadd.f32 0.0, %v2309
        %2311 = vmatmul.f32.gmra.mxu0 %v1138
        %v2312 = vpop.f32.mrf.mxu0
        %v2313 = vadd.f32 0.0, %v2312
        %2314 = vmatmul.f32.gmra.mxu0 %v1140
        %v2315 = vpop.f32.mrf.mxu0
        %v2316 = vadd.f32 0.0, %v2315
        %2317 = vmatmul.f32.gmra.mxu0 %v1142
        %v2318 = vpop.f32.mrf.mxu0
        %v2319 = vadd.f32 0.0, %v2318
        %2320 = vdwg.mxu0
        %2321 = vmatpush.msra.mxu0 %v1303
        %2322 = vmatpush.msra.mxu0 %v1298
        %2323 = vmatpush.msra.mxu0 %v1293
        %2324 = vmatpush.msra.mxu0 %v1288
        %2325 = vmatpush.msra.mxu0 %v1283
        %2326 = vmatpush.msra.mxu0 %v1278
        %2327 = vmatpush.msra.mxu0 %v1273
        %2328 = vmatpush.msra.mxu0 %v1268
        %2329 = vmatpush.msra.mxu0 %v1263
        %2330 = vmatpush.msra.mxu0 %v1258
        %2331 = vmatpush.msra.mxu0 %v1253
        %2332 = vmatpush.msra.mxu0 %v1248
        %2333 = vmatpush.msra.mxu0 %v1243
        %2334 = vmatpush.msra.mxu0 %v1238
        %2335 = vmatpush.msra.mxu0 %v1233
        %2336 = vmatpush.msra.mxu0 %v1228
        %2337 = vmatmul.f32.gmra.mxu0 %v1081
        %v2338 = vpop.f32.mrf.mxu0
        %v2339 = vadd.f32 %v2226, %v2338
        %2340 = vmatmul.f32.gmra.mxu0 %v1083
        %v2341 = vpop.f32.mrf.mxu0
        %v2342 = vadd.f32 %v2229, %v2341
        %2343 = vmatmul.f32.gmra.mxu0 %v1085
        %v2344 = vpop.f32.mrf.mxu0
        %v2345 = vadd.f32 %v2232, %v2344
        %2346 = vmatmul.f32.gmra.mxu0 %v1087
        %v2347 = vpop.f32.mrf.mxu0
        %v2348 = vadd.f32 %v2235, %v2347
        %2349 = vmatmul.f32.gmra.mxu0 %v1089
        %v2350 = vpop.f32.mrf.mxu0
        %v2351 = vadd.f32 %v2238, %v2350
        %2352 = vmatmul.f32.gmra.mxu0 %v1091
        %v2353 = vpop.f32.mrf.mxu0
        %v2354 = vadd.f32 %v2241, %v2353
        %2355 = vmatmul.f32.gmra.mxu0 %v1093
        %v2356 = vpop.f32.mrf.mxu0
        %v2357 = vadd.f32 %v2244, %v2356
        %2358 = vmatmul.f32.gmra.mxu0 %v1095
        %v2359 = vpop.f32.mrf.mxu0
        %v2360 = vadd.f32 %v2247, %v2359
        %2361 = vmatmul.f32.gmra.mxu0 %v1097
        %v2362 = vpop.f32.mrf.mxu0
        %v2363 = vadd.f32 %v2250, %v2362
        %2364 = vmatmul.f32.gmra.mxu0 %v1099
        %v2365 = vpop.f32.mrf.mxu0
        %v2366 = vadd.f32 %v2253, %v2365
        %2367 = vmatmul.f32.gmra.mxu0 %v1101
        %v2368 = vpop.f32.mrf.mxu0
        %v2369 = vadd.f32 %v2256, %v2368
        %2370 = vmatmul.f32.gmra.mxu0 %v1103
        %v2371 = vpop.f32.mrf.mxu0
        %v2372 = vadd.f32 %v2259, %v2371
        %2373 = vmatmul.f32.gmra.mxu0 %v1105
        %v2374 = vpop.f32.mrf.mxu0
        %v2375 = vadd.f32 %v2262, %v2374
        %2376 = vmatmul.f32.gmra.mxu0 %v1107
        %v2377 = vpop.f32.mrf.mxu0
        %v2378 = vadd.f32 %v2265, %v2377
        %2379 = vmatmul.f32.gmra.mxu0 %v1109
        %v2380 = vpop.f32.mrf.mxu0
        %v2381 = vadd.f32 %v2268, %v2380
        %2382 = vmatmul.f32.gmra.mxu0 %v1111
        %v2383 = vpop.f32.mrf.mxu0
        %v2384 = vadd.f32 %v2271, %v2383
        %2385 = vmatmul.f32.gmra.mxu0 %v1113
        %v2386 = vpop.f32.mrf.mxu0
        %v2387 = vadd.f32 %v2274, %v2386
        %2388 = vmatmul.f32.gmra.mxu0 %v1115
        %v2389 = vpop.f32.mrf.mxu0
        %v2390 = vadd.f32 %v2277, %v2389
        %2391 = vmatmul.f32.gmra.mxu0 %v1117
        %v2392 = vpop.f32.mrf.mxu0
        %v2393 = vadd.f32 %v2280, %v2392
        %2394 = vmatmul.f32.gmra.mxu0 %v1119
        %v2395 = vpop.f32.mrf.mxu0
        %v2396 = vadd.f32 %v2283, %v2395
        %2397 = vmatmul.f32.gmra.mxu0 %v1121
        %v2398 = vpop.f32.mrf.mxu0
        %v2399 = vadd.f32 %v2286, %v2398
        %2400 = vmatmul.f32.gmra.mxu0 %v1123
        %v2401 = vpop.f32.mrf.mxu0
        %v2402 = vadd.f32 %v2289, %v2401
        %2403 = vmatmul.f32.gmra.mxu0 %v1125
        %v2404 = vpop.f32.mrf.mxu0
        %v2405 = vadd.f32 %v2292, %v2404
        %2406 = vmatmul.f32.gmra.mxu0 %v1127
        %v2407 = vpop.f32.mrf.mxu0
        %v2408 = vadd.f32 %v2295, %v2407
        %2409 = vmatmul.f32.gmra.mxu0 %v1129
        %v2410 = vpop.f32.mrf.mxu0
        %v2411 = vadd.f32 %v2298, %v2410
        %2412 = vmatmul.f32.gmra.mxu0 %v1131
        %v2413 = vpop.f32.mrf.mxu0
        %v2414 = vadd.f32 %v2301, %v2413
        %2415 = vmatmul.f32.gmra.mxu0 %v1133
        %v2416 = vpop.f32.mrf.mxu0
        %v2417 = vadd.f32 %v2304, %v2416
        %2418 = vmatmul.f32.gmra.mxu0 %v1135
        %v2419 = vpop.f32.mrf.mxu0
        %v2420 = vadd.f32 %v2307, %v2419
        %2421 = vmatmul.f32.gmra.mxu0 %v1137
        %v2422 = vpop.f32.mrf.mxu0
        %v2423 = vadd.f32 %v2310, %v2422
        %2424 = vmatmul.f32.gmra.mxu0 %v1139
        %v2425 = vpop.f32.mrf.mxu0
        %v2426 = vadd.f32 %v2313, %v2425
        %2427 = vmatmul.f32.gmra.mxu0 %v1141
        %v2428 = vpop.f32.mrf.mxu0
        %v2429 = vadd.f32 %v2316, %v2428
        %2430 = vmatmul.f32.gmra.mxu0 %v1143
        %v2431 = vpop.f32.mrf.mxu0
        %v2432 = vadd.f32 %v2319, %v2431
        %2433 = vdwg.mxu0
        %2434 = vst [vmem:[#allocation4] sm:$0xff] %v1435
        %2435 = vst [vmem:[#allocation4 + $0x8] sm:$0xff] %v1661
        %2436 = vst [vmem:[#allocation4 + $0x10] sm:$0xff] %v1887
        %2437 = vst [vmem:[#allocation4 + $0x18] sm:$0xff] %v2113
        %2438 = vst.msk [vmem:[#allocation4 + $0x20] sm:$0xff] %vm723, %v2339
        %2439 = vst [vmem:[#allocation4 + $0x28] sm:$0xff] %v1438
        %2440 = vst [vmem:[#allocation4 + $0x30] sm:$0xff] %v1664
        %2441 = vst [vmem:[#allocation4 + $0x38] sm:$0xff] %v1890
        %2442 = vst [vmem:[#allocation4 + $0x40] sm:$0xff] %v2116
        %2443 = vst.msk [vmem:[#allocation4 + $0x48] sm:$0xff] %vm723, %v2342
        %2444 = vst [vmem:[#allocation4 + $0x50] sm:$0xff] %v1441
        %2445 = vst [vmem:[#allocation4 + $0x58] sm:$0xff] %v1667
        %2446 = vst [vmem:[#allocation4 + $0x60] sm:$0xff] %v1893
        %2447 = vst [vmem:[#allocation4 + $0x68] sm:$0xff] %v2119
        %2448 = vst.msk [vmem:[#allocation4 + $0x70] sm:$0xff] %vm723, %v2345
        %2449 = vst [vmem:[#allocation4 + $0x78] sm:$0xff] %v1444
        %2450 = vst [vmem:[#allocation4 + $0x80] sm:$0xff] %v1670
        %2451 = vst [vmem:[#allocation4 + $0x88] sm:$0xff] %v1896
        %2452 = vst [vmem:[#allocation4 + $0x90] sm:$0xff] %v2122
        %2453 = vst.msk [vmem:[#allocation4 + $0x98] sm:$0xff] %vm723, %v2348
        %2454 = vst [vmem:[#allocation4 + $0xa0] sm:$0xff] %v1447
        %2455 = vst [vmem:[#allocation4 + $0xa8] sm:$0xff] %v1673
        %2456 = vst [vmem:[#allocation4 + $0xb0] sm:$0xff] %v1899
        %2457 = vst [vmem:[#allocation4 + $0xb8] sm:$0xff] %v2125
        %2458 = vst.msk [vmem:[#allocation4 + $0xc0] sm:$0xff] %vm723, %v2351
        %2459 = vst [vmem:[#allocation4 + $0xc8] sm:$0xff] %v1450
        %2460 = vst [vmem:[#allocation4 + $0xd0] sm:$0xff] %v1676
        %2461 = vst [vmem:[#allocation4 + $0xd8] sm:$0xff] %v1902
        %2462 = vst [vmem:[#allocation4 + $0xe0] sm:$0xff] %v2128
        %2463 = vst.msk [vmem:[#allocation4 + $0xe8] sm:$0xff] %vm723, %v2354
        %2464 = vst [vmem:[#allocation4 + $0xf0] sm:$0xff] %v1453
        %2465 = vst [vmem:[#allocation4 + $0xf8] sm:$0xff] %v1679
        %2466 = vst [vmem:[#allocation4 + $0x100] sm:$0xff] %v1905
        %2467 = vst [vmem:[#allocation4 + $0x108] sm:$0xff] %v2131
        %2468 = vst.msk [vmem:[#allocation4 + $0x110] sm:$0xff] %vm723, %v2357
        %2469 = vst [vmem:[#allocation4 + $0x118] sm:$0xff] %v1456
        %2470 = vst [vmem:[#allocation4 + $0x120] sm:$0xff] %v1682
        %2471 = vst [vmem:[#allocation4 + $0x128] sm:$0xff] %v1908
        %2472 = vst [vmem:[#allocation4 + $0x130] sm:$0xff] %v2134
        %2473 = vst.msk [vmem:[#allocation4 + $0x138] sm:$0xff] %vm723, %v2360
        %2474 = vst [vmem:[#allocation4 + $0x140] sm:$0xff] %v1459
        %2475 = vst [vmem:[#allocation4 + $0x148] sm:$0xff] %v1685
        %2476 = vst [vmem:[#allocation4 + $0x150] sm:$0xff] %v1911
        %2477 = vst [vmem:[#allocation4 + $0x158] sm:$0xff] %v2137
        %2478 = vst.msk [vmem:[#allocation4 + $0x160] sm:$0xff] %vm723, %v2363
        %2479 = vst [vmem:[#allocation4 + $0x168] sm:$0xff] %v1462
        %2480 = vst [vmem:[#allocation4 + $0x170] sm:$0xff] %v1688
        %2481 = vst [vmem:[#allocation4 + $0x178] sm:$0xff] %v1914
        %2482 = vst [vmem:[#allocation4 + $0x180] sm:$0xff] %v2140
        %2483 = vst.msk [vmem:[#allocation4 + $0x188] sm:$0xff] %vm723, %v2366
        %2484 = vst [vmem:[#allocation4 + $0x190] sm:$0xff] %v1465
        %2485 = vst [vmem:[#allocation4 + $0x198] sm:$0xff] %v1691
        %2486 = vst [vmem:[#allocation4 + $0x1a0] sm:$0xff] %v1917
        %2487 = vst [vmem:[#allocation4 + $0x1a8] sm:$0xff] %v2143
        %2488 = vst.msk [vmem:[#allocation4 + $0x1b0] sm:$0xff] %vm723, %v2369
        %2489 = vst [vmem:[#allocation4 + $0x1b8] sm:$0xff] %v1468
        %2490 = vst [vmem:[#allocation4 + $0x1c0] sm:$0xff] %v1694
        %2491 = vst [vmem:[#allocation4 + $0x1c8] sm:$0xff] %v1920
        %2492 = vst [vmem:[#allocation4 + $0x1d0] sm:$0xff] %v2146
        %2493 = vst.msk [vmem:[#allocation4 + $0x1d8] sm:$0xff] %vm723, %v2372
        %2494 = vst [vmem:[#allocation4 + $0x1e0] sm:$0xff] %v1471
        %2495 = vst [vmem:[#allocation4 + $0x1e8] sm:$0xff] %v1697
        %2496 = vst [vmem:[#allocation4 + $0x1f0] sm:$0xff] %v1923
        %2497 = vst [vmem:[#allocation4 + $0x1f8] sm:$0xff] %v2149
        %2498 = vst.msk [vmem:[#allocation4 + $0x200] sm:$0xff] %vm723, %v2375
        %2499 = vst [vmem:[#allocation4 + $0x208] sm:$0xff] %v1474
        %2500 = vst [vmem:[#allocation4 + $0x210] sm:$0xff] %v1700
        %2501 = vst [vmem:[#allocation4 + $0x218] sm:$0xff] %v1926
        %2502 = vst [vmem:[#allocation4 + $0x220] sm:$0xff] %v2152
        %2503 = vst.msk [vmem:[#allocation4 + $0x228] sm:$0xff] %vm723, %v2378
        %2504 = vst [vmem:[#allocation4 + $0x230] sm:$0xff] %v1477
        %2505 = vst [vmem:[#allocation4 + $0x238] sm:$0xff] %v1703
        %2506 = vst [vmem:[#allocation4 + $0x240] sm:$0xff] %v1929
        %2507 = vst [vmem:[#allocation4 + $0x248] sm:$0xff] %v2155
        %2508 = vst.msk [vmem:[#allocation4 + $0x250] sm:$0xff] %vm723, %v2381
        %2509 = vst [vmem:[#allocation4 + $0x258] sm:$0xff] %v1480
        %2510 = vst [vmem:[#allocation4 + $0x260] sm:$0xff] %v1706
        %2511 = vst [vmem:[#allocation4 + $0x268] sm:$0xff] %v1932
        %2512 = vst [vmem:[#allocation4 + $0x270] sm:$0xff] %v2158
        %2513 = vst.msk [vmem:[#allocation4 + $0x278] sm:$0xff] %vm723, %v2384
        %2514 = vst [vmem:[#allocation4 + $0x280] sm:$0xff] %v1483
        %2515 = vst [vmem:[#allocation4 + $0x288] sm:$0xff] %v1709
        %2516 = vst [vmem:[#allocation4 + $0x290] sm:$0xff] %v1935
        %2517 = vst [vmem:[#allocation4 + $0x298] sm:$0xff] %v2161
        %2518 = vst.msk [vmem:[#allocation4 + $0x2a0] sm:$0xff] %vm723, %v2387
        %2519 = vst [vmem:[#allocation4 + $0x2a8] sm:$0xff] %v1486
        %2520 = vst [vmem:[#allocation4 + $0x2b0] sm:$0xff] %v1712
        %2521 = vst [vmem:[#allocation4 + $0x2b8] sm:$0xff] %v1938
        %2522 = vst [vmem:[#allocation4 + $0x2c0] sm:$0xff] %v2164
        %2523 = vst.msk [vmem:[#allocation4 + $0x2c8] sm:$0xff] %vm723, %v2390
        %2524 = vst [vmem:[#allocation4 + $0x2d0] sm:$0xff] %v1489
        %2525 = vst [vmem:[#allocation4 + $0x2d8] sm:$0xff] %v1715
        %2526 = vst [vmem:[#allocation4 + $0x2e0] sm:$0xff] %v1941
        %2527 = vst [vmem:[#allocation4 + $0x2e8] sm:$0xff] %v2167
        %2528 = vst.msk [vmem:[#allocation4 + $0x2f0] sm:$0xff] %vm723, %v2393
        %2529 = vst [vmem:[#allocation4 + $0x2f8] sm:$0xff] %v1492
        %2530 = vst [vmem:[#allocation4 + $0x300] sm:$0xff] %v1718
        %2531 = vst [vmem:[#allocation4 + $0x308] sm:$0xff] %v1944
        %2532 = vst [vmem:[#allocation4 + $0x310] sm:$0xff] %v2170
        %2533 = vst.msk [vmem:[#allocation4 + $0x318] sm:$0xff] %vm723, %v2396
        %2534 = vst [vmem:[#allocation4 + $0x320] sm:$0xff] %v1495
        %2535 = vst [vmem:[#allocation4 + $0x328] sm:$0xff] %v1721
        %2536 = vst [vmem:[#allocation4 + $0x330] sm:$0xff] %v1947
        %2537 = vst [vmem:[#allocation4 + $0x338] sm:$0xff] %v2173
        %2538 = vst.msk [vmem:[#allocation4 + $0x340] sm:$0xff] %vm723, %v2399
        %2539 = vst [vmem:[#allocation4 + $0x348] sm:$0xff] %v1498
        %2540 = vst [vmem:[#allocation4 + $0x350] sm:$0xff] %v1724
        %2541 = vst [vmem:[#allocation4 + $0x358] sm:$0xff] %v1950
        %2542 = vst [vmem:[#allocation4 + $0x360] sm:$0xff] %v2176
        %2543 = vst.msk [vmem:[#allocation4 + $0x368] sm:$0xff] %vm723, %v2402
        %2544 = vst [vmem:[#allocation4 + $0x370] sm:$0xff] %v1501
        %2545 = vst [vmem:[#allocation4 + $0x378] sm:$0xff] %v1727
        %2546 = vst [vmem:[#allocation4 + $0x380] sm:$0xff] %v1953
        %2547 = vst [vmem:[#allocation4 + $0x388] sm:$0xff] %v2179
        %2548 = vst.msk [vmem:[#allocation4 + $0x390] sm:$0xff] %vm723, %v2405
        %2549 = vst [vmem:[#allocation4 + $0x398] sm:$0xff] %v1504
        %2550 = vst [vmem:[#allocation4 + $0x3a0] sm:$0xff] %v1730
        %2551 = vst [vmem:[#allocation4 + $0x3a8] sm:$0xff] %v1956
        %2552 = vst [vmem:[#allocation4 + $0x3b0] sm:$0xff] %v2182
        %2553 = vst.msk [vmem:[#allocation4 + $0x3b8] sm:$0xff] %vm723, %v2408
        %2554 = vst [vmem:[#allocation4 + $0x3c0] sm:$0xff] %v1507
        %2555 = vst [vmem:[#allocation4 + $0x3c8] sm:$0xff] %v1733
        %2556 = vst [vmem:[#allocation4 + $0x3d0] sm:$0xff] %v1959
        %2557 = vst [vmem:[#allocation4 + $0x3d8] sm:$0xff] %v2185
        %2558 = vst.msk [vmem:[#allocation4 + $0x3e0] sm:$0xff] %vm723, %v2411
        %2559 = vst [vmem:[#allocation4 + $0x3e8] sm:$0xff] %v1510
        %2560 = vst [vmem:[#allocation4 + $0x3f0] sm:$0xff] %v1736
        %2561 = vst [vmem:[#allocation4 + $0x3f8] sm:$0xff] %v1962
        %2562 = vst [vmem:[#allocation4 + $0x400] sm:$0xff] %v2188
        %2563 = vst.msk [vmem:[#allocation4 + $0x408] sm:$0xff] %vm723, %v2414
        %2564 = vst [vmem:[#allocation4 + $0x410] sm:$0xff] %v1513
        %2565 = vst [vmem:[#allocation4 + $0x418] sm:$0xff] %v1739
        %2566 = vst [vmem:[#allocation4 + $0x420] sm:$0xff] %v1965
        %2567 = vst [vmem:[#allocation4 + $0x428] sm:$0xff] %v2191
        %2568 = vst.msk [vmem:[#allocation4 + $0x430] sm:$0xff] %vm723, %v2417
        %2569 = vst [vmem:[#allocation4 + $0x438] sm:$0xff] %v1516
        %2570 = vst [vmem:[#allocation4 + $0x440] sm:$0xff] %v1742
        %2571 = vst [vmem:[#allocation4 + $0x448] sm:$0xff] %v1968
        %2572 = vst [vmem:[#allocation4 + $0x450] sm:$0xff] %v2194
        %2573 = vst.msk [vmem:[#allocation4 + $0x458] sm:$0xff] %vm723, %v2420
        %2574 = vst [vmem:[#allocation4 + $0x460] sm:$0xff] %v1519
        %2575 = vst [vmem:[#allocation4 + $0x468] sm:$0xff] %v1745
        %2576 = vst [vmem:[#allocation4 + $0x470] sm:$0xff] %v1971
        %2577 = vst [vmem:[#allocation4 + $0x478] sm:$0xff] %v2197
        %2578 = vst.msk [vmem:[#allocation4 + $0x480] sm:$0xff] %vm723, %v2423
        %2579 = vst [vmem:[#allocation4 + $0x488] sm:$0xff] %v1522
        %2580 = vst [vmem:[#allocation4 + $0x490] sm:$0xff] %v1748
        %2581 = vst [vmem:[#allocation4 + $0x498] sm:$0xff] %v1974
        %2582 = vst [vmem:[#allocation4 + $0x4a0] sm:$0xff] %v2200
        %2583 = vst.msk [vmem:[#allocation4 + $0x4a8] sm:$0xff] %vm723, %v2426
        %2584 = vst [vmem:[#allocation4 + $0x4b0] sm:$0xff] %v1525
        %2585 = vst [vmem:[#allocation4 + $0x4b8] sm:$0xff] %v1751
        %2586 = vst [vmem:[#allocation4 + $0x4c0] sm:$0xff] %v1977
        %2587 = vst [vmem:[#allocation4 + $0x4c8] sm:$0xff] %v2203
        %2588 = vst.msk [vmem:[#allocation4 + $0x4d0] sm:$0xff] %vm723, %v2429
        %2589 = vst [vmem:[#allocation4 + $0x4d8] sm:$0xff] %v1528
        %2590 = vst [vmem:[#allocation4 + $0x4e0] sm:$0xff] %v1754
        %2591 = vst [vmem:[#allocation4 + $0x4e8] sm:$0xff] %v1980
        %2592 = vst [vmem:[#allocation4 + $0x4f0] sm:$0xff] %v2206
        %2593 = vst.msk [vmem:[#allocation4 + $0x4f8] sm:$0xff] %vm723, %v2432
        %2594 = vst.msk [vmem:[#allocation5] sm:$0xff] %vm723, 0.0
        %2595 = vst.msk [vmem:[#allocation5 + $0x8] sm:$0xff] %vm723, 0.0
        %vm2596 = vcmask 517120
        %2597 = vst.msk [vmem:[#allocation5 + $0x10] sm:$0x3] %vm2596, 0.0
        %2598 = vst.msk [vmem:[#allocation5 + $0x18] sm:$0xff] %vm723, 0.0
        %2599 = vst.msk [vmem:[#allocation5 + $0x20] sm:$0xff] %vm723, 0.0
        %2600 = vst.msk [vmem:[#allocation5 + $0x28] sm:$0x3] %vm2596, 0.0
        %2601 = vst.msk [vmem:[#allocation5 + $0x30] sm:$0xff] %vm723, 0.0
        %2602 = vst.msk [vmem:[#allocation5 + $0x38] sm:$0xff] %vm723, 0.0
        %2603 = vst.msk [vmem:[#allocation5 + $0x40] sm:$0x3] %vm2596, 0.0
        %2604 = vst.msk [vmem:[#allocation5 + $0x48] sm:$0xff] %vm723, 0.0
        %2605 = vst.msk [vmem:[#allocation5 + $0x50] sm:$0xff] %vm723, 0.0
        %2606 = vst.msk [vmem:[#allocation5 + $0x58] sm:$0x3] %vm2596, 0.0
        %2607 = vst.msk [vmem:[#allocation5 + $0x60] sm:$0xff] %vm723, 0.0
        %2608 = vst.msk [vmem:[#allocation5 + $0x68] sm:$0xff] %vm723, 0.0
        %2609 = vst.msk [vmem:[#allocation5 + $0x70] sm:$0x3] %vm2596, 0.0
        %2610 = vst.msk [vmem:[#allocation5 + $0x78] sm:$0xff] %vm723, 0.0
        %2611 = vst.msk [vmem:[#allocation5 + $0x80] sm:$0xff] %vm723, 0.0
        %2612 = vst.msk [vmem:[#allocation5 + $0x88] sm:$0x3] %vm2596, 0.0
        %2613 = vst.msk [vmem:[#allocation5 + $0x90] sm:$0xff] %vm723, 0.0
        %2614 = vst.msk [vmem:[#allocation5 + $0x98] sm:$0xff] %vm723, 0.0
        %2615 = vst.msk [vmem:[#allocation5 + $0xa0] sm:$0x3] %vm2596, 0.0
        %2616 = vst.msk [vmem:[#allocation5 + $0xa8] sm:$0xff] %vm723, 0.0
        %2617 = vst.msk [vmem:[#allocation5 + $0xb0] sm:$0xff] %vm723, 0.0
        %2618 = vst.msk [vmem:[#allocation5 + $0xb8] sm:$0x3] %vm2596, 0.0
        %2619 = vst.msk [vmem:[#allocation5 + $0xc0] sm:$0xff] %vm723, 0.0
        %2620 = vst.msk [vmem:[#allocation5 + $0xc8] sm:$0xff] %vm723, 0.0
        %2621 = vst.msk [vmem:[#allocation5 + $0xd0] sm:$0x3] %vm2596, 0.0
        %2622 = vst.msk [vmem:[#allocation5 + $0xd8] sm:$0xff] %vm723, 0.0
        %2623 = vst.msk [vmem:[#allocation5 + $0xe0] sm:$0xff] %vm723, 0.0
        %2624 = vst.msk [vmem:[#allocation5 + $0xe8] sm:$0x3] %vm2596, 0.0
        %2625 = vst.msk [vmem:[#allocation5 + $0xf0] sm:$0xff] %vm723, 0.0
        %2626 = vst.msk [vmem:[#allocation5 + $0xf8] sm:$0xff] %vm723, 0.0
        %2627 = vst.msk [vmem:[#allocation5 + $0x100] sm:$0x3] %vm2596, 0.0
        %2628 = vst.msk [vmem:[#allocation5 + $0x108] sm:$0xff] %vm723, 0.0
        %2629 = vst.msk [vmem:[#allocation5 + $0x110] sm:$0xff] %vm723, 0.0
        %2630 = vst.msk [vmem:[#allocation5 + $0x118] sm:$0x3] %vm2596, 0.0
        %2631 = vst.msk [vmem:[#allocation5 + $0x120] sm:$0xff] %vm723, 0.0
        %2632 = vst.msk [vmem:[#allocation5 + $0x128] sm:$0xff] %vm723, 0.0
        %2633 = vst.msk [vmem:[#allocation5 + $0x130] sm:$0x3] %vm2596, 0.0
        %2634 = vst.msk [vmem:[#allocation5 + $0x138] sm:$0xff] %vm723, 0.0
        %2635 = vst.msk [vmem:[#allocation5 + $0x140] sm:$0xff] %vm723, 0.0
        %2636 = vst.msk [vmem:[#allocation5 + $0x148] sm:$0x3] %vm2596, 0.0
        %2637 = vst.msk [vmem:[#allocation5 + $0x150] sm:$0xff] %vm723, 0.0
        %2638 = vst.msk [vmem:[#allocation5 + $0x158] sm:$0xff] %vm723, 0.0
        %2639 = vst.msk [vmem:[#allocation5 + $0x160] sm:$0x3] %vm2596, 0.0
        %2640 = vst.msk [vmem:[#allocation5 + $0x168] sm:$0xff] %vm723, 0.0
        %2641 = vst.msk [vmem:[#allocation5 + $0x170] sm:$0xff] %vm723, 0.0
        %2642 = vst.msk [vmem:[#allocation5 + $0x178] sm:$0x3] %vm2596, 0.0
        %2643 = vst.msk [vmem:[#allocation5 + $0x180] sm:$0xff] %vm723, 0.0
        %2644 = vst.msk [vmem:[#allocation5 + $0x188] sm:$0xff] %vm723, 0.0
        %2645 = vst.msk [vmem:[#allocation5 + $0x190] sm:$0x3] %vm2596, 0.0
        %2646 = vst.msk [vmem:[#allocation5 + $0x198] sm:$0xff] %vm723, 0.0
        %2647 = vst.msk [vmem:[#allocation5 + $0x1a0] sm:$0xff] %vm723, 0.0
        %2648 = vst.msk [vmem:[#allocation5 + $0x1a8] sm:$0x3] %vm2596, 0.0
        %v2649 = vld [vmem:[#allocation4] sm:$0xff]
        %v2650 = vld [vmem:[#allocation4 + $0x28] sm:$0xff]
        %v2651 = vld [vmem:[#allocation4 + $0x50] sm:$0xff]
        %v2652 = vld [vmem:[#allocation4 + $0x78] sm:$0xff]
        %v2653 = vld [vmem:[#allocation4 + $0xa0] sm:$0xff]
        %v2654 = vld [vmem:[#allocation4 + $0xc8] sm:$0xff]
        %v2655 = vld [vmem:[#allocation4 + $0xf0] sm:$0xff]
        %v2656 = vld [vmem:[#allocation4 + $0x118] sm:$0xff]
        %v2657 = vld [vmem:[#allocation4 + $0x140] sm:$0xff]
        %v2658 = vld [vmem:[#allocation4 + $0x168] sm:$0xff]
        %v2659 = vld [vmem:[#allocation4 + $0x190] sm:$0xff]
        %v2660 = vld [vmem:[#allocation4 + $0x1b8] sm:$0xff]
        %v2661 = vld [vmem:[#allocation4 + $0x1e0] sm:$0xff]
        %v2662 = vld [vmem:[#allocation4 + $0x208] sm:$0xff]
        %v2663 = vld [vmem:[#allocation4 + $0x230] sm:$0xff]
        %v2664 = vld [vmem:[#allocation4 + $0x258] sm:$0xff]
        %v2665 = vld [vmem:[#allocation4 + $0x280] sm:$0xff]
        %v2666 = vld [vmem:[#allocation4 + $0x2a8] sm:$0xff]
        %v2667 = vld [vmem:[#allocation4 + $0x2d0] sm:$0xff]
        %v2668 = vld [vmem:[#allocation4 + $0x2f8] sm:$0xff]
        %v2669 = vld [vmem:[#allocation4 + $0x320] sm:$0xff]
        %v2670 = vld [vmem:[#allocation4 + $0x348] sm:$0xff]
        %v2671 = vld [vmem:[#allocation4 + $0x370] sm:$0xff]
        %v2672 = vld [vmem:[#allocation4 + $0x398] sm:$0xff]
        %v2673 = vld [vmem:[#allocation4 + $0x3c0] sm:$0xff]
        %v2674 = vld [vmem:[#allocation4 + $0x3e8] sm:$0xff]
        %v2675 = vld [vmem:[#allocation4 + $0x410] sm:$0xff]
        %v2676 = vld [vmem:[#allocation4 + $0x438] sm:$0xff]
        %v2677 = vld [vmem:[#allocation4 + $0x460] sm:$0xff]
        %v2678 = vld [vmem:[#allocation4 + $0x488] sm:$0xff]
        %v2679 = vld [vmem:[#allocation4 + $0x4b0] sm:$0xff]
        %v2680 = vld [vmem:[#allocation4 + $0x4d8] sm:$0xff]
        %s2681 = scalar_lea.vmem [#allocation5], 48
        %v2682 = vld [vmem:[%s2681 + $0x2] sm:$0xff]
        %v2683 = vld [vmem:[%s2681 + $0xa] sm:$0xff]
        %v2684 = vld [vmem:[%s2681 + $0x1a] sm:$0xff]
        %v2685 = vld [vmem:[%s2681 + $0x22] sm:$0xff]
        %v2686 = vld [vmem:[%s2681 + $0x32] sm:$0xff]
        %v2687 = vld [vmem:[%s2681 + $0x3a] sm:$0xff]
        %v2688 = vld [vmem:[%s2681 + $0x4a] sm:$0xff]
        %v2689 = vld [vmem:[%s2681 + $0x52] sm:$0xff]
        %v2690 = vld [vmem:[%s2681 + $0x62] sm:$0xff]
        %v2691 = vld [vmem:[%s2681 + $0x6a] sm:$0xff]
        %v2692 = vld [vmem:[%s2681 + $0x7a] sm:$0xff]
        %v2693 = vld [vmem:[%s2681 + $0x82] sm:$0xff]
        %v2694 = vld [vmem:[%s2681 + $0x92] sm:$0xff]
        %v2695 = vld [vmem:[%s2681 + $0x9a] sm:$0xff]
        %v2696 = vld [vmem:[%s2681 + $0xaa] sm:$0xff]
        %v2697 = vld [vmem:[%s2681 + $0xb2] sm:$0xff]
        %v2698 = vld [vmem:[%s2681 + $0xc2] sm:$0xff]
        %v2699 = vld [vmem:[%s2681 + $0xca] sm:$0xff]
        %v2700 = vld [vmem:[%s2681 + $0xda] sm:$0xff]
        %v2701 = vld [vmem:[%s2681 + $0xe2] sm:$0xff]
        %v2702 = vld [vmem:[%s2681 + $0xf2] sm:$0xff]
        %v2703 = vld [vmem:[%s2681 + $0xfa] sm:$0xff]
        %v2704 = vld [vmem:[%s2681 + $0x10a] sm:$0xff]
        %v2705 = vld [vmem:[%s2681 + $0x112] sm:$0xff]
        %v2706 = vld [vmem:[%s2681 + $0x122] sm:$0xff]
        %v2707 = vld [vmem:[%s2681 + $0x12a] sm:$0xff]
        %v2708 = vld [vmem:[%s2681 + $0x13a] sm:$0xff]
        %v2709 = vld [vmem:[%s2681 + $0x142] sm:$0xff]
        %v2710 = vld [vmem:[%s2681 + $0x152] sm:$0xff]
        %v2711 = vld [vmem:[%s2681 + $0x15a] sm:$0xff]
        %v2712 = vld [vmem:[%s2681 + $0x16a] sm:$0xff]
        %v2713 = vld [vmem:[%s2681 + $0x172] sm:$0xff]
        %v2714 = vadd.f32 %v2682, %v2649
        %v2715 = vadd.f32 %v2683, %v2650
        %v2716 = vadd.f32 %v2684, %v2651
        %v2717 = vadd.f32 %v2685, %v2652
        %v2718 = vadd.f32 %v2686, %v2653
        %v2719 = vadd.f32 %v2687, %v2654
        %v2720 = vadd.f32 %v2688, %v2655
        %v2721 = vadd.f32 %v2689, %v2656
        %v2722 = vadd.f32 %v2690, %v2657
        %v2723 = vadd.f32 %v2691, %v2658
        %v2724 = vadd.f32 %v2692, %v2659
        %v2725 = vadd.f32 %v2693, %v2660
        %v2726 = vadd.f32 %v2694, %v2661
        %v2727 = vadd.f32 %v2695, %v2662
        %v2728 = vadd.f32 %v2696, %v2663
        %v2729 = vadd.f32 %v2697, %v2664
        %v2730 = vadd.f32 %v2698, %v2665
        %v2731 = vadd.f32 %v2699, %v2666
        %v2732 = vadd.f32 %v2700, %v2667
        %v2733 = vadd.f32 %v2701, %v2668
        %v2734 = vadd.f32 %v2702, %v2669
        %v2735 = vadd.f32 %v2703, %v2670
        %v2736 = vadd.f32 %v2704, %v2671
        %v2737 = vadd.f32 %v2705, %v2672
        %v2738 = vadd.f32 %v2706, %v2673
        %v2739 = vadd.f32 %v2707, %v2674
        %v2740 = vadd.f32 %v2708, %v2675
        %v2741 = vadd.f32 %v2709, %v2676
        %v2742 = vadd.f32 %v2710, %v2677
        %v2743 = vadd.f32 %v2711, %v2678
        %v2744 = vadd.f32 %v2712, %v2679
        %v2745 = vadd.f32 %v2713, %v2680
        %2746 = vst.msk [vmem:[%s2681 + $0x2] sm:$0xff] %vm723, %v2714
        %2747 = vst.msk [vmem:[%s2681 + $0xa] sm:$0xff] %vm723, %v2715
        %2748 = vst.msk [vmem:[%s2681 + $0x1a] sm:$0xff] %vm723, %v2716
        %2749 = vst.msk [vmem:[%s2681 + $0x22] sm:$0xff] %vm723, %v2717
        %2750 = vst.msk [vmem:[%s2681 + $0x32] sm:$0xff] %vm723, %v2718
        %2751 = vst.msk [vmem:[%s2681 + $0x3a] sm:$0xff] %vm723, %v2719
        %2752 = vst.msk [vmem:[%s2681 + $0x4a] sm:$0xff] %vm723, %v2720
        %2753 = vst.msk [vmem:[%s2681 + $0x52] sm:$0xff] %vm723, %v2721
        %2754 = vst.msk [vmem:[%s2681 + $0x62] sm:$0xff] %vm723, %v2722
        %2755 = vst.msk [vmem:[%s2681 + $0x6a] sm:$0xff] %vm723, %v2723
        %2756 = vst.msk [vmem:[%s2681 + $0x7a] sm:$0xff] %vm723, %v2724
        %2757 = vst.msk [vmem:[%s2681 + $0x82] sm:$0xff] %vm723, %v2725
        %2758 = vst.msk [vmem:[%s2681 + $0x92] sm:$0xff] %vm723, %v2726
        %2759 = vst.msk [vmem:[%s2681 + $0x9a] sm:$0xff] %vm723, %v2727
        %2760 = vst.msk [vmem:[%s2681 + $0xaa] sm:$0xff] %vm723, %v2728
        %2761 = vst.msk [vmem:[%s2681 + $0xb2] sm:$0xff] %vm723, %v2729
        %2762 = vst.msk [vmem:[%s2681 + $0xc2] sm:$0xff] %vm723, %v2730
        %2763 = vst.msk [vmem:[%s2681 + $0xca] sm:$0xff] %vm723, %v2731
        %2764 = vst.msk [vmem:[%s2681 + $0xda] sm:$0xff] %vm723, %v2732
        %2765 = vst.msk [vmem:[%s2681 + $0xe2] sm:$0xff] %vm723, %v2733
        %2766 = vst.msk [vmem:[%s2681 + $0xf2] sm:$0xff] %vm723, %v2734
        %2767 = vst.msk [vmem:[%s2681 + $0xfa] sm:$0xff] %vm723, %v2735
        %2768 = vst.msk [vmem:[%s2681 + $0x10a] sm:$0xff] %vm723, %v2736
        %2769 = vst.msk [vmem:[%s2681 + $0x112] sm:$0xff] %vm723, %v2737
        %2770 = vst.msk [vmem:[%s2681 + $0x122] sm:$0xff] %vm723, %v2738
        %2771 = vst.msk [vmem:[%s2681 + $0x12a] sm:$0xff] %vm723, %v2739
        %2772 = vst.msk [vmem:[%s2681 + $0x13a] sm:$0xff] %vm723, %v2740
        %2773 = vst.msk [vmem:[%s2681 + $0x142] sm:$0xff] %vm723, %v2741
        %2774 = vst.msk [vmem:[%s2681 + $0x152] sm:$0xff] %vm723, %v2742
        %2775 = vst.msk [vmem:[%s2681 + $0x15a] sm:$0xff] %vm723, %v2743
        %2776 = vst.msk [vmem:[%s2681 + $0x16a] sm:$0xff] %vm723, %v2744
        %2777 = vst.msk [vmem:[%s2681 + $0x172] sm:$0xff] %vm723, %v2745
        %v2778 = vld [vmem:[#allocation4] sm:$0xff]
        %v2779 = vld [vmem:[#allocation4 + $0x28] sm:$0xff]
        %v2780 = vld [vmem:[#allocation4 + $0x50] sm:$0xff]
        %v2781 = vld [vmem:[#allocation4 + $0x78] sm:$0xff]
        %v2782 = vld [vmem:[#allocation4 + $0xa0] sm:$0xff]
        %v2783 = vld [vmem:[#allocation4 + $0xc8] sm:$0xff]
        %v2784 = vld [vmem:[#allocation4 + $0xf0] sm:$0xff]
        %v2785 = vld [vmem:[#allocation4 + $0x118] sm:$0xff]
        %v2786 = vld [vmem:[#allocation4 + $0x140] sm:$0xff]
        %v2787 = vld [vmem:[#allocation4 + $0x168] sm:$0xff]
        %v2788 = vld [vmem:[#allocation4 + $0x190] sm:$0xff]
        %v2789 = vld [vmem:[#allocation4 + $0x1b8] sm:$0xff]
        %v2790 = vld [vmem:[#allocation4 + $0x1e0] sm:$0xff]
        %v2791 = vld [vmem:[#allocation4 + $0x208] sm:$0xff]
        %v2792 = vld [vmem:[#allocation4 + $0x230] sm:$0xff]
        %v2793 = vld [vmem:[#allocation4 + $0x258] sm:$0xff]
        %v2794 = vld [vmem:[#allocation4 + $0x280] sm:$0xff]
        %v2795 = vld [vmem:[#allocation4 + $0x2a8] sm:$0xff]
        %v2796 = vld [vmem:[#allocation4 + $0x2d0] sm:$0xff]
        %v2797 = vld [vmem:[#allocation4 + $0x2f8] sm:$0xff]
        %v2798 = vld [vmem:[#allocation4 + $0x320] sm:$0xff]
        %v2799 = vld [vmem:[#allocation4 + $0x348] sm:$0xff]
        %v2800 = vld [vmem:[#allocation4 + $0x370] sm:$0xff]
        %v2801 = vld [vmem:[#allocation4 + $0x398] sm:$0xff]
        %v2802 = vld [vmem:[#allocation4 + $0x3c0] sm:$0xff]
        %v2803 = vld [vmem:[#allocation4 + $0x3e8] sm:$0xff]
        %v2804 = vld [vmem:[#allocation4 + $0x410] sm:$0xff]
        %v2805 = vld [vmem:[#allocation4 + $0x438] sm:$0xff]
        %v2806 = vld [vmem:[#allocation4 + $0x460] sm:$0xff]
        %v2807 = vld [vmem:[#allocation4 + $0x488] sm:$0xff]
        %v2808 = vld [vmem:[#allocation4 + $0x4b0] sm:$0xff]
        %v2809 = vld [vmem:[#allocation4 + $0x4d8] sm:$0xff]
        %v2810 = vld [vmem:[%s2681 + $0x1] sm:$0xff]
        %v2811 = vld [vmem:[%s2681 + $0x9] sm:$0xff]
        %v2812 = vld [vmem:[%s2681 + $0x19] sm:$0xff]
        %v2813 = vld [vmem:[%s2681 + $0x21] sm:$0xff]
        %v2814 = vld [vmem:[%s2681 + $0x31] sm:$0xff]
        %v2815 = vld [vmem:[%s2681 + $0x39] sm:$0xff]
        %v2816 = vld [vmem:[%s2681 + $0x49] sm:$0xff]
        %v2817 = vld [vmem:[%s2681 + $0x51] sm:$0xff]
        %v2818 = vld [vmem:[%s2681 + $0x61] sm:$0xff]
        %v2819 = vld [vmem:[%s2681 + $0x69] sm:$0xff]
        %v2820 = vld [vmem:[%s2681 + $0x79] sm:$0xff]
        %v2821 = vld [vmem:[%s2681 + $0x81] sm:$0xff]
        %v2822 = vld [vmem:[%s2681 + $0x91] sm:$0xff]
        %v2823 = vld [vmem:[%s2681 + $0x99] sm:$0xff]
        %v2824 = vld [vmem:[%s2681 + $0xa9] sm:$0xff]
        %v2825 = vld [vmem:[%s2681 + $0xb1] sm:$0xff]
        %v2826 = vld [vmem:[%s2681 + $0xc1] sm:$0xff]
        %v2827 = vld [vmem:[%s2681 + $0xc9] sm:$0xff]
        %v2828 = vld [vmem:[%s2681 + $0xd9] sm:$0xff]
        %v2829 = vld [vmem:[%s2681 + $0xe1] sm:$0xff]
        %v2830 = vld [vmem:[%s2681 + $0xf1] sm:$0xff]
        %v2831 = vld [vmem:[%s2681 + $0xf9] sm:$0xff]
        %v2832 = vld [vmem:[%s2681 + $0x109] sm:$0xff]
        %v2833 = vld [vmem:[%s2681 + $0x111] sm:$0xff]
        %v2834 = vld [vmem:[%s2681 + $0x121] sm:$0xff]
        %v2835 = vld [vmem:[%s2681 + $0x129] sm:$0xff]
        %v2836 = vld [vmem:[%s2681 + $0x139] sm:$0xff]
        %v2837 = vld [vmem:[%s2681 + $0x141] sm:$0xff]
        %v2838 = vld [vmem:[%s2681 + $0x151] sm:$0xff]
        %v2839 = vld [vmem:[%s2681 + $0x159] sm:$0xff]
        %v2840 = vld [vmem:[%s2681 + $0x169] sm:$0xff]
        %v2841 = vld [vmem:[%s2681 + $0x171] sm:$0xff]
        %2874 = vrot.lane.b32.xlu0 %v2778, 64
        %v2875 = vpop.permute.xlu0 %2874
        %2876 = vrot.lane.b32.xlu0 %v2779, 64
        %v2877 = vpop.permute.xlu0 %2876
        %2878 = vrot.lane.b32.xlu0 %v2780, 64
        %v2879 = vpop.permute.xlu0 %2878
        %2880 = vrot.lane.b32.xlu0 %v2781, 64
        %v2881 = vpop.permute.xlu0 %2880
        %2882 = vrot.lane.b32.xlu0 %v2782, 64
        %v2883 = vpop.permute.xlu0 %2882
        %2884 = vrot.lane.b32.xlu0 %v2783, 64
        %v2885 = vpop.permute.xlu0 %2884
        %2886 = vrot.lane.b32.xlu0 %v2784, 64
        %v2887 = vpop.permute.xlu0 %2886
        %2888 = vrot.lane.b32.xlu0 %v2785, 64
        %v2889 = vpop.permute.xlu0 %2888
        %2890 = vrot.lane.b32.xlu0 %v2786, 64
        %v2891 = vpop.permute.xlu0 %2890
        %2892 = vrot.lane.b32.xlu0 %v2787, 64
        %v2893 = vpop.permute.xlu0 %2892
        %2894 = vrot.lane.b32.xlu0 %v2788, 64
        %v2895 = vpop.permute.xlu0 %2894
        %2896 = vrot.lane.b32.xlu0 %v2789, 64
        %v2897 = vpop.permute.xlu0 %2896
        %2898 = vrot.lane.b32.xlu0 %v2790, 64
        %v2899 = vpop.permute.xlu0 %2898
        %2900 = vrot.lane.b32.xlu0 %v2791, 64
        %v2901 = vpop.permute.xlu0 %2900
        %2902 = vrot.lane.b32.xlu0 %v2792, 64
        %v2903 = vpop.permute.xlu0 %2902
        %2904 = vrot.lane.b32.xlu0 %v2793, 64
        %v2905 = vpop.permute.xlu0 %2904
        %2906 = vrot.lane.b32.xlu0 %v2794, 64
        %v2907 = vpop.permute.xlu0 %2906
        %2908 = vrot.lane.b32.xlu0 %v2795, 64
        %v2909 = vpop.permute.xlu0 %2908
        %2910 = vrot.lane.b32.xlu0 %v2796, 64
        %v2911 = vpop.permute.xlu0 %2910
        %2912 = vrot.lane.b32.xlu0 %v2797, 64
        %v2913 = vpop.permute.xlu0 %2912
        %2914 = vrot.lane.b32.xlu0 %v2798, 64
        %v2915 = vpop.permute.xlu0 %2914
        %2916 = vrot.lane.b32.xlu0 %v2799, 64
        %v2917 = vpop.permute.xlu0 %2916
        %2918 = vrot.lane.b32.xlu0 %v2800, 64
        %v2919 = vpop.permute.xlu0 %2918
        %2920 = vrot.lane.b32.xlu0 %v2801, 64
        %v2921 = vpop.permute.xlu0 %2920
        %2922 = vrot.lane.b32.xlu0 %v2802, 64
        %v2923 = vpop.permute.xlu0 %2922
        %2924 = vrot.lane.b32.xlu0 %v2803, 64
        %v2925 = vpop.permute.xlu0 %2924
        %2926 = vrot.lane.b32.xlu0 %v2804, 64
        %v2927 = vpop.permute.xlu0 %2926
        %2928 = vrot.lane.b32.xlu0 %v2805, 64
        %v2929 = vpop.permute.xlu0 %2928
        %2930 = vrot.lane.b32.xlu0 %v2806, 64
        %v2931 = vpop.permute.xlu0 %2930
        %2932 = vrot.lane.b32.xlu0 %v2807, 64
        %v2933 = vpop.permute.xlu0 %2932
        %2934 = vrot.lane.b32.xlu0 %v2808, 64
        %v2935 = vpop.permute.xlu0 %2934
        %2936 = vrot.lane.b32.xlu0 %v2809, 64
        %v2937 = vpop.permute.xlu0 %2936
        %v2970 = vadd.f32 %v2810, %v2875
        %v2971 = vadd.f32 %v2811, %v2877
        %v2972 = vadd.f32 %v2812, %v2879
        %v2973 = vadd.f32 %v2813, %v2881
        %v2974 = vadd.f32 %v2814, %v2883
        %v2975 = vadd.f32 %v2815, %v2885
        %v2976 = vadd.f32 %v2816, %v2887
        %v2977 = vadd.f32 %v2817, %v2889
        %v2978 = vadd.f32 %v2818, %v2891
        %v2979 = vadd.f32 %v2819, %v2893
        %v2980 = vadd.f32 %v2820, %v2895
        %v2981 = vadd.f32 %v2821, %v2897
        %v2982 = vadd.f32 %v2822, %v2899
        %v2983 = vadd.f32 %v2823, %v2901
        %v2984 = vadd.f32 %v2824, %v2903
        %v2985 = vadd.f32 %v2825, %v2905
        %v2986 = vadd.f32 %v2826, %v2907
        %v2987 = vadd.f32 %v2827, %v2909
        %v2988 = vadd.f32 %v2828, %v2911
        %v2989 = vadd.f32 %v2829, %v2913
        %v2990 = vadd.f32 %v2830, %v2915
        %v2991 = vadd.f32 %v2831, %v2917
        %v2992 = vadd.f32 %v2832, %v2919
        %v2993 = vadd.f32 %v2833, %v2921
        %v2994 = vadd.f32 %v2834, %v2923
        %v2995 = vadd.f32 %v2835, %v2925
        %v2996 = vadd.f32 %v2836, %v2927
        %v2997 = vadd.f32 %v2837, %v2929
        %v2998 = vadd.f32 %v2838, %v2931
        %v2999 = vadd.f32 %v2839, %v2933
        %v3000 = vadd.f32 %v2840, %v2935
        %v3001 = vadd.f32 %v2841, %v2937
        %3002 = vst.msk [vmem:[%s2681 + $0x1] sm:$0xff] %vm723, %v2970
        %3003 = vst.msk [vmem:[%s2681 + $0x9] sm:$0xff] %vm723, %v2971
        %3004 = vst.msk [vmem:[%s2681 + $0x19] sm:$0xff] %vm723, %v2972
        %3005 = vst.msk [vmem:[%s2681 + $0x21] sm:$0xff] %vm723, %v2973
        %3006 = vst.msk [vmem:[%s2681 + $0x31] sm:$0xff] %vm723, %v2974
        %3007 = vst.msk [vmem:[%s2681 + $0x39] sm:$0xff] %vm723, %v2975
        %3008 = vst.msk [vmem:[%s2681 + $0x49] sm:$0xff] %vm723, %v2976
        %3009 = vst.msk [vmem:[%s2681 + $0x51] sm:$0xff] %vm723, %v2977
        %3010 = vst.msk [vmem:[%s2681 + $0x61] sm:$0xff] %vm723, %v2978
        %3011 = vst.msk [vmem:[%s2681 + $0x69] sm:$0xff] %vm723, %v2979
        %3012 = vst.msk [vmem:[%s2681 + $0x79] sm:$0xff] %vm723, %v2980
        %3013 = vst.msk [vmem:[%s2681 + $0x81] sm:$0xff] %vm723, %v2981
        %3014 = vst.msk [vmem:[%s2681 + $0x91] sm:$0xff] %vm723, %v2982
        %3015 = vst.msk [vmem:[%s2681 + $0x99] sm:$0xff] %vm723, %v2983
        %3016 = vst.msk [vmem:[%s2681 + $0xa9] sm:$0xff] %vm723, %v2984
        %3017 = vst.msk [vmem:[%s2681 + $0xb1] sm:$0xff] %vm723, %v2985
        %3018 = vst.msk [vmem:[%s2681 + $0xc1] sm:$0xff] %vm723, %v2986
        %3019 = vst.msk [vmem:[%s2681 + $0xc9] sm:$0xff] %vm723, %v2987
        %3020 = vst.msk [vmem:[%s2681 + $0xd9] sm:$0xff] %vm723, %v2988
        %3021 = vst.msk [vmem:[%s2681 + $0xe1] sm:$0xff] %vm723, %v2989
        %3022 = vst.msk [vmem:[%s2681 + $0xf1] sm:$0xff] %vm723, %v2990
        %3023 = vst.msk [vmem:[%s2681 + $0xf9] sm:$0xff] %vm723, %v2991
        %3024 = vst.msk [vmem:[%s2681 + $0x109] sm:$0xff] %vm723, %v2992
        %3025 = vst.msk [vmem:[%s2681 + $0x111] sm:$0xff] %vm723, %v2993
        %3026 = vst.msk [vmem:[%s2681 + $0x121] sm:$0xff] %vm723, %v2994
        %3027 = vst.msk [vmem:[%s2681 + $0x129] sm:$0xff] %vm723, %v2995
        %3028 = vst.msk [vmem:[%s2681 + $0x139] sm:$0xff] %vm723, %v2996
        %3029 = vst.msk [vmem:[%s2681 + $0x141] sm:$0xff] %vm723, %v2997
        %3030 = vst.msk [vmem:[%s2681 + $0x151] sm:$0xff] %vm723, %v2998
        %3031 = vst.msk [vmem:[%s2681 + $0x159] sm:$0xff] %vm723, %v2999
        %3032 = vst.msk [vmem:[%s2681 + $0x169] sm:$0xff] %vm723, %v3000
        %3033 = vst.msk [vmem:[%s2681 + $0x171] sm:$0xff] %vm723, %v3001
        %v3034 = vld [vmem:[#allocation4 + $0x8] sm:$0xff]
        %v3035 = vld [vmem:[#allocation4 + $0x30] sm:$0xff]
        %v3036 = vld [vmem:[#allocation4 + $0x58] sm:$0xff]
        %v3037 = vld [vmem:[#allocation4 + $0x80] sm:$0xff]
        %v3038 = vld [vmem:[#allocation4 + $0xa8] sm:$0xff]
        %v3039 = vld [vmem:[#allocation4 + $0xd0] sm:$0xff]
        %v3040 = vld [vmem:[#allocation4 + $0xf8] sm:$0xff]
        %v3041 = vld [vmem:[#allocation4 + $0x120] sm:$0xff]
        %v3042 = vld [vmem:[#allocation4 + $0x148] sm:$0xff]
        %v3043 = vld [vmem:[#allocation4 + $0x170] sm:$0xff]
        %v3044 = vld [vmem:[#allocation4 + $0x198] sm:$0xff]
        %v3045 = vld [vmem:[#allocation4 + $0x1c0] sm:$0xff]
        %v3046 = vld [vmem:[#allocation4 + $0x1e8] sm:$0xff]
        %v3047 = vld [vmem:[#allocation4 + $0x210] sm:$0xff]
        %v3048 = vld [vmem:[#allocation4 + $0x238] sm:$0xff]
        %v3049 = vld [vmem:[#allocation4 + $0x260] sm:$0xff]
        %v3050 = vld [vmem:[#allocation4 + $0x288] sm:$0xff]
        %v3051 = vld [vmem:[#allocation4 + $0x2b0] sm:$0xff]
        %v3052 = vld [vmem:[#allocation4 + $0x2d8] sm:$0xff]
        %v3053 = vld [vmem:[#allocation4 + $0x300] sm:$0xff]
        %v3054 = vld [vmem:[#allocation4 + $0x328] sm:$0xff]
        %v3055 = vld [vmem:[#allocation4 + $0x350] sm:$0xff]
        %v3056 = vld [vmem:[#allocation4 + $0x378] sm:$0xff]
        %v3057 = vld [vmem:[#allocation4 + $0x3a0] sm:$0xff]
        %v3058 = vld [vmem:[#allocation4 + $0x3c8] sm:$0xff]
        %v3059 = vld [vmem:[#allocation4 + $0x3f0] sm:$0xff]
        %v3060 = vld [vmem:[#allocation4 + $0x418] sm:$0xff]
        %v3061 = vld [vmem:[#allocation4 + $0x440] sm:$0xff]
        %v3062 = vld [vmem:[#allocation4 + $0x468] sm:$0xff]
        %v3063 = vld [vmem:[#allocation4 + $0x490] sm:$0xff]
        %v3064 = vld [vmem:[#allocation4 + $0x4b8] sm:$0xff]
        %v3065 = vld [vmem:[#allocation4 + $0x4e0] sm:$0xff]
        %v3066 = vld [vmem:[%s2681] sm:$0xff]
        %v3067 = vld [vmem:[%s2681 + $0x8] sm:$0xff]
        %v3068 = vld [vmem:[%s2681 + $0x18] sm:$0xff]
        %v3069 = vld [vmem:[%s2681 + $0x20] sm:$0xff]
        %v3070 = vld [vmem:[%s2681 + $0x30] sm:$0xff]
        %v3071 = vld [vmem:[%s2681 + $0x38] sm:$0xff]
        %v3072 = vld [vmem:[%s2681 + $0x48] sm:$0xff]
        %v3073 = vld [vmem:[%s2681 + $0x50] sm:$0xff]
        %v3074 = vld [vmem:[%s2681 + $0x60] sm:$0xff]
        %v3075 = vld [vmem:[%s2681 + $0x68] sm:$0xff]
        %v3076 = vld [vmem:[%s2681 + $0x78] sm:$0xff]
        %v3077 = vld [vmem:[%s2681 + $0x80] sm:$0xff]
        %v3078 = vld [vmem:[%s2681 + $0x90] sm:$0xff]
        %v3079 = vld [vmem:[%s2681 + $0x98] sm:$0xff]
        %v3080 = vld [vmem:[%s2681 + $0xa8] sm:$0xff]
        %v3081 = vld [vmem:[%s2681 + $0xb0] sm:$0xff]
        %v3082 = vld [vmem:[%s2681 + $0xc0] sm:$0xff]
        %v3083 = vld [vmem:[%s2681 + $0xc8] sm:$0xff]
        %v3084 = vld [vmem:[%s2681 + $0xd8] sm:$0xff]
        %v3085 = vld [vmem:[%s2681 + $0xe0] sm:$0xff]
        %v3086 = vld [vmem:[%s2681 + $0xf0] sm:$0xff]
        %v3087 = vld [vmem:[%s2681 + $0xf8] sm:$0xff]
        %v3088 = vld [vmem:[%s2681 + $0x108] sm:$0xff]
        %v3089 = vld [vmem:[%s2681 + $0x110] sm:$0xff]
        %v3090 = vld [vmem:[%s2681 + $0x120] sm:$0xff]
        %v3091 = vld [vmem:[%s2681 + $0x128] sm:$0xff]
        %v3092 = vld [vmem:[%s2681 + $0x138] sm:$0xff]
        %v3093 = vld [vmem:[%s2681 + $0x140] sm:$0xff]
        %v3094 = vld [vmem:[%s2681 + $0x150] sm:$0xff]
        %v3095 = vld [vmem:[%s2681 + $0x158] sm:$0xff]
        %v3096 = vld [vmem:[%s2681 + $0x168] sm:$0xff]
        %v3097 = vld [vmem:[%s2681 + $0x170] sm:$0xff]
        %v3098 = vadd.f32 %v3066, %v3034
        %v3099 = vadd.f32 %v3067, %v3035
        %v3100 = vadd.f32 %v3068, %v3036
        %v3101 = vadd.f32 %v3069, %v3037
        %v3102 = vadd.f32 %v3070, %v3038
        %v3103 = vadd.f32 %v3071, %v3039
        %v3104 = vadd.f32 %v3072, %v3040
        %v3105 = vadd.f32 %v3073, %v3041
        %v3106 = vadd.f32 %v3074, %v3042
        %v3107 = vadd.f32 %v3075, %v3043
        %v3108 = vadd.f32 %v3076, %v3044
        %v3109 = vadd.f32 %v3077, %v3045
        %v3110 = vadd.f32 %v3078, %v3046
        %v3111 = vadd.f32 %v3079, %v3047
        %v3112 = vadd.f32 %v3080, %v3048
        %v3113 = vadd.f32 %v3081, %v3049
        %v3114 = vadd.f32 %v3082, %v3050
        %v3115 = vadd.f32 %v3083, %v3051
        %v3116 = vadd.f32 %v3084, %v3052
        %v3117 = vadd.f32 %v3085, %v3053
        %v3118 = vadd.f32 %v3086, %v3054
        %v3119 = vadd.f32 %v3087, %v3055
        %v3120 = vadd.f32 %v3088, %v3056
        %v3121 = vadd.f32 %v3089, %v3057
        %v3122 = vadd.f32 %v3090, %v3058
        %v3123 = vadd.f32 %v3091, %v3059
        %v3124 = vadd.f32 %v3092, %v3060
        %v3125 = vadd.f32 %v3093, %v3061
        %v3126 = vadd.f32 %v3094, %v3062
        %v3127 = vadd.f32 %v3095, %v3063
        %v3128 = vadd.f32 %v3096, %v3064
        %v3129 = vadd.f32 %v3097, %v3065
        %3130 = vst.msk [vmem:[%s2681] sm:$0xff] %vm723, %v3098
        %3131 = vst.msk [vmem:[%s2681 + $0x8] sm:$0xff] %vm723, %v3099
        %3132 = vst.msk [vmem:[%s2681 + $0x18] sm:$0xff] %vm723, %v3100
        %3133 = vst.msk [vmem:[%s2681 + $0x20] sm:$0xff] %vm723, %v3101
        %3134 = vst.msk [vmem:[%s2681 + $0x30] sm:$0xff] %vm723, %v3102
        %3135 = vst.msk [vmem:[%s2681 + $0x38] sm:$0xff] %vm723, %v3103
        %3136 = vst.msk [vmem:[%s2681 + $0x48] sm:$0xff] %vm723, %v3104
        %3137 = vst.msk [vmem:[%s2681 + $0x50] sm:$0xff] %vm723, %v3105
        %3138 = vst.msk [vmem:[%s2681 + $0x60] sm:$0xff] %vm723, %v3106
        %3139 = vst.msk [vmem:[%s2681 + $0x68] sm:$0xff] %vm723, %v3107
        %3140 = vst.msk [vmem:[%s2681 + $0x78] sm:$0xff] %vm723, %v3108
        %3141 = vst.msk [vmem:[%s2681 + $0x80] sm:$0xff] %vm723, %v3109
        %3142 = vst.msk [vmem:[%s2681 + $0x90] sm:$0xff] %vm723, %v3110
        %3143 = vst.msk [vmem:[%s2681 + $0x98] sm:$0xff] %vm723, %v3111
        %3144 = vst.msk [vmem:[%s2681 + $0xa8] sm:$0xff] %vm723, %v3112
        %3145 = vst.msk [vmem:[%s2681 + $0xb0] sm:$0xff] %vm723, %v3113
        %3146 = vst.msk [vmem:[%s2681 + $0xc0] sm:$0xff] %vm723, %v3114
        %3147 = vst.msk [vmem:[%s2681 + $0xc8] sm:$0xff] %vm723, %v3115
        %3148 = vst.msk [vmem:[%s2681 + $0xd8] sm:$0xff] %vm723, %v3116
        %3149 = vst.msk [vmem:[%s2681 + $0xe0] sm:$0xff] %vm723, %v3117
        %3150 = vst.msk [vmem:[%s2681 + $0xf0] sm:$0xff] %vm723, %v3118
        %3151 = vst.msk [vmem:[%s2681 + $0xf8] sm:$0xff] %vm723, %v3119
        %3152 = vst.msk [vmem:[%s2681 + $0x108] sm:$0xff] %vm723, %v3120
        %3153 = vst.msk [vmem:[%s2681 + $0x110] sm:$0xff] %vm723, %v3121
        %3154 = vst.msk [vmem:[%s2681 + $0x120] sm:$0xff] %vm723, %v3122
        %3155 = vst.msk [vmem:[%s2681 + $0x128] sm:$0xff] %vm723, %v3123
        %3156 = vst.msk [vmem:[%s2681 + $0x138] sm:$0xff] %vm723, %v3124
        %3157 = vst.msk [vmem:[%s2681 + $0x140] sm:$0xff] %vm723, %v3125
        %3158 = vst.msk [vmem:[%s2681 + $0x150] sm:$0xff] %vm723, %v3126
        %3159 = vst.msk [vmem:[%s2681 + $0x158] sm:$0xff] %vm723, %v3127
        %3160 = vst.msk [vmem:[%s2681 + $0x168] sm:$0xff] %vm723, %v3128
        %3161 = vst.msk [vmem:[%s2681 + $0x170] sm:$0xff] %vm723, %v3129
        %v3162 = vld [vmem:[#allocation4 + $0x8] sm:$0xff]
        %v3163 = vld [vmem:[#allocation4 + $0x30] sm:$0xff]
        %v3164 = vld [vmem:[#allocation4 + $0x58] sm:$0xff]
        %v3165 = vld [vmem:[#allocation4 + $0x80] sm:$0xff]
        %v3166 = vld [vmem:[#allocation4 + $0xa8] sm:$0xff]
        %v3167 = vld [vmem:[#allocation4 + $0xd0] sm:$0xff]
        %v3168 = vld [vmem:[#allocation4 + $0xf8] sm:$0xff]
        %v3169 = vld [vmem:[#allocation4 + $0x120] sm:$0xff]
        %v3170 = vld [vmem:[#allocation4 + $0x148] sm:$0xff]
        %v3171 = vld [vmem:[#allocation4 + $0x170] sm:$0xff]
        %v3172 = vld [vmem:[#allocation4 + $0x198] sm:$0xff]
        %v3173 = vld [vmem:[#allocation4 + $0x1c0] sm:$0xff]
        %v3174 = vld [vmem:[#allocation4 + $0x1e8] sm:$0xff]
        %v3175 = vld [vmem:[#allocation4 + $0x210] sm:$0xff]
        %v3176 = vld [vmem:[#allocation4 + $0x238] sm:$0xff]
        %v3177 = vld [vmem:[#allocation4 + $0x260] sm:$0xff]
        %v3178 = vld [vmem:[#allocation4 + $0x288] sm:$0xff]
        %v3179 = vld [vmem:[#allocation4 + $0x2b0] sm:$0xff]
        %v3180 = vld [vmem:[#allocation4 + $0x2d8] sm:$0xff]
        %v3181 = vld [vmem:[#allocation4 + $0x300] sm:$0xff]
        %v3182 = vld [vmem:[#allocation4 + $0x328] sm:$0xff]
        %v3183 = vld [vmem:[#allocation4 + $0x350] sm:$0xff]
        %v3184 = vld [vmem:[#allocation4 + $0x378] sm:$0xff]
        %v3185 = vld [vmem:[#allocation4 + $0x3a0] sm:$0xff]
        %v3186 = vld [vmem:[#allocation4 + $0x3c8] sm:$0xff]
        %v3187 = vld [vmem:[#allocation4 + $0x3f0] sm:$0xff]
        %v3188 = vld [vmem:[#allocation4 + $0x418] sm:$0xff]
        %v3189 = vld [vmem:[#allocation4 + $0x440] sm:$0xff]
        %v3190 = vld [vmem:[#allocation4 + $0x468] sm:$0xff]
        %v3191 = vld [vmem:[#allocation4 + $0x490] sm:$0xff]
        %v3192 = vld [vmem:[#allocation4 + $0x4b8] sm:$0xff]
        %v3193 = vld [vmem:[#allocation4 + $0x4e0] sm:$0xff]
        %s3194 = scalar_lea.vmem [#allocation5], 24
        %v3195 = vld [vmem:[%s3194 + $0x2] sm:$0xff]
        %v3196 = vld [vmem:[%s3194 + $0xa] sm:$0xff]
        %v3197 = vld [vmem:[%s3194 + $0x1a] sm:$0xff]
        %v3198 = vld [vmem:[%s3194 + $0x22] sm:$0xff]
        %v3199 = vld [vmem:[%s3194 + $0x32] sm:$0xff]
        %v3200 = vld [vmem:[%s3194 + $0x3a] sm:$0xff]
        %v3201 = vld [vmem:[%s3194 + $0x4a] sm:$0xff]
        %v3202 = vld [vmem:[%s3194 + $0x52] sm:$0xff]
        %v3203 = vld [vmem:[%s3194 + $0x62] sm:$0xff]
        %v3204 = vld [vmem:[%s3194 + $0x6a] sm:$0xff]
        %v3205 = vld [vmem:[%s3194 + $0x7a] sm:$0xff]
        %v3206 = vld [vmem:[%s3194 + $0x82] sm:$0xff]
        %v3207 = vld [vmem:[%s3194 + $0x92] sm:$0xff]
        %v3208 = vld [vmem:[%s3194 + $0x9a] sm:$0xff]
        %v3209 = vld [vmem:[%s3194 + $0xaa] sm:$0xff]
        %v3210 = vld [vmem:[%s3194 + $0xb2] sm:$0xff]
        %v3211 = vld [vmem:[%s3194 + $0xc2] sm:$0xff]
        %v3212 = vld [vmem:[%s3194 + $0xca] sm:$0xff]
        %v3213 = vld [vmem:[%s3194 + $0xda] sm:$0xff]
        %v3214 = vld [vmem:[%s3194 + $0xe2] sm:$0xff]
        %v3215 = vld [vmem:[%s3194 + $0xf2] sm:$0xff]
        %v3216 = vld [vmem:[%s3194 + $0xfa] sm:$0xff]
        %v3217 = vld [vmem:[%s3194 + $0x10a] sm:$0xff]
        %v3218 = vld [vmem:[%s3194 + $0x112] sm:$0xff]
        %v3219 = vld [vmem:[%s3194 + $0x122] sm:$0xff]
        %v3220 = vld [vmem:[%s3194 + $0x12a] sm:$0xff]
        %v3221 = vld [vmem:[%s3194 + $0x13a] sm:$0xff]
        %v3222 = vld [vmem:[%s3194 + $0x142] sm:$0xff]
        %v3223 = vld [vmem:[%s3194 + $0x152] sm:$0xff]
        %v3224 = vld [vmem:[%s3194 + $0x15a] sm:$0xff]
        %v3225 = vld [vmem:[%s3194 + $0x16a] sm:$0xff]
        %v3226 = vld [vmem:[%s3194 + $0x172] sm:$0xff]
        %3259 = vrot.lane.b32.xlu0 %v3162, 64
        %v3260 = vpop.permute.xlu0 %3259
        %3261 = vrot.lane.b32.xlu0 %v3163, 64
        %v3262 = vpop.permute.xlu0 %3261
        %3263 = vrot.lane.b32.xlu0 %v3164, 64
        %v3264 = vpop.permute.xlu0 %3263
        %3265 = vrot.lane.b32.xlu0 %v3165, 64
        %v3266 = vpop.permute.xlu0 %3265
        %3267 = vrot.lane.b32.xlu0 %v3166, 64
        %v3268 = vpop.permute.xlu0 %3267
        %3269 = vrot.lane.b32.xlu0 %v3167, 64
        %v3270 = vpop.permute.xlu0 %3269
        %3271 = vrot.lane.b32.xlu0 %v3168, 64
        %v3272 = vpop.permute.xlu0 %3271
        %3273 = vrot.lane.b32.xlu0 %v3169, 64
        %v3274 = vpop.permute.xlu0 %3273
        %3275 = vrot.lane.b32.xlu0 %v3170, 64
        %v3276 = vpop.permute.xlu0 %3275
        %3277 = vrot.lane.b32.xlu0 %v3171, 64
        %v3278 = vpop.permute.xlu0 %3277
        %3279 = vrot.lane.b32.xlu0 %v3172, 64
        %v3280 = vpop.permute.xlu0 %3279
        %3281 = vrot.lane.b32.xlu0 %v3173, 64
        %v3282 = vpop.permute.xlu0 %3281
        %3283 = vrot.lane.b32.xlu0 %v3174, 64
        %v3284 = vpop.permute.xlu0 %3283
        %3285 = vrot.lane.b32.xlu0 %v3175, 64
        %v3286 = vpop.permute.xlu0 %3285
        %3287 = vrot.lane.b32.xlu0 %v3176, 64
        %v3288 = vpop.permute.xlu0 %3287
        %3289 = vrot.lane.b32.xlu0 %v3177, 64
        %v3290 = vpop.permute.xlu0 %3289
        %3291 = vrot.lane.b32.xlu0 %v3178, 64
        %v3292 = vpop.permute.xlu0 %3291
        %3293 = vrot.lane.b32.xlu0 %v3179, 64
        %v3294 = vpop.permute.xlu0 %3293
        %3295 = vrot.lane.b32.xlu0 %v3180, 64
        %v3296 = vpop.permute.xlu0 %3295
        %3297 = vrot.lane.b32.xlu0 %v3181, 64
        %v3298 = vpop.permute.xlu0 %3297
        %3299 = vrot.lane.b32.xlu0 %v3182, 64
        %v3300 = vpop.permute.xlu0 %3299
        %3301 = vrot.lane.b32.xlu0 %v3183, 64
        %v3302 = vpop.permute.xlu0 %3301
        %3303 = vrot.lane.b32.xlu0 %v3184, 64
        %v3304 = vpop.permute.xlu0 %3303
        %3305 = vrot.lane.b32.xlu0 %v3185, 64
        %v3306 = vpop.permute.xlu0 %3305
        %3307 = vrot.lane.b32.xlu0 %v3186, 64
        %v3308 = vpop.permute.xlu0 %3307
        %3309 = vrot.lane.b32.xlu0 %v3187, 64
        %v3310 = vpop.permute.xlu0 %3309
        %3311 = vrot.lane.b32.xlu0 %v3188, 64
        %v3312 = vpop.permute.xlu0 %3311
        %3313 = vrot.lane.b32.xlu0 %v3189, 64
        %v3314 = vpop.permute.xlu0 %3313
        %3315 = vrot.lane.b32.xlu0 %v3190, 64
        %v3316 = vpop.permute.xlu0 %3315
        %3317 = vrot.lane.b32.xlu0 %v3191, 64
        %v3318 = vpop.permute.xlu0 %3317
        %3319 = vrot.lane.b32.xlu0 %v3192, 64
        %v3320 = vpop.permute.xlu0 %3319
        %3321 = vrot.lane.b32.xlu0 %v3193, 64
        %v3322 = vpop.permute.xlu0 %3321
        %v3355 = vadd.f32 %v3195, %v3260
        %v3356 = vadd.f32 %v3196, %v3262
        %v3357 = vadd.f32 %v3197, %v3264
        %v3358 = vadd.f32 %v3198, %v3266
        %v3359 = vadd.f32 %v3199, %v3268
        %v3360 = vadd.f32 %v3200, %v3270
        %v3361 = vadd.f32 %v3201, %v3272
        %v3362 = vadd.f32 %v3202, %v3274
        %v3363 = vadd.f32 %v3203, %v3276
        %v3364 = vadd.f32 %v3204, %v3278
        %v3365 = vadd.f32 %v3205, %v3280
        %v3366 = vadd.f32 %v3206, %v3282
        %v3367 = vadd.f32 %v3207, %v3284
        %v3368 = vadd.f32 %v3208, %v3286
        %v3369 = vadd.f32 %v3209, %v3288
        %v3370 = vadd.f32 %v3210, %v3290
        %v3371 = vadd.f32 %v3211, %v3292
        %v3372 = vadd.f32 %v3212, %v3294
        %v3373 = vadd.f32 %v3213, %v3296
        %v3374 = vadd.f32 %v3214, %v3298
        %v3375 = vadd.f32 %v3215, %v3300
        %v3376 = vadd.f32 %v3216, %v3302
        %v3377 = vadd.f32 %v3217, %v3304
        %v3378 = vadd.f32 %v3218, %v3306
        %v3379 = vadd.f32 %v3219, %v3308
        %v3380 = vadd.f32 %v3220, %v3310
        %v3381 = vadd.f32 %v3221, %v3312
        %v3382 = vadd.f32 %v3222, %v3314
        %v3383 = vadd.f32 %v3223, %v3316
        %v3384 = vadd.f32 %v3224, %v3318
        %v3385 = vadd.f32 %v3225, %v3320
        %v3386 = vadd.f32 %v3226, %v3322
        %3387 = vst.msk [vmem:[%s3194 + $0x2] sm:$0xff] %vm723, %v3355
        %3388 = vst.msk [vmem:[%s3194 + $0xa] sm:$0xff] %vm723, %v3356
        %3389 = vst.msk [vmem:[%s3194 + $0x1a] sm:$0xff] %vm723, %v3357
        %3390 = vst.msk [vmem:[%s3194 + $0x22] sm:$0xff] %vm723, %v3358
        %3391 = vst.msk [vmem:[%s3194 + $0x32] sm:$0xff] %vm723, %v3359
        %3392 = vst.msk [vmem:[%s3194 + $0x3a] sm:$0xff] %vm723, %v3360
        %3393 = vst.msk [vmem:[%s3194 + $0x4a] sm:$0xff] %vm723, %v3361
        %3394 = vst.msk [vmem:[%s3194 + $0x52] sm:$0xff] %vm723, %v3362
        %3395 = vst.msk [vmem:[%s3194 + $0x62] sm:$0xff] %vm723, %v3363
        %3396 = vst.msk [vmem:[%s3194 + $0x6a] sm:$0xff] %vm723, %v3364
        %3397 = vst.msk [vmem:[%s3194 + $0x7a] sm:$0xff] %vm723, %v3365
        %3398 = vst.msk [vmem:[%s3194 + $0x82] sm:$0xff] %vm723, %v3366
        %3399 = vst.msk [vmem:[%s3194 + $0x92] sm:$0xff] %vm723, %v3367
        %3400 = vst.msk [vmem:[%s3194 + $0x9a] sm:$0xff] %vm723, %v3368
        %3401 = vst.msk [vmem:[%s3194 + $0xaa] sm:$0xff] %vm723, %v3369
        %3402 = vst.msk [vmem:[%s3194 + $0xb2] sm:$0xff] %vm723, %v3370
        %3403 = vst.msk [vmem:[%s3194 + $0xc2] sm:$0xff] %vm723, %v3371
        %3404 = vst.msk [vmem:[%s3194 + $0xca] sm:$0xff] %vm723, %v3372
        %3405 = vst.msk [vmem:[%s3194 + $0xda] sm:$0xff] %vm723, %v3373
        %3406 = vst.msk [vmem:[%s3194 + $0xe2] sm:$0xff] %vm723, %v3374
        %3407 = vst.msk [vmem:[%s3194 + $0xf2] sm:$0xff] %vm723, %v3375
        %3408 = vst.msk [vmem:[%s3194 + $0xfa] sm:$0xff] %vm723, %v3376
        %3409 = vst.msk [vmem:[%s3194 + $0x10a] sm:$0xff] %vm723, %v3377
        %3410 = vst.msk [vmem:[%s3194 + $0x112] sm:$0xff] %vm723, %v3378
        %3411 = vst.msk [vmem:[%s3194 + $0x122] sm:$0xff] %vm723, %v3379
        %3412 = vst.msk [vmem:[%s3194 + $0x12a] sm:$0xff] %vm723, %v3380
        %3413 = vst.msk [vmem:[%s3194 + $0x13a] sm:$0xff] %vm723, %v3381
        %3414 = vst.msk [vmem:[%s3194 + $0x142] sm:$0xff] %vm723, %v3382
        %3415 = vst.msk [vmem:[%s3194 + $0x152] sm:$0xff] %vm723, %v3383
        %3416 = vst.msk [vmem:[%s3194 + $0x15a] sm:$0xff] %vm723, %v3384
        %3417 = vst.msk [vmem:[%s3194 + $0x16a] sm:$0xff] %vm723, %v3385
        %3418 = vst.msk [vmem:[%s3194 + $0x172] sm:$0xff] %vm723, %v3386
        %v3419 = vld [vmem:[#allocation4 + $0x10] sm:$0xff]
        %v3420 = vld [vmem:[#allocation4 + $0x38] sm:$0xff]
        %v3421 = vld [vmem:[#allocation4 + $0x60] sm:$0xff]
        %v3422 = vld [vmem:[#allocation4 + $0x88] sm:$0xff]
        %v3423 = vld [vmem:[#allocation4 + $0xb0] sm:$0xff]
        %v3424 = vld [vmem:[#allocation4 + $0xd8] sm:$0xff]
        %v3425 = vld [vmem:[#allocation4 + $0x100] sm:$0xff]
        %v3426 = vld [vmem:[#allocation4 + $0x128] sm:$0xff]
        %v3427 = vld [vmem:[#allocation4 + $0x150] sm:$0xff]
        %v3428 = vld [vmem:[#allocation4 + $0x178] sm:$0xff]
        %v3429 = vld [vmem:[#allocation4 + $0x1a0] sm:$0xff]
        %v3430 = vld [vmem:[#allocation4 + $0x1c8] sm:$0xff]
        %v3431 = vld [vmem:[#allocation4 + $0x1f0] sm:$0xff]
        %v3432 = vld [vmem:[#allocation4 + $0x218] sm:$0xff]
        %v3433 = vld [vmem:[#allocation4 + $0x240] sm:$0xff]
        %v3434 = vld [vmem:[#allocation4 + $0x268] sm:$0xff]
        %v3435 = vld [vmem:[#allocation4 + $0x290] sm:$0xff]
        %v3436 = vld [vmem:[#allocation4 + $0x2b8] sm:$0xff]
        %v3437 = vld [vmem:[#allocation4 + $0x2e0] sm:$0xff]
        %v3438 = vld [vmem:[#allocation4 + $0x308] sm:$0xff]
        %v3439 = vld [vmem:[#allocation4 + $0x330] sm:$0xff]
        %v3440 = vld [vmem:[#allocation4 + $0x358] sm:$0xff]
        %v3441 = vld [vmem:[#allocation4 + $0x380] sm:$0xff]
        %v3442 = vld [vmem:[#allocation4 + $0x3a8] sm:$0xff]
        %v3443 = vld [vmem:[#allocation4 + $0x3d0] sm:$0xff]
        %v3444 = vld [vmem:[#allocation4 + $0x3f8] sm:$0xff]
        %v3445 = vld [vmem:[#allocation4 + $0x420] sm:$0xff]
        %v3446 = vld [vmem:[#allocation4 + $0x448] sm:$0xff]
        %v3447 = vld [vmem:[#allocation4 + $0x470] sm:$0xff]
        %v3448 = vld [vmem:[#allocation4 + $0x498] sm:$0xff]
        %v3449 = vld [vmem:[#allocation4 + $0x4c0] sm:$0xff]
        %v3450 = vld [vmem:[#allocation4 + $0x4e8] sm:$0xff]
        %v3451 = vld [vmem:[%s3194 + $0x1] sm:$0xff]
        %v3452 = vld [vmem:[%s3194 + $0x9] sm:$0xff]
        %v3453 = vld [vmem:[%s3194 + $0x19] sm:$0xff]
        %v3454 = vld [vmem:[%s3194 + $0x21] sm:$0xff]
        %v3455 = vld [vmem:[%s3194 + $0x31] sm:$0xff]
        %v3456 = vld [vmem:[%s3194 + $0x39] sm:$0xff]
        %v3457 = vld [vmem:[%s3194 + $0x49] sm:$0xff]
        %v3458 = vld [vmem:[%s3194 + $0x51] sm:$0xff]
        %v3459 = vld [vmem:[%s3194 + $0x61] sm:$0xff]
        %v3460 = vld [vmem:[%s3194 + $0x69] sm:$0xff]
        %v3461 = vld [vmem:[%s3194 + $0x79] sm:$0xff]
        %v3462 = vld [vmem:[%s3194 + $0x81] sm:$0xff]
        %v3463 = vld [vmem:[%s3194 + $0x91] sm:$0xff]
        %v3464 = vld [vmem:[%s3194 + $0x99] sm:$0xff]
        %v3465 = vld [vmem:[%s3194 + $0xa9] sm:$0xff]
        %v3466 = vld [vmem:[%s3194 + $0xb1] sm:$0xff]
        %v3467 = vld [vmem:[%s3194 + $0xc1] sm:$0xff]
        %v3468 = vld [vmem:[%s3194 + $0xc9] sm:$0xff]
        %v3469 = vld [vmem:[%s3194 + $0xd9] sm:$0xff]
        %v3470 = vld [vmem:[%s3194 + $0xe1] sm:$0xff]
        %v3471 = vld [vmem:[%s3194 + $0xf1] sm:$0xff]
        %v3472 = vld [vmem:[%s3194 + $0xf9] sm:$0xff]
        %v3473 = vld [vmem:[%s3194 + $0x109] sm:$0xff]
        %v3474 = vld [vmem:[%s3194 + $0x111] sm:$0xff]
        %v3475 = vld [vmem:[%s3194 + $0x121] sm:$0xff]
        %v3476 = vld [vmem:[%s3194 + $0x129] sm:$0xff]
        %v3477 = vld [vmem:[%s3194 + $0x139] sm:$0xff]
        %v3478 = vld [vmem:[%s3194 + $0x141] sm:$0xff]
        %v3479 = vld [vmem:[%s3194 + $0x151] sm:$0xff]
        %v3480 = vld [vmem:[%s3194 + $0x159] sm:$0xff]
        %v3481 = vld [vmem:[%s3194 + $0x169] sm:$0xff]
        %v3482 = vld [vmem:[%s3194 + $0x171] sm:$0xff]
        %v3483 = vadd.f32 %v3451, %v3419
        %v3484 = vadd.f32 %v3452, %v3420
        %v3485 = vadd.f32 %v3453, %v3421
        %v3486 = vadd.f32 %v3454, %v3422
        %v3487 = vadd.f32 %v3455, %v3423
        %v3488 = vadd.f32 %v3456, %v3424
        %v3489 = vadd.f32 %v3457, %v3425
        %v3490 = vadd.f32 %v3458, %v3426
        %v3491 = vadd.f32 %v3459, %v3427
        %v3492 = vadd.f32 %v3460, %v3428
        %v3493 = vadd.f32 %v3461, %v3429
        %v3494 = vadd.f32 %v3462, %v3430
        %v3495 = vadd.f32 %v3463, %v3431
        %v3496 = vadd.f32 %v3464, %v3432
        %v3497 = vadd.f32 %v3465, %v3433
        %v3498 = vadd.f32 %v3466, %v3434
        %v3499 = vadd.f32 %v3467, %v3435
        %v3500 = vadd.f32 %v3468, %v3436
        %v3501 = vadd.f32 %v3469, %v3437
        %v3502 = vadd.f32 %v3470, %v3438
        %v3503 = vadd.f32 %v3471, %v3439
        %v3504 = vadd.f32 %v3472, %v3440
        %v3505 = vadd.f32 %v3473, %v3441
        %v3506 = vadd.f32 %v3474, %v3442
        %v3507 = vadd.f32 %v3475, %v3443
        %v3508 = vadd.f32 %v3476, %v3444
        %v3509 = vadd.f32 %v3477, %v3445
        %v3510 = vadd.f32 %v3478, %v3446
        %v3511 = vadd.f32 %v3479, %v3447
        %v3512 = vadd.f32 %v3480, %v3448
        %v3513 = vadd.f32 %v3481, %v3449
        %v3514 = vadd.f32 %v3482, %v3450
        %3515 = vst.msk [vmem:[%s3194 + $0x1] sm:$0xff] %vm723, %v3483
        %3516 = vst.msk [vmem:[%s3194 + $0x9] sm:$0xff] %vm723, %v3484
        %3517 = vst.msk [vmem:[%s3194 + $0x19] sm:$0xff] %vm723, %v3485
        %3518 = vst.msk [vmem:[%s3194 + $0x21] sm:$0xff] %vm723, %v3486
        %3519 = vst.msk [vmem:[%s3194 + $0x31] sm:$0xff] %vm723, %v3487
        %3520 = vst.msk [vmem:[%s3194 + $0x39] sm:$0xff] %vm723, %v3488
        %3521 = vst.msk [vmem:[%s3194 + $0x49] sm:$0xff] %vm723, %v3489
        %3522 = vst.msk [vmem:[%s3194 + $0x51] sm:$0xff] %vm723, %v3490
        %3523 = vst.msk [vmem:[%s3194 + $0x61] sm:$0xff] %vm723, %v3491
        %3524 = vst.msk [vmem:[%s3194 + $0x69] sm:$0xff] %vm723, %v3492
        %3525 = vst.msk [vmem:[%s3194 + $0x79] sm:$0xff] %vm723, %v3493
        %3526 = vst.msk [vmem:[%s3194 + $0x81] sm:$0xff] %vm723, %v3494
        %3527 = vst.msk [vmem:[%s3194 + $0x91] sm:$0xff] %vm723, %v3495
        %3528 = vst.msk [vmem:[%s3194 + $0x99] sm:$0xff] %vm723, %v3496
        %3529 = vst.msk [vmem:[%s3194 + $0xa9] sm:$0xff] %vm723, %v3497
        %3530 = vst.msk [vmem:[%s3194 + $0xb1] sm:$0xff] %vm723, %v3498
        %3531 = vst.msk [vmem:[%s3194 + $0xc1] sm:$0xff] %vm723, %v3499
        %3532 = vst.msk [vmem:[%s3194 + $0xc9] sm:$0xff] %vm723, %v3500
        %3533 = vst.msk [vmem:[%s3194 + $0xd9] sm:$0xff] %vm723, %v3501
        %3534 = vst.msk [vmem:[%s3194 + $0xe1] sm:$0xff] %vm723, %v3502
        %3535 = vst.msk [vmem:[%s3194 + $0xf1] sm:$0xff] %vm723, %v3503
        %3536 = vst.msk [vmem:[%s3194 + $0xf9] sm:$0xff] %vm723, %v3504
        %3537 = vst.msk [vmem:[%s3194 + $0x109] sm:$0xff] %vm723, %v3505
        %3538 = vst.msk [vmem:[%s3194 + $0x111] sm:$0xff] %vm723, %v3506
        %3539 = vst.msk [vmem:[%s3194 + $0x121] sm:$0xff] %vm723, %v3507
        %3540 = vst.msk [vmem:[%s3194 + $0x129] sm:$0xff] %vm723, %v3508
        %3541 = vst.msk [vmem:[%s3194 + $0x139] sm:$0xff] %vm723, %v3509
        %3542 = vst.msk [vmem:[%s3194 + $0x141] sm:$0xff] %vm723, %v3510
        %3543 = vst.msk [vmem:[%s3194 + $0x151] sm:$0xff] %vm723, %v3511
        %3544 = vst.msk [vmem:[%s3194 + $0x159] sm:$0xff] %vm723, %v3512
        %3545 = vst.msk [vmem:[%s3194 + $0x169] sm:$0xff] %vm723, %v3513
        %3546 = vst.msk [vmem:[%s3194 + $0x171] sm:$0xff] %vm723, %v3514
        %v3547 = vld [vmem:[#allocation4 + $0x10] sm:$0xff]
        %v3548 = vld [vmem:[#allocation4 + $0x38] sm:$0xff]
        %v3549 = vld [vmem:[#allocation4 + $0x60] sm:$0xff]
        %v3550 = vld [vmem:[#allocation4 + $0x88] sm:$0xff]
        %v3551 = vld [vmem:[#allocation4 + $0xb0] sm:$0xff]
        %v3552 = vld [vmem:[#allocation4 + $0xd8] sm:$0xff]
        %v3553 = vld [vmem:[#allocation4 + $0x100] sm:$0xff]
        %v3554 = vld [vmem:[#allocation4 + $0x128] sm:$0xff]
        %v3555 = vld [vmem:[#allocation4 + $0x150] sm:$0xff]
        %v3556 = vld [vmem:[#allocation4 + $0x178] sm:$0xff]
        %v3557 = vld [vmem:[#allocation4 + $0x1a0] sm:$0xff]
        %v3558 = vld [vmem:[#allocation4 + $0x1c8] sm:$0xff]
        %v3559 = vld [vmem:[#allocation4 + $0x1f0] sm:$0xff]
        %v3560 = vld [vmem:[#allocation4 + $0x218] sm:$0xff]
        %v3561 = vld [vmem:[#allocation4 + $0x240] sm:$0xff]
        %v3562 = vld [vmem:[#allocation4 + $0x268] sm:$0xff]
        %v3563 = vld [vmem:[#allocation4 + $0x290] sm:$0xff]
        %v3564 = vld [vmem:[#allocation4 + $0x2b8] sm:$0xff]
        %v3565 = vld [vmem:[#allocation4 + $0x2e0] sm:$0xff]
        %v3566 = vld [vmem:[#allocation4 + $0x308] sm:$0xff]
        %v3567 = vld [vmem:[#allocation4 + $0x330] sm:$0xff]
        %v3568 = vld [vmem:[#allocation4 + $0x358] sm:$0xff]
        %v3569 = vld [vmem:[#allocation4 + $0x380] sm:$0xff]
        %v3570 = vld [vmem:[#allocation4 + $0x3a8] sm:$0xff]
        %v3571 = vld [vmem:[#allocation4 + $0x3d0] sm:$0xff]
        %v3572 = vld [vmem:[#allocation4 + $0x3f8] sm:$0xff]
        %v3573 = vld [vmem:[#allocation4 + $0x420] sm:$0xff]
        %v3574 = vld [vmem:[#allocation4 + $0x448] sm:$0xff]
        %v3575 = vld [vmem:[#allocation4 + $0x470] sm:$0xff]
        %v3576 = vld [vmem:[#allocation4 + $0x498] sm:$0xff]
        %v3577 = vld [vmem:[#allocation4 + $0x4c0] sm:$0xff]
        %v3578 = vld [vmem:[#allocation4 + $0x4e8] sm:$0xff]
        %v3579 = vld [vmem:[%s3194] sm:$0xff]
        %v3580 = vld [vmem:[%s3194 + $0x8] sm:$0xff]
        %v3581 = vld [vmem:[%s3194 + $0x18] sm:$0xff]
        %v3582 = vld [vmem:[%s3194 + $0x20] sm:$0xff]
        %v3583 = vld [vmem:[%s3194 + $0x30] sm:$0xff]
        %v3584 = vld [vmem:[%s3194 + $0x38] sm:$0xff]
        %v3585 = vld [vmem:[%s3194 + $0x48] sm:$0xff]
        %v3586 = vld [vmem:[%s3194 + $0x50] sm:$0xff]
        %v3587 = vld [vmem:[%s3194 + $0x60] sm:$0xff]
        %v3588 = vld [vmem:[%s3194 + $0x68] sm:$0xff]
        %v3589 = vld [vmem:[%s3194 + $0x78] sm:$0xff]
        %v3590 = vld [vmem:[%s3194 + $0x80] sm:$0xff]
        %v3591 = vld [vmem:[%s3194 + $0x90] sm:$0xff]
        %v3592 = vld [vmem:[%s3194 + $0x98] sm:$0xff]
        %v3593 = vld [vmem:[%s3194 + $0xa8] sm:$0xff]
        %v3594 = vld [vmem:[%s3194 + $0xb0] sm:$0xff]
        %v3595 = vld [vmem:[%s3194 + $0xc0] sm:$0xff]
        %v3596 = vld [vmem:[%s3194 + $0xc8] sm:$0xff]
        %v3597 = vld [vmem:[%s3194 + $0xd8] sm:$0xff]
        %v3598 = vld [vmem:[%s3194 + $0xe0] sm:$0xff]
        %v3599 = vld [vmem:[%s3194 + $0xf0] sm:$0xff]
        %v3600 = vld [vmem:[%s3194 + $0xf8] sm:$0xff]
        %v3601 = vld [vmem:[%s3194 + $0x108] sm:$0xff]
        %v3602 = vld [vmem:[%s3194 + $0x110] sm:$0xff]
        %v3603 = vld [vmem:[%s3194 + $0x120] sm:$0xff]
        %v3604 = vld [vmem:[%s3194 + $0x128] sm:$0xff]
        %v3605 = vld [vmem:[%s3194 + $0x138] sm:$0xff]
        %v3606 = vld [vmem:[%s3194 + $0x140] sm:$0xff]
        %v3607 = vld [vmem:[%s3194 + $0x150] sm:$0xff]
        %v3608 = vld [vmem:[%s3194 + $0x158] sm:$0xff]
        %v3609 = vld [vmem:[%s3194 + $0x168] sm:$0xff]
        %v3610 = vld [vmem:[%s3194 + $0x170] sm:$0xff]
        %3643 = vrot.lane.b32.xlu0 %v3547, 64
        %v3644 = vpop.permute.xlu0 %3643
        %3645 = vrot.lane.b32.xlu0 %v3548, 64
        %v3646 = vpop.permute.xlu0 %3645
        %3647 = vrot.lane.b32.xlu0 %v3549, 64
        %v3648 = vpop.permute.xlu0 %3647
        %3649 = vrot.lane.b32.xlu0 %v3550, 64
        %v3650 = vpop.permute.xlu0 %3649
        %3651 = vrot.lane.b32.xlu0 %v3551, 64
        %v3652 = vpop.permute.xlu0 %3651
        %3653 = vrot.lane.b32.xlu0 %v3552, 64
        %v3654 = vpop.permute.xlu0 %3653
        %3655 = vrot.lane.b32.xlu0 %v3553, 64
        %v3656 = vpop.permute.xlu0 %3655
        %3657 = vrot.lane.b32.xlu0 %v3554, 64
        %v3658 = vpop.permute.xlu0 %3657
        %3659 = vrot.lane.b32.xlu0 %v3555, 64
        %v3660 = vpop.permute.xlu0 %3659
        %3661 = vrot.lane.b32.xlu0 %v3556, 64
        %v3662 = vpop.permute.xlu0 %3661
        %3663 = vrot.lane.b32.xlu0 %v3557, 64
        %v3664 = vpop.permute.xlu0 %3663
        %3665 = vrot.lane.b32.xlu0 %v3558, 64
        %v3666 = vpop.permute.xlu0 %3665
        %3667 = vrot.lane.b32.xlu0 %v3559, 64
        %v3668 = vpop.permute.xlu0 %3667
        %3669 = vrot.lane.b32.xlu0 %v3560, 64
        %v3670 = vpop.permute.xlu0 %3669
        %3671 = vrot.lane.b32.xlu0 %v3561, 64
        %v3672 = vpop.permute.xlu0 %3671
        %3673 = vrot.lane.b32.xlu0 %v3562, 64
        %v3674 = vpop.permute.xlu0 %3673
        %3675 = vrot.lane.b32.xlu0 %v3563, 64
        %v3676 = vpop.permute.xlu0 %3675
        %3677 = vrot.lane.b32.xlu0 %v3564, 64
        %v3678 = vpop.permute.xlu0 %3677
        %3679 = vrot.lane.b32.xlu0 %v3565, 64
        %v3680 = vpop.permute.xlu0 %3679
        %3681 = vrot.lane.b32.xlu0 %v3566, 64
        %v3682 = vpop.permute.xlu0 %3681
        %3683 = vrot.lane.b32.xlu0 %v3567, 64
        %v3684 = vpop.permute.xlu0 %3683
        %3685 = vrot.lane.b32.xlu0 %v3568, 64
        %v3686 = vpop.permute.xlu0 %3685
        %3687 = vrot.lane.b32.xlu0 %v3569, 64
        %v3688 = vpop.permute.xlu0 %3687
        %3689 = vrot.lane.b32.xlu0 %v3570, 64
        %v3690 = vpop.permute.xlu0 %3689
        %3691 = vrot.lane.b32.xlu0 %v3571, 64
        %v3692 = vpop.permute.xlu0 %3691
        %3693 = vrot.lane.b32.xlu0 %v3572, 64
        %v3694 = vpop.permute.xlu0 %3693
        %3695 = vrot.lane.b32.xlu0 %v3573, 64
        %v3696 = vpop.permute.xlu0 %3695
        %3697 = vrot.lane.b32.xlu0 %v3574, 64
        %v3698 = vpop.permute.xlu0 %3697
        %3699 = vrot.lane.b32.xlu0 %v3575, 64
        %v3700 = vpop.permute.xlu0 %3699
        %3701 = vrot.lane.b32.xlu0 %v3576, 64
        %v3702 = vpop.permute.xlu0 %3701
        %3703 = vrot.lane.b32.xlu0 %v3577, 64
        %v3704 = vpop.permute.xlu0 %3703
        %3705 = vrot.lane.b32.xlu0 %v3578, 64
        %v3706 = vpop.permute.xlu0 %3705
        %v3739 = vadd.f32 %v3579, %v3644
        %v3740 = vadd.f32 %v3580, %v3646
        %v3741 = vadd.f32 %v3581, %v3648
        %v3742 = vadd.f32 %v3582, %v3650
        %v3743 = vadd.f32 %v3583, %v3652
        %v3744 = vadd.f32 %v3584, %v3654
        %v3745 = vadd.f32 %v3585, %v3656
        %v3746 = vadd.f32 %v3586, %v3658
        %v3747 = vadd.f32 %v3587, %v3660
        %v3748 = vadd.f32 %v3588, %v3662
        %v3749 = vadd.f32 %v3589, %v3664
        %v3750 = vadd.f32 %v3590, %v3666
        %v3751 = vadd.f32 %v3591, %v3668
        %v3752 = vadd.f32 %v3592, %v3670
        %v3753 = vadd.f32 %v3593, %v3672
        %v3754 = vadd.f32 %v3594, %v3674
        %v3755 = vadd.f32 %v3595, %v3676
        %v3756 = vadd.f32 %v3596, %v3678
        %v3757 = vadd.f32 %v3597, %v3680
        %v3758 = vadd.f32 %v3598, %v3682
        %v3759 = vadd.f32 %v3599, %v3684
        %v3760 = vadd.f32 %v3600, %v3686
        %v3761 = vadd.f32 %v3601, %v3688
        %v3762 = vadd.f32 %v3602, %v3690
        %v3763 = vadd.f32 %v3603, %v3692
        %v3764 = vadd.f32 %v3604, %v3694
        %v3765 = vadd.f32 %v3605, %v3696
        %v3766 = vadd.f32 %v3606, %v3698
        %v3767 = vadd.f32 %v3607, %v3700
        %v3768 = vadd.f32 %v3608, %v3702
        %v3769 = vadd.f32 %v3609, %v3704
        %v3770 = vadd.f32 %v3610, %v3706
        %3771 = vst.msk [vmem:[%s3194] sm:$0xff] %vm723, %v3739
        %3772 = vst.msk [vmem:[%s3194 + $0x8] sm:$0xff] %vm723, %v3740
        %3773 = vst.msk [vmem:[%s3194 + $0x18] sm:$0xff] %vm723, %v3741
        %3774 = vst.msk [vmem:[%s3194 + $0x20] sm:$0xff] %vm723, %v3742
        %3775 = vst.msk [vmem:[%s3194 + $0x30] sm:$0xff] %vm723, %v3743
        %3776 = vst.msk [vmem:[%s3194 + $0x38] sm:$0xff] %vm723, %v3744
        %3777 = vst.msk [vmem:[%s3194 + $0x48] sm:$0xff] %vm723, %v3745
        %3778 = vst.msk [vmem:[%s3194 + $0x50] sm:$0xff] %vm723, %v3746
        %3779 = vst.msk [vmem:[%s3194 + $0x60] sm:$0xff] %vm723, %v3747
        %3780 = vst.msk [vmem:[%s3194 + $0x68] sm:$0xff] %vm723, %v3748
        %3781 = vst.msk [vmem:[%s3194 + $0x78] sm:$0xff] %vm723, %v3749
        %3782 = vst.msk [vmem:[%s3194 + $0x80] sm:$0xff] %vm723, %v3750
        %3783 = vst.msk [vmem:[%s3194 + $0x90] sm:$0xff] %vm723, %v3751
        %3784 = vst.msk [vmem:[%s3194 + $0x98] sm:$0xff] %vm723, %v3752
        %3785 = vst.msk [vmem:[%s3194 + $0xa8] sm:$0xff] %vm723, %v3753
        %3786 = vst.msk [vmem:[%s3194 + $0xb0] sm:$0xff] %vm723, %v3754
        %3787 = vst.msk [vmem:[%s3194 + $0xc0] sm:$0xff] %vm723, %v3755
        %3788 = vst.msk [vmem:[%s3194 + $0xc8] sm:$0xff] %vm723, %v3756
        %3789 = vst.msk [vmem:[%s3194 + $0xd8] sm:$0xff] %vm723, %v3757
        %3790 = vst.msk [vmem:[%s3194 + $0xe0] sm:$0xff] %vm723, %v3758
        %3791 = vst.msk [vmem:[%s3194 + $0xf0] sm:$0xff] %vm723, %v3759
        %3792 = vst.msk [vmem:[%s3194 + $0xf8] sm:$0xff] %vm723, %v3760
        %3793 = vst.msk [vmem:[%s3194 + $0x108] sm:$0xff] %vm723, %v3761
        %3794 = vst.msk [vmem:[%s3194 + $0x110] sm:$0xff] %vm723, %v3762
        %3795 = vst.msk [vmem:[%s3194 + $0x120] sm:$0xff] %vm723, %v3763
        %3796 = vst.msk [vmem:[%s3194 + $0x128] sm:$0xff] %vm723, %v3764
        %3797 = vst.msk [vmem:[%s3194 + $0x138] sm:$0xff] %vm723, %v3765
        %3798 = vst.msk [vmem:[%s3194 + $0x140] sm:$0xff] %vm723, %v3766
        %3799 = vst.msk [vmem:[%s3194 + $0x150] sm:$0xff] %vm723, %v3767
        %3800 = vst.msk [vmem:[%s3194 + $0x158] sm:$0xff] %vm723, %v3768
        %3801 = vst.msk [vmem:[%s3194 + $0x168] sm:$0xff] %vm723, %v3769
        %3802 = vst.msk [vmem:[%s3194 + $0x170] sm:$0xff] %vm723, %v3770
        %v3803 = vld [vmem:[#allocation4 + $0x18] sm:$0xff]
        %v3804 = vld [vmem:[#allocation4 + $0x40] sm:$0xff]
        %v3805 = vld [vmem:[#allocation4 + $0x68] sm:$0xff]
        %v3806 = vld [vmem:[#allocation4 + $0x90] sm:$0xff]
        %v3807 = vld [vmem:[#allocation4 + $0xb8] sm:$0xff]
        %v3808 = vld [vmem:[#allocation4 + $0xe0] sm:$0xff]
        %v3809 = vld [vmem:[#allocation4 + $0x108] sm:$0xff]
        %v3810 = vld [vmem:[#allocation4 + $0x130] sm:$0xff]
        %v3811 = vld [vmem:[#allocation4 + $0x158] sm:$0xff]
        %v3812 = vld [vmem:[#allocation4 + $0x180] sm:$0xff]
        %v3813 = vld [vmem:[#allocation4 + $0x1a8] sm:$0xff]
        %v3814 = vld [vmem:[#allocation4 + $0x1d0] sm:$0xff]
        %v3815 = vld [vmem:[#allocation4 + $0x1f8] sm:$0xff]
        %v3816 = vld [vmem:[#allocation4 + $0x220] sm:$0xff]
        %v3817 = vld [vmem:[#allocation4 + $0x248] sm:$0xff]
        %v3818 = vld [vmem:[#allocation4 + $0x270] sm:$0xff]
        %v3819 = vld [vmem:[#allocation4 + $0x298] sm:$0xff]
        %v3820 = vld [vmem:[#allocation4 + $0x2c0] sm:$0xff]
        %v3821 = vld [vmem:[#allocation4 + $0x2e8] sm:$0xff]
        %v3822 = vld [vmem:[#allocation4 + $0x310] sm:$0xff]
        %v3823 = vld [vmem:[#allocation4 + $0x338] sm:$0xff]
        %v3824 = vld [vmem:[#allocation4 + $0x360] sm:$0xff]
        %v3825 = vld [vmem:[#allocation4 + $0x388] sm:$0xff]
        %v3826 = vld [vmem:[#allocation4 + $0x3b0] sm:$0xff]
        %v3827 = vld [vmem:[#allocation4 + $0x3d8] sm:$0xff]
        %v3828 = vld [vmem:[#allocation4 + $0x400] sm:$0xff]
        %v3829 = vld [vmem:[#allocation4 + $0x428] sm:$0xff]
        %v3830 = vld [vmem:[#allocation4 + $0x450] sm:$0xff]
        %v3831 = vld [vmem:[#allocation4 + $0x478] sm:$0xff]
        %v3832 = vld [vmem:[#allocation4 + $0x4a0] sm:$0xff]
        %v3833 = vld [vmem:[#allocation4 + $0x4c8] sm:$0xff]
        %v3834 = vld [vmem:[#allocation4 + $0x4f0] sm:$0xff]
        %v3835 = vld [vmem:[#allocation5 + $0x2] sm:$0xff]
        %v3836 = vld [vmem:[#allocation5 + $0xa] sm:$0xff]
        %v3837 = vld [vmem:[#allocation5 + $0x1a] sm:$0xff]
        %v3838 = vld [vmem:[#allocation5 + $0x22] sm:$0xff]
        %v3839 = vld [vmem:[#allocation5 + $0x32] sm:$0xff]
        %v3840 = vld [vmem:[#allocation5 + $0x3a] sm:$0xff]
        %v3841 = vld [vmem:[#allocation5 + $0x4a] sm:$0xff]
        %v3842 = vld [vmem:[#allocation5 + $0x52] sm:$0xff]
        %v3843 = vld [vmem:[#allocation5 + $0x62] sm:$0xff]
        %v3844 = vld [vmem:[#allocation5 + $0x6a] sm:$0xff]
        %v3845 = vld [vmem:[#allocation5 + $0x7a] sm:$0xff]
        %v3846 = vld [vmem:[#allocation5 + $0x82] sm:$0xff]
        %v3847 = vld [vmem:[#allocation5 + $0x92] sm:$0xff]
        %v3848 = vld [vmem:[#allocation5 + $0x9a] sm:$0xff]
        %v3849 = vld [vmem:[#allocation5 + $0xaa] sm:$0xff]
        %v3850 = vld [vmem:[#allocation5 + $0xb2] sm:$0xff]
        %v3851 = vld [vmem:[#allocation5 + $0xc2] sm:$0xff]
        %v3852 = vld [vmem:[#allocation5 + $0xca] sm:$0xff]
        %v3853 = vld [vmem:[#allocation5 + $0xda] sm:$0xff]
        %v3854 = vld [vmem:[#allocation5 + $0xe2] sm:$0xff]
        %v3855 = vld [vmem:[#allocation5 + $0xf2] sm:$0xff]
        %v3856 = vld [vmem:[#allocation5 + $0xfa] sm:$0xff]
        %v3857 = vld [vmem:[#allocation5 + $0x10a] sm:$0xff]
        %v3858 = vld [vmem:[#allocation5 + $0x112] sm:$0xff]
        %v3859 = vld [vmem:[#allocation5 + $0x122] sm:$0xff]
        %v3860 = vld [vmem:[#allocation5 + $0x12a] sm:$0xff]
        %v3861 = vld [vmem:[#allocation5 + $0x13a] sm:$0xff]
        %v3862 = vld [vmem:[#allocation5 + $0x142] sm:$0xff]
        %v3863 = vld [vmem:[#allocation5 + $0x152] sm:$0xff]
        %v3864 = vld [vmem:[#allocation5 + $0x15a] sm:$0xff]
        %v3865 = vld [vmem:[#allocation5 + $0x16a] sm:$0xff]
        %v3866 = vld [vmem:[#allocation5 + $0x172] sm:$0xff]
        %v3867 = vadd.f32 %v3835, %v3803
        %v3868 = vadd.f32 %v3836, %v3804
        %v3869 = vadd.f32 %v3837, %v3805
        %v3870 = vadd.f32 %v3838, %v3806
        %v3871 = vadd.f32 %v3839, %v3807
        %v3872 = vadd.f32 %v3840, %v3808
        %v3873 = vadd.f32 %v3841, %v3809
        %v3874 = vadd.f32 %v3842, %v3810
        %v3875 = vadd.f32 %v3843, %v3811
        %v3876 = vadd.f32 %v3844, %v3812
        %v3877 = vadd.f32 %v3845, %v3813
        %v3878 = vadd.f32 %v3846, %v3814
        %v3879 = vadd.f32 %v3847, %v3815
        %v3880 = vadd.f32 %v3848, %v3816
        %v3881 = vadd.f32 %v3849, %v3817
        %v3882 = vadd.f32 %v3850, %v3818
        %v3883 = vadd.f32 %v3851, %v3819
        %v3884 = vadd.f32 %v3852, %v3820
        %v3885 = vadd.f32 %v3853, %v3821
        %v3886 = vadd.f32 %v3854, %v3822
        %v3887 = vadd.f32 %v3855, %v3823
        %v3888 = vadd.f32 %v3856, %v3824
        %v3889 = vadd.f32 %v3857, %v3825
        %v3890 = vadd.f32 %v3858, %v3826
        %v3891 = vadd.f32 %v3859, %v3827
        %v3892 = vadd.f32 %v3860, %v3828
        %v3893 = vadd.f32 %v3861, %v3829
        %v3894 = vadd.f32 %v3862, %v3830
        %v3895 = vadd.f32 %v3863, %v3831
        %v3896 = vadd.f32 %v3864, %v3832
        %v3897 = vadd.f32 %v3865, %v3833
        %v3898 = vadd.f32 %v3866, %v3834
        %3899 = vst.msk [vmem:[#allocation5 + $0x2] sm:$0xff] %vm723, %v3867
        %3900 = vst.msk [vmem:[#allocation5 + $0xa] sm:$0xff] %vm723, %v3868
        %3901 = vst.msk [vmem:[#allocation5 + $0x1a] sm:$0xff] %vm723, %v3869
        %3902 = vst.msk [vmem:[#allocation5 + $0x22] sm:$0xff] %vm723, %v3870
        %3903 = vst.msk [vmem:[#allocation5 + $0x32] sm:$0xff] %vm723, %v3871
        %3904 = vst.msk [vmem:[#allocation5 + $0x3a] sm:$0xff] %vm723, %v3872
        %3905 = vst.msk [vmem:[#allocation5 + $0x4a] sm:$0xff] %vm723, %v3873
        %3906 = vst.msk [vmem:[#allocation5 + $0x52] sm:$0xff] %vm723, %v3874
        %3907 = vst.msk [vmem:[#allocation5 + $0x62] sm:$0xff] %vm723, %v3875
        %3908 = vst.msk [vmem:[#allocation5 + $0x6a] sm:$0xff] %vm723, %v3876
        %3909 = vst.msk [vmem:[#allocation5 + $0x7a] sm:$0xff] %vm723, %v3877
        %3910 = vst.msk [vmem:[#allocation5 + $0x82] sm:$0xff] %vm723, %v3878
        %3911 = vst.msk [vmem:[#allocation5 + $0x92] sm:$0xff] %vm723, %v3879
        %3912 = vst.msk [vmem:[#allocation5 + $0x9a] sm:$0xff] %vm723, %v3880
        %3913 = vst.msk [vmem:[#allocation5 + $0xaa] sm:$0xff] %vm723, %v3881
        %3914 = vst.msk [vmem:[#allocation5 + $0xb2] sm:$0xff] %vm723, %v3882
        %3915 = vst.msk [vmem:[#allocation5 + $0xc2] sm:$0xff] %vm723, %v3883
        %3916 = vst.msk [vmem:[#allocation5 + $0xca] sm:$0xff] %vm723, %v3884
        %3917 = vst.msk [vmem:[#allocation5 + $0xda] sm:$0xff] %vm723, %v3885
        %3918 = vst.msk [vmem:[#allocation5 + $0xe2] sm:$0xff] %vm723, %v3886
        %3919 = vst.msk [vmem:[#allocation5 + $0xf2] sm:$0xff] %vm723, %v3887
        %3920 = vst.msk [vmem:[#allocation5 + $0xfa] sm:$0xff] %vm723, %v3888
        %3921 = vst.msk [vmem:[#allocation5 + $0x10a] sm:$0xff] %vm723, %v3889
        %3922 = vst.msk [vmem:[#allocation5 + $0x112] sm:$0xff] %vm723, %v3890
        %3923 = vst.msk [vmem:[#allocation5 + $0x122] sm:$0xff] %vm723, %v3891
        %3924 = vst.msk [vmem:[#allocation5 + $0x12a] sm:$0xff] %vm723, %v3892
        %3925 = vst.msk [vmem:[#allocation5 + $0x13a] sm:$0xff] %vm723, %v3893
        %3926 = vst.msk [vmem:[#allocation5 + $0x142] sm:$0xff] %vm723, %v3894
        %3927 = vst.msk [vmem:[#allocation5 + $0x152] sm:$0xff] %vm723, %v3895
        %3928 = vst.msk [vmem:[#allocation5 + $0x15a] sm:$0xff] %vm723, %v3896
        %3929 = vst.msk [vmem:[#allocation5 + $0x16a] sm:$0xff] %vm723, %v3897
        %3930 = vst.msk [vmem:[#allocation5 + $0x172] sm:$0xff] %vm723, %v3898
        %v3931 = vld [vmem:[#allocation4 + $0x18] sm:$0xff]
        %v3932 = vld [vmem:[#allocation4 + $0x40] sm:$0xff]
        %v3933 = vld [vmem:[#allocation4 + $0x68] sm:$0xff]
        %v3934 = vld [vmem:[#allocation4 + $0x90] sm:$0xff]
        %v3935 = vld [vmem:[#allocation4 + $0xb8] sm:$0xff]
        %v3936 = vld [vmem:[#allocation4 + $0xe0] sm:$0xff]
        %v3937 = vld [vmem:[#allocation4 + $0x108] sm:$0xff]
        %v3938 = vld [vmem:[#allocation4 + $0x130] sm:$0xff]
        %v3939 = vld [vmem:[#allocation4 + $0x158] sm:$0xff]
        %v3940 = vld [vmem:[#allocation4 + $0x180] sm:$0xff]
        %v3941 = vld [vmem:[#allocation4 + $0x1a8] sm:$0xff]
        %v3942 = vld [vmem:[#allocation4 + $0x1d0] sm:$0xff]
        %v3943 = vld [vmem:[#allocation4 + $0x1f8] sm:$0xff]
        %v3944 = vld [vmem:[#allocation4 + $0x220] sm:$0xff]
        %v3945 = vld [vmem:[#allocation4 + $0x248] sm:$0xff]
        %v3946 = vld [vmem:[#allocation4 + $0x270] sm:$0xff]
        %v3947 = vld [vmem:[#allocation4 + $0x298] sm:$0xff]
        %v3948 = vld [vmem:[#allocation4 + $0x2c0] sm:$0xff]
        %v3949 = vld [vmem:[#allocation4 + $0x2e8] sm:$0xff]
        %v3950 = vld [vmem:[#allocation4 + $0x310] sm:$0xff]
        %v3951 = vld [vmem:[#allocation4 + $0x338] sm:$0xff]
        %v3952 = vld [vmem:[#allocation4 + $0x360] sm:$0xff]
        %v3953 = vld [vmem:[#allocation4 + $0x388] sm:$0xff]
        %v3954 = vld [vmem:[#allocation4 + $0x3b0] sm:$0xff]
        %v3955 = vld [vmem:[#allocation4 + $0x3d8] sm:$0xff]
        %v3956 = vld [vmem:[#allocation4 + $0x400] sm:$0xff]
        %v3957 = vld [vmem:[#allocation4 + $0x428] sm:$0xff]
        %v3958 = vld [vmem:[#allocation4 + $0x450] sm:$0xff]
        %v3959 = vld [vmem:[#allocation4 + $0x478] sm:$0xff]
        %v3960 = vld [vmem:[#allocation4 + $0x4a0] sm:$0xff]
        %v3961 = vld [vmem:[#allocation4 + $0x4c8] sm:$0xff]
        %v3962 = vld [vmem:[#allocation4 + $0x4f0] sm:$0xff]
        %v3963 = vld [vmem:[#allocation5 + $0x1] sm:$0xff]
        %v3964 = vld [vmem:[#allocation5 + $0x9] sm:$0xff]
        %v3965 = vld [vmem:[#allocation5 + $0x19] sm:$0xff]
        %v3966 = vld [vmem:[#allocation5 + $0x21] sm:$0xff]
        %v3967 = vld [vmem:[#allocation5 + $0x31] sm:$0xff]
        %v3968 = vld [vmem:[#allocation5 + $0x39] sm:$0xff]
        %v3969 = vld [vmem:[#allocation5 + $0x49] sm:$0xff]
        %v3970 = vld [vmem:[#allocation5 + $0x51] sm:$0xff]
        %v3971 = vld [vmem:[#allocation5 + $0x61] sm:$0xff]
        %v3972 = vld [vmem:[#allocation5 + $0x69] sm:$0xff]
        %v3973 = vld [vmem:[#allocation5 + $0x79] sm:$0xff]
        %v3974 = vld [vmem:[#allocation5 + $0x81] sm:$0xff]
        %v3975 = vld [vmem:[#allocation5 + $0x91] sm:$0xff]
        %v3976 = vld [vmem:[#allocation5 + $0x99] sm:$0xff]
        %v3977 = vld [vmem:[#allocation5 + $0xa9] sm:$0xff]
        %v3978 = vld [vmem:[#allocation5 + $0xb1] sm:$0xff]
        %v3979 = vld [vmem:[#allocation5 + $0xc1] sm:$0xff]
        %v3980 = vld [vmem:[#allocation5 + $0xc9] sm:$0xff]
        %v3981 = vld [vmem:[#allocation5 + $0xd9] sm:$0xff]
        %v3982 = vld [vmem:[#allocation5 + $0xe1] sm:$0xff]
        %v3983 = vld [vmem:[#allocation5 + $0xf1] sm:$0xff]
        %v3984 = vld [vmem:[#allocation5 + $0xf9] sm:$0xff]
        %v3985 = vld [vmem:[#allocation5 + $0x109] sm:$0xff]
        %v3986 = vld [vmem:[#allocation5 + $0x111] sm:$0xff]
        %v3987 = vld [vmem:[#allocation5 + $0x121] sm:$0xff]
        %v3988 = vld [vmem:[#allocation5 + $0x129] sm:$0xff]
        %v3989 = vld [vmem:[#allocation5 + $0x139] sm:$0xff]
        %v3990 = vld [vmem:[#allocation5 + $0x141] sm:$0xff]
        %v3991 = vld [vmem:[#allocation5 + $0x151] sm:$0xff]
        %v3992 = vld [vmem:[#allocation5 + $0x159] sm:$0xff]
        %v3993 = vld [vmem:[#allocation5 + $0x169] sm:$0xff]
        %v3994 = vld [vmem:[#allocation5 + $0x171] sm:$0xff]
        %4027 = vrot.lane.b32.xlu0 %v3931, 64
        %v4028 = vpop.permute.xlu0 %4027
        %4029 = vrot.lane.b32.xlu0 %v3932, 64
        %v4030 = vpop.permute.xlu0 %4029
        %4031 = vrot.lane.b32.xlu0 %v3933, 64
        %v4032 = vpop.permute.xlu0 %4031
        %4033 = vrot.lane.b32.xlu0 %v3934, 64
        %v4034 = vpop.permute.xlu0 %4033
        %4035 = vrot.lane.b32.xlu0 %v3935, 64
        %v4036 = vpop.permute.xlu0 %4035
        %4037 = vrot.lane.b32.xlu0 %v3936, 64
        %v4038 = vpop.permute.xlu0 %4037
        %4039 = vrot.lane.b32.xlu0 %v3937, 64
        %v4040 = vpop.permute.xlu0 %4039
        %4041 = vrot.lane.b32.xlu0 %v3938, 64
        %v4042 = vpop.permute.xlu0 %4041
        %4043 = vrot.lane.b32.xlu0 %v3939, 64
        %v4044 = vpop.permute.xlu0 %4043
        %4045 = vrot.lane.b32.xlu0 %v3940, 64
        %v4046 = vpop.permute.xlu0 %4045
        %4047 = vrot.lane.b32.xlu0 %v3941, 64
        %v4048 = vpop.permute.xlu0 %4047
        %4049 = vrot.lane.b32.xlu0 %v3942, 64
        %v4050 = vpop.permute.xlu0 %4049
        %4051 = vrot.lane.b32.xlu0 %v3943, 64
        %v4052 = vpop.permute.xlu0 %4051
        %4053 = vrot.lane.b32.xlu0 %v3944, 64
        %v4054 = vpop.permute.xlu0 %4053
        %4055 = vrot.lane.b32.xlu0 %v3945, 64
        %v4056 = vpop.permute.xlu0 %4055
        %4057 = vrot.lane.b32.xlu0 %v3946, 64
        %v4058 = vpop.permute.xlu0 %4057
        %4059 = vrot.lane.b32.xlu0 %v3947, 64
        %v4060 = vpop.permute.xlu0 %4059
        %4061 = vrot.lane.b32.xlu0 %v3948, 64
        %v4062 = vpop.permute.xlu0 %4061
        %4063 = vrot.lane.b32.xlu0 %v3949, 64
        %v4064 = vpop.permute.xlu0 %4063
        %4065 = vrot.lane.b32.xlu0 %v3950, 64
        %v4066 = vpop.permute.xlu0 %4065
        %4067 = vrot.lane.b32.xlu0 %v3951, 64
        %v4068 = vpop.permute.xlu0 %4067
        %4069 = vrot.lane.b32.xlu0 %v3952, 64
        %v4070 = vpop.permute.xlu0 %4069
        %4071 = vrot.lane.b32.xlu0 %v3953, 64
        %v4072 = vpop.permute.xlu0 %4071
        %4073 = vrot.lane.b32.xlu0 %v3954, 64
        %v4074 = vpop.permute.xlu0 %4073
        %4075 = vrot.lane.b32.xlu0 %v3955, 64
        %v4076 = vpop.permute.xlu0 %4075
        %4077 = vrot.lane.b32.xlu0 %v3956, 64
        %v4078 = vpop.permute.xlu0 %4077
        %4079 = vrot.lane.b32.xlu0 %v3957, 64
        %v4080 = vpop.permute.xlu0 %4079
        %4081 = vrot.lane.b32.xlu0 %v3958, 64
        %v4082 = vpop.permute.xlu0 %4081
        %4083 = vrot.lane.b32.xlu0 %v3959, 64
        %v4084 = vpop.permute.xlu0 %4083
        %4085 = vrot.lane.b32.xlu0 %v3960, 64
        %v4086 = vpop.permute.xlu0 %4085
        %4087 = vrot.lane.b32.xlu0 %v3961, 64
        %v4088 = vpop.permute.xlu0 %4087
        %4089 = vrot.lane.b32.xlu0 %v3962, 64
        %v4090 = vpop.permute.xlu0 %4089
        %v4123 = vadd.f32 %v3963, %v4028
        %v4124 = vadd.f32 %v3964, %v4030
        %v4125 = vadd.f32 %v3965, %v4032
        %v4126 = vadd.f32 %v3966, %v4034
        %v4127 = vadd.f32 %v3967, %v4036
        %v4128 = vadd.f32 %v3968, %v4038
        %v4129 = vadd.f32 %v3969, %v4040
        %v4130 = vadd.f32 %v3970, %v4042
        %v4131 = vadd.f32 %v3971, %v4044
        %v4132 = vadd.f32 %v3972, %v4046
        %v4133 = vadd.f32 %v3973, %v4048
        %v4134 = vadd.f32 %v3974, %v4050
        %v4135 = vadd.f32 %v3975, %v4052
        %v4136 = vadd.f32 %v3976, %v4054
        %v4137 = vadd.f32 %v3977, %v4056
        %v4138 = vadd.f32 %v3978, %v4058
        %v4139 = vadd.f32 %v3979, %v4060
        %v4140 = vadd.f32 %v3980, %v4062
        %v4141 = vadd.f32 %v3981, %v4064
        %v4142 = vadd.f32 %v3982, %v4066
        %v4143 = vadd.f32 %v3983, %v4068
        %v4144 = vadd.f32 %v3984, %v4070
        %v4145 = vadd.f32 %v3985, %v4072
        %v4146 = vadd.f32 %v3986, %v4074
        %v4147 = vadd.f32 %v3987, %v4076
        %v4148 = vadd.f32 %v3988, %v4078
        %v4149 = vadd.f32 %v3989, %v4080
        %v4150 = vadd.f32 %v3990, %v4082
        %v4151 = vadd.f32 %v3991, %v4084
        %v4152 = vadd.f32 %v3992, %v4086
        %v4153 = vadd.f32 %v3993, %v4088
        %v4154 = vadd.f32 %v3994, %v4090
        %4155 = vst.msk [vmem:[#allocation5 + $0x1] sm:$0xff] %vm723, %v4123
        %4156 = vst.msk [vmem:[#allocation5 + $0x9] sm:$0xff] %vm723, %v4124
        %4157 = vst.msk [vmem:[#allocation5 + $0x19] sm:$0xff] %vm723, %v4125
        %4158 = vst.msk [vmem:[#allocation5 + $0x21] sm:$0xff] %vm723, %v4126
        %4159 = vst.msk [vmem:[#allocation5 + $0x31] sm:$0xff] %vm723, %v4127
        %4160 = vst.msk [vmem:[#allocation5 + $0x39] sm:$0xff] %vm723, %v4128
        %4161 = vst.msk [vmem:[#allocation5 + $0x49] sm:$0xff] %vm723, %v4129
        %4162 = vst.msk [vmem:[#allocation5 + $0x51] sm:$0xff] %vm723, %v4130
        %4163 = vst.msk [vmem:[#allocation5 + $0x61] sm:$0xff] %vm723, %v4131
        %4164 = vst.msk [vmem:[#allocation5 + $0x69] sm:$0xff] %vm723, %v4132
        %4165 = vst.msk [vmem:[#allocation5 + $0x79] sm:$0xff] %vm723, %v4133
        %4166 = vst.msk [vmem:[#allocation5 + $0x81] sm:$0xff] %vm723, %v4134
        %4167 = vst.msk [vmem:[#allocation5 + $0x91] sm:$0xff] %vm723, %v4135
        %4168 = vst.msk [vmem:[#allocation5 + $0x99] sm:$0xff] %vm723, %v4136
        %4169 = vst.msk [vmem:[#allocation5 + $0xa9] sm:$0xff] %vm723, %v4137
        %4170 = vst.msk [vmem:[#allocation5 + $0xb1] sm:$0xff] %vm723, %v4138
        %4171 = vst.msk [vmem:[#allocation5 + $0xc1] sm:$0xff] %vm723, %v4139
        %4172 = vst.msk [vmem:[#allocation5 + $0xc9] sm:$0xff] %vm723, %v4140
        %4173 = vst.msk [vmem:[#allocation5 + $0xd9] sm:$0xff] %vm723, %v4141
        %4174 = vst.msk [vmem:[#allocation5 + $0xe1] sm:$0xff] %vm723, %v4142
        %4175 = vst.msk [vmem:[#allocation5 + $0xf1] sm:$0xff] %vm723, %v4143
        %4176 = vst.msk [vmem:[#allocation5 + $0xf9] sm:$0xff] %vm723, %v4144
        %4177 = vst.msk [vmem:[#allocation5 + $0x109] sm:$0xff] %vm723, %v4145
        %4178 = vst.msk [vmem:[#allocation5 + $0x111] sm:$0xff] %vm723, %v4146
        %4179 = vst.msk [vmem:[#allocation5 + $0x121] sm:$0xff] %vm723, %v4147
        %4180 = vst.msk [vmem:[#allocation5 + $0x129] sm:$0xff] %vm723, %v4148
        %4181 = vst.msk [vmem:[#allocation5 + $0x139] sm:$0xff] %vm723, %v4149
        %4182 = vst.msk [vmem:[#allocation5 + $0x141] sm:$0xff] %vm723, %v4150
        %4183 = vst.msk [vmem:[#allocation5 + $0x151] sm:$0xff] %vm723, %v4151
        %4184 = vst.msk [vmem:[#allocation5 + $0x159] sm:$0xff] %vm723, %v4152
        %4185 = vst.msk [vmem:[#allocation5 + $0x169] sm:$0xff] %vm723, %v4153
        %4186 = vst.msk [vmem:[#allocation5 + $0x171] sm:$0xff] %vm723, %v4154
        %v4187 = vld [vmem:[#allocation4 + $0x20] sm:$0xff]
        %v4188 = vld [vmem:[#allocation4 + $0x48] sm:$0xff]
        %v4189 = vld [vmem:[#allocation4 + $0x70] sm:$0xff]
        %v4190 = vld [vmem:[#allocation4 + $0x98] sm:$0xff]
        %v4191 = vld [vmem:[#allocation4 + $0xc0] sm:$0xff]
        %v4192 = vld [vmem:[#allocation4 + $0xe8] sm:$0xff]
        %v4193 = vld [vmem:[#allocation4 + $0x110] sm:$0xff]
        %v4194 = vld [vmem:[#allocation4 + $0x138] sm:$0xff]
        %v4195 = vld [vmem:[#allocation4 + $0x160] sm:$0xff]
        %v4196 = vld [vmem:[#allocation4 + $0x188] sm:$0xff]
        %v4197 = vld [vmem:[#allocation4 + $0x1b0] sm:$0xff]
        %v4198 = vld [vmem:[#allocation4 + $0x1d8] sm:$0xff]
        %v4199 = vld [vmem:[#allocation4 + $0x200] sm:$0xff]
        %v4200 = vld [vmem:[#allocation4 + $0x228] sm:$0xff]
        %v4201 = vld [vmem:[#allocation4 + $0x250] sm:$0xff]
        %v4202 = vld [vmem:[#allocation4 + $0x278] sm:$0xff]
        %v4203 = vld [vmem:[#allocation4 + $0x2a0] sm:$0xff]
        %v4204 = vld [vmem:[#allocation4 + $0x2c8] sm:$0xff]
        %v4205 = vld [vmem:[#allocation4 + $0x2f0] sm:$0xff]
        %v4206 = vld [vmem:[#allocation4 + $0x318] sm:$0xff]
        %v4207 = vld [vmem:[#allocation4 + $0x340] sm:$0xff]
        %v4208 = vld [vmem:[#allocation4 + $0x368] sm:$0xff]
        %v4209 = vld [vmem:[#allocation4 + $0x390] sm:$0xff]
        %v4210 = vld [vmem:[#allocation4 + $0x3b8] sm:$0xff]
        %v4211 = vld [vmem:[#allocation4 + $0x3e0] sm:$0xff]
        %v4212 = vld [vmem:[#allocation4 + $0x408] sm:$0xff]
        %v4213 = vld [vmem:[#allocation4 + $0x430] sm:$0xff]
        %v4214 = vld [vmem:[#allocation4 + $0x458] sm:$0xff]
        %v4215 = vld [vmem:[#allocation4 + $0x480] sm:$0xff]
        %v4216 = vld [vmem:[#allocation4 + $0x4a8] sm:$0xff]
        %v4217 = vld [vmem:[#allocation4 + $0x4d0] sm:$0xff]
        %v4218 = vld [vmem:[#allocation4 + $0x4f8] sm:$0xff]
        %v4219 = vld [vmem:[#allocation5] sm:$0xff]
        %v4220 = vld [vmem:[#allocation5 + $0x8] sm:$0xff]
        %v4221 = vld [vmem:[#allocation5 + $0x18] sm:$0xff]
        %v4222 = vld [vmem:[#allocation5 + $0x20] sm:$0xff]
        %v4223 = vld [vmem:[#allocation5 + $0x30] sm:$0xff]
        %v4224 = vld [vmem:[#allocation5 + $0x38] sm:$0xff]
        %v4225 = vld [vmem:[#allocation5 + $0x48] sm:$0xff]
        %v4226 = vld [vmem:[#allocation5 + $0x50] sm:$0xff]
        %v4227 = vld [vmem:[#allocation5 + $0x60] sm:$0xff]
        %v4228 = vld [vmem:[#allocation5 + $0x68] sm:$0xff]
        %v4229 = vld [vmem:[#allocation5 + $0x78] sm:$0xff]
        %v4230 = vld [vmem:[#allocation5 + $0x80] sm:$0xff]
        %v4231 = vld [vmem:[#allocation5 + $0x90] sm:$0xff]
        %v4232 = vld [vmem:[#allocation5 + $0x98] sm:$0xff]
        %v4233 = vld [vmem:[#allocation5 + $0xa8] sm:$0xff]
        %v4234 = vld [vmem:[#allocation5 + $0xb0] sm:$0xff]
        %v4235 = vld [vmem:[#allocation5 + $0xc0] sm:$0xff]
        %v4236 = vld [vmem:[#allocation5 + $0xc8] sm:$0xff]
        %v4237 = vld [vmem:[#allocation5 + $0xd8] sm:$0xff]
        %v4238 = vld [vmem:[#allocation5 + $0xe0] sm:$0xff]
        %v4239 = vld [vmem:[#allocation5 + $0xf0] sm:$0xff]
        %v4240 = vld [vmem:[#allocation5 + $0xf8] sm:$0xff]
        %v4241 = vld [vmem:[#allocation5 + $0x108] sm:$0xff]
        %v4242 = vld [vmem:[#allocation5 + $0x110] sm:$0xff]
        %v4243 = vld [vmem:[#allocation5 + $0x120] sm:$0xff]
        %v4244 = vld [vmem:[#allocation5 + $0x128] sm:$0xff]
        %v4245 = vld [vmem:[#allocation5 + $0x138] sm:$0xff]
        %v4246 = vld [vmem:[#allocation5 + $0x140] sm:$0xff]
        %v4247 = vld [vmem:[#allocation5 + $0x150] sm:$0xff]
        %v4248 = vld [vmem:[#allocation5 + $0x158] sm:$0xff]
        %v4249 = vld [vmem:[#allocation5 + $0x168] sm:$0xff]
        %v4250 = vld [vmem:[#allocation5 + $0x170] sm:$0xff]
        %v4251 = vadd.f32 %v4219, %v4187
        %v4252 = vadd.f32 %v4220, %v4188
        %v4253 = vadd.f32 %v4221, %v4189
        %v4254 = vadd.f32 %v4222, %v4190
        %v4255 = vadd.f32 %v4223, %v4191
        %v4256 = vadd.f32 %v4224, %v4192
        %v4257 = vadd.f32 %v4225, %v4193
        %v4258 = vadd.f32 %v4226, %v4194
        %v4259 = vadd.f32 %v4227, %v4195
        %v4260 = vadd.f32 %v4228, %v4196
        %v4261 = vadd.f32 %v4229, %v4197
        %v4262 = vadd.f32 %v4230, %v4198
        %v4263 = vadd.f32 %v4231, %v4199
        %v4264 = vadd.f32 %v4232, %v4200
        %v4265 = vadd.f32 %v4233, %v4201
        %v4266 = vadd.f32 %v4234, %v4202
        %v4267 = vadd.f32 %v4235, %v4203
        %v4268 = vadd.f32 %v4236, %v4204
        %v4269 = vadd.f32 %v4237, %v4205
        %v4270 = vadd.f32 %v4238, %v4206
        %v4271 = vadd.f32 %v4239, %v4207
        %v4272 = vadd.f32 %v4240, %v4208
        %v4273 = vadd.f32 %v4241, %v4209
        %v4274 = vadd.f32 %v4242, %v4210
        %v4275 = vadd.f32 %v4243, %v4211
        %v4276 = vadd.f32 %v4244, %v4212
        %v4277 = vadd.f32 %v4245, %v4213
        %v4278 = vadd.f32 %v4246, %v4214
        %v4279 = vadd.f32 %v4247, %v4215
        %v4280 = vadd.f32 %v4248, %v4216
        %v4281 = vadd.f32 %v4249, %v4217
        %v4282 = vadd.f32 %v4250, %v4218
        %4283 = vst.msk [vmem:[#allocation5] sm:$0xff] %vm723, %v4251
        %4284 = vst.msk [vmem:[#allocation5 + $0x8] sm:$0xff] %vm723, %v4252
        %4285 = vst.msk [vmem:[#allocation5 + $0x18] sm:$0xff] %vm723, %v4253
        %4286 = vst.msk [vmem:[#allocation5 + $0x20] sm:$0xff] %vm723, %v4254
        %4287 = vst.msk [vmem:[#allocation5 + $0x30] sm:$0xff] %vm723, %v4255
        %4288 = vst.msk [vmem:[#allocation5 + $0x38] sm:$0xff] %vm723, %v4256
        %4289 = vst.msk [vmem:[#allocation5 + $0x48] sm:$0xff] %vm723, %v4257
        %4290 = vst.msk [vmem:[#allocation5 + $0x50] sm:$0xff] %vm723, %v4258
        %4291 = vst.msk [vmem:[#allocation5 + $0x60] sm:$0xff] %vm723, %v4259
        %4292 = vst.msk [vmem:[#allocation5 + $0x68] sm:$0xff] %vm723, %v4260
        %4293 = vst.msk [vmem:[#allocation5 + $0x78] sm:$0xff] %vm723, %v4261
        %4294 = vst.msk [vmem:[#allocation5 + $0x80] sm:$0xff] %vm723, %v4262
        %4295 = vst.msk [vmem:[#allocation5 + $0x90] sm:$0xff] %vm723, %v4263
        %4296 = vst.msk [vmem:[#allocation5 + $0x98] sm:$0xff] %vm723, %v4264
        %4297 = vst.msk [vmem:[#allocation5 + $0xa8] sm:$0xff] %vm723, %v4265
        %4298 = vst.msk [vmem:[#allocation5 + $0xb0] sm:$0xff] %vm723, %v4266
        %4299 = vst.msk [vmem:[#allocation5 + $0xc0] sm:$0xff] %vm723, %v4267
        %4300 = vst.msk [vmem:[#allocation5 + $0xc8] sm:$0xff] %vm723, %v4268
        %4301 = vst.msk [vmem:[#allocation5 + $0xd8] sm:$0xff] %vm723, %v4269
        %4302 = vst.msk [vmem:[#allocation5 + $0xe0] sm:$0xff] %vm723, %v4270
        %4303 = vst.msk [vmem:[#allocation5 + $0xf0] sm:$0xff] %vm723, %v4271
        %4304 = vst.msk [vmem:[#allocation5 + $0xf8] sm:$0xff] %vm723, %v4272
        %4305 = vst.msk [vmem:[#allocation5 + $0x108] sm:$0xff] %vm723, %v4273
        %4306 = vst.msk [vmem:[#allocation5 + $0x110] sm:$0xff] %vm723, %v4274
        %4307 = vst.msk [vmem:[#allocation5 + $0x120] sm:$0xff] %vm723, %v4275
        %4308 = vst.msk [vmem:[#allocation5 + $0x128] sm:$0xff] %vm723, %v4276
        %4309 = vst.msk [vmem:[#allocation5 + $0x138] sm:$0xff] %vm723, %v4277
        %4310 = vst.msk [vmem:[#allocation5 + $0x140] sm:$0xff] %vm723, %v4278
        %4311 = vst.msk [vmem:[#allocation5 + $0x150] sm:$0xff] %vm723, %v4279
        %4312 = vst.msk [vmem:[#allocation5 + $0x158] sm:$0xff] %vm723, %v4280
        %4313 = vst.msk [vmem:[#allocation5 + $0x168] sm:$0xff] %vm723, %v4281
        %4314 = vst.msk [vmem:[#allocation5 + $0x170] sm:$0xff] %vm723, %v4282
        %v4315 = vld [vmem:[%s3194 + $0x1] sm:$0xff]
        %v4316 = vld [vmem:[%s3194 + $0x9] sm:$0xff]
        %v4317 = vld [vmem:[%s3194 + $0x19] sm:$0xff]
        %v4318 = vld [vmem:[%s3194 + $0x21] sm:$0xff]
        %v4319 = vld [vmem:[%s3194 + $0x31] sm:$0xff]
        %v4320 = vld [vmem:[%s3194 + $0x39] sm:$0xff]
        %v4321 = vld [vmem:[%s3194 + $0x49] sm:$0xff]
        %v4322 = vld [vmem:[%s3194 + $0x51] sm:$0xff]
        %v4323 = vld [vmem:[%s3194 + $0x61] sm:$0xff]
        %v4324 = vld [vmem:[%s3194 + $0x69] sm:$0xff]
        %v4325 = vld [vmem:[%s3194 + $0x79] sm:$0xff]
        %v4326 = vld [vmem:[%s3194 + $0x81] sm:$0xff]
        %v4327 = vld [vmem:[%s3194 + $0x91] sm:$0xff]
        %v4328 = vld [vmem:[%s3194 + $0x99] sm:$0xff]
        %v4329 = vld [vmem:[%s3194 + $0xa9] sm:$0xff]
        %v4330 = vld [vmem:[%s3194 + $0xb1] sm:$0xff]
        %v4331 = vld [vmem:[%s3194 + $0xc1] sm:$0xff]
        %v4332 = vld [vmem:[%s3194 + $0xc9] sm:$0xff]
        %v4333 = vld [vmem:[%s3194 + $0xd9] sm:$0xff]
        %v4334 = vld [vmem:[%s3194 + $0xe1] sm:$0xff]
        %v4335 = vld [vmem:[%s3194 + $0xf1] sm:$0xff]
        %v4336 = vld [vmem:[%s3194 + $0xf9] sm:$0xff]
        %v4337 = vld [vmem:[%s3194 + $0x109] sm:$0xff]
        %v4338 = vld [vmem:[%s3194 + $0x111] sm:$0xff]
        %v4339 = vld [vmem:[%s3194 + $0x121] sm:$0xff]
        %v4340 = vld [vmem:[%s3194 + $0x129] sm:$0xff]
        %v4341 = vld [vmem:[%s3194 + $0x139] sm:$0xff]
        %v4342 = vld [vmem:[%s3194 + $0x141] sm:$0xff]
        %v4343 = vld [vmem:[%s3194 + $0x151] sm:$0xff]
        %v4344 = vld [vmem:[%s3194 + $0x159] sm:$0xff]
        %v4345 = vld [vmem:[%s3194 + $0x169] sm:$0xff]
        %v4346 = vld [vmem:[%s3194 + $0x171] sm:$0xff]
        %v4347 = vld [vmem:[%s5] sm:$0x1]
        %v4349 = vperm.slane %v4347, 0
        %v4351 = vadd.f32 %v4315, %v4349
        %v4352 = vadd.f32 %v4316, %v4349
        %v4353 = vadd.f32 %v4317, %v4349
        %v4354 = vadd.f32 %v4318, %v4349
        %v4355 = vadd.f32 %v4319, %v4349
        %v4356 = vadd.f32 %v4320, %v4349
        %v4357 = vadd.f32 %v4321, %v4349
        %v4358 = vadd.f32 %v4322, %v4349
        %v4359 = vadd.f32 %v4323, %v4349
        %v4360 = vadd.f32 %v4324, %v4349
        %v4361 = vadd.f32 %v4325, %v4349
        %v4362 = vadd.f32 %v4326, %v4349
        %v4363 = vadd.f32 %v4327, %v4349
        %v4364 = vadd.f32 %v4328, %v4349
        %v4365 = vadd.f32 %v4329, %v4349
        %v4366 = vadd.f32 %v4330, %v4349
        %v4367 = vadd.f32 %v4331, %v4349
        %v4368 = vadd.f32 %v4332, %v4349
        %v4369 = vadd.f32 %v4333, %v4349
        %v4370 = vadd.f32 %v4334, %v4349
        %v4371 = vadd.f32 %v4335, %v4349
        %v4372 = vadd.f32 %v4336, %v4349
        %v4373 = vadd.f32 %v4337, %v4349
        %v4374 = vadd.f32 %v4338, %v4349
        %v4375 = vadd.f32 %v4339, %v4349
        %v4376 = vadd.f32 %v4340, %v4349
        %v4377 = vadd.f32 %v4341, %v4349
        %v4378 = vadd.f32 %v4342, %v4349
        %v4379 = vadd.f32 %v4343, %v4349
        %v4380 = vadd.f32 %v4344, %v4349
        %v4381 = vadd.f32 %v4345, %v4349
        %v4382 = vadd.f32 %v4346, %v4349
        %v4383 = vld [vmem:[#allocation2 + $0x10] sm:$0xff]
        %v4384 = vld [vmem:[#allocation2 + $0x28] sm:$0xff]
        %v4385 = vld [vmem:[#allocation2 + $0x40] sm:$0xff]
        %v4386 = vld [vmem:[#allocation2 + $0x58] sm:$0xff]
        %v4387 = vld [vmem:[#allocation2 + $0x70] sm:$0xff]
        %v4388 = vld [vmem:[#allocation2 + $0x88] sm:$0xff]
        %v4389 = vld [vmem:[#allocation2 + $0xa0] sm:$0xff]
        %v4390 = vld [vmem:[#allocation2 + $0xb8] sm:$0xff]
        %v4391 = vld [vmem:[#allocation2 + $0xd0] sm:$0xff]
        %v4392 = vld [vmem:[#allocation2 + $0xe8] sm:$0xff]
        %v4393 = vld [vmem:[#allocation2 + $0x100] sm:$0xff]
        %v4394 = vld [vmem:[#allocation2 + $0x118] sm:$0xff]
        %v4395 = vld [vmem:[#allocation2 + $0x130] sm:$0xff]
        %v4396 = vld [vmem:[#allocation2 + $0x148] sm:$0xff]
        %v4397 = vld [vmem:[#allocation2 + $0x160] sm:$0xff]
        %v4398 = vld [vmem:[#allocation2 + $0x178] sm:$0xff]
        %v4399 = vld [vmem:[#allocation2 + $0x190] sm:$0xff]
        %v4400 = vld [vmem:[#allocation2 + $0x1a8] sm:$0xff]
        %v4401 = vld [vmem:[#allocation2 + $0x1c0] sm:$0xff]
        %v4402 = vld [vmem:[#allocation2 + $0x1d8] sm:$0xff]
        %v4403 = vld [vmem:[#allocation2 + $0x1f0] sm:$0xff]
        %v4404 = vld [vmem:[#allocation2 + $0x208] sm:$0xff]
        %v4405 = vld [vmem:[#allocation2 + $0x220] sm:$0xff]
        %v4406 = vld [vmem:[#allocation2 + $0x238] sm:$0xff]
        %v4407 = vld [vmem:[#allocation2 + $0x250] sm:$0xff]
        %v4408 = vld [vmem:[#allocation2 + $0x268] sm:$0xff]
        %v4409 = vld [vmem:[#allocation2 + $0x280] sm:$0xff]
        %v4410 = vld [vmem:[#allocation2 + $0x298] sm:$0xff]
        %v4411 = vld [vmem:[#allocation2 + $0x2b0] sm:$0xff]
        %v4412 = vld [vmem:[#allocation2 + $0x2c8] sm:$0xff]
        %v4413 = vld [vmem:[#allocation2 + $0x2e0] sm:$0xff]
        %v4414 = vld [vmem:[#allocation2 + $0x2f8] sm:$0xff]
        %v4415 = vld [vmem:[%s3] sm:$0x1]
        %v4417 = vperm.slane %v4415, 0
        %v4419 = vadd.f32 %v4383, %v4417
        %v4420 = vadd.f32 %v4384, %v4417
        %v4421 = vadd.f32 %v4385, %v4417
        %v4422 = vadd.f32 %v4386, %v4417
        %v4423 = vadd.f32 %v4387, %v4417
        %v4424 = vadd.f32 %v4388, %v4417
        %v4425 = vadd.f32 %v4389, %v4417
        %v4426 = vadd.f32 %v4390, %v4417
        %v4427 = vadd.f32 %v4391, %v4417
        %v4428 = vadd.f32 %v4392, %v4417
        %v4429 = vadd.f32 %v4393, %v4417
        %v4430 = vadd.f32 %v4394, %v4417
        %v4431 = vadd.f32 %v4395, %v4417
        %v4432 = vadd.f32 %v4396, %v4417
        %v4433 = vadd.f32 %v4397, %v4417
        %v4434 = vadd.f32 %v4398, %v4417
        %v4435 = vadd.f32 %v4399, %v4417
        %v4436 = vadd.f32 %v4400, %v4417
        %v4437 = vadd.f32 %v4401, %v4417
        %v4438 = vadd.f32 %v4402, %v4417
        %v4439 = vadd.f32 %v4403, %v4417
        %v4440 = vadd.f32 %v4404, %v4417
        %v4441 = vadd.f32 %v4405, %v4417
        %v4442 = vadd.f32 %v4406, %v4417
        %v4443 = vadd.f32 %v4407, %v4417
        %v4444 = vadd.f32 %v4408, %v4417
        %v4445 = vadd.f32 %v4409, %v4417
        %v4446 = vadd.f32 %v4410, %v4417
        %v4447 = vadd.f32 %v4411, %v4417
        %v4448 = vadd.f32 %v4412, %v4417
        %v4449 = vadd.f32 %v4413, %v4417
        %v4450 = vadd.f32 %v4414, %v4417
        %v4451 = vadd.f32 %v4351, %v4419
        %v4452 = vadd.f32 %v4352, %v4420
        %v4453 = vadd.f32 %v4353, %v4421
        %v4454 = vadd.f32 %v4354, %v4422
        %v4455 = vadd.f32 %v4355, %v4423
        %v4456 = vadd.f32 %v4356, %v4424
        %v4457 = vadd.f32 %v4357, %v4425
        %v4458 = vadd.f32 %v4358, %v4426
        %v4459 = vadd.f32 %v4359, %v4427
        %v4460 = vadd.f32 %v4360, %v4428
        %v4461 = vadd.f32 %v4361, %v4429
        %v4462 = vadd.f32 %v4362, %v4430
        %v4463 = vadd.f32 %v4363, %v4431
        %v4464 = vadd.f32 %v4364, %v4432
        %v4465 = vadd.f32 %v4365, %v4433
        %v4466 = vadd.f32 %v4366, %v4434
        %v4467 = vadd.f32 %v4367, %v4435
        %v4468 = vadd.f32 %v4368, %v4436
        %v4469 = vadd.f32 %v4369, %v4437
        %v4470 = vadd.f32 %v4370, %v4438
        %v4471 = vadd.f32 %v4371, %v4439
        %v4472 = vadd.f32 %v4372, %v4440
        %v4473 = vadd.f32 %v4373, %v4441
        %v4474 = vadd.f32 %v4374, %v4442
        %v4475 = vadd.f32 %v4375, %v4443
        %v4476 = vadd.f32 %v4376, %v4444
        %v4477 = vadd.f32 %v4377, %v4445
        %v4478 = vadd.f32 %v4378, %v4446
        %v4479 = vadd.f32 %v4379, %v4447
        %v4480 = vadd.f32 %v4380, %v4448
        %v4481 = vadd.f32 %v4381, %v4449
        %v4482 = vadd.f32 %v4382, %v4450
        %4515 = vrot.lane.b32.xlu0 %v4451, 64
        %v4516 = vpop.permute.xlu0 %4515
        %4517 = vrot.lane.b32.xlu0 %v4452, 64
        %v4518 = vpop.permute.xlu0 %4517
        %4519 = vrot.lane.b32.xlu0 %v4453, 64
        %v4520 = vpop.permute.xlu0 %4519
        %4521 = vrot.lane.b32.xlu0 %v4454, 64
        %v4522 = vpop.permute.xlu0 %4521
        %4523 = vrot.lane.b32.xlu0 %v4455, 64
        %v4524 = vpop.permute.xlu0 %4523
        %4525 = vrot.lane.b32.xlu0 %v4456, 64
        %v4526 = vpop.permute.xlu0 %4525
        %4527 = vrot.lane.b32.xlu0 %v4457, 64
        %v4528 = vpop.permute.xlu0 %4527
        %4529 = vrot.lane.b32.xlu0 %v4458, 64
        %v4530 = vpop.permute.xlu0 %4529
        %4531 = vrot.lane.b32.xlu0 %v4459, 64
        %v4532 = vpop.permute.xlu0 %4531
        %4533 = vrot.lane.b32.xlu0 %v4460, 64
        %v4534 = vpop.permute.xlu0 %4533
        %4535 = vrot.lane.b32.xlu0 %v4461, 64
        %v4536 = vpop.permute.xlu0 %4535
        %4537 = vrot.lane.b32.xlu0 %v4462, 64
        %v4538 = vpop.permute.xlu0 %4537
        %4539 = vrot.lane.b32.xlu0 %v4463, 64
        %v4540 = vpop.permute.xlu0 %4539
        %4541 = vrot.lane.b32.xlu0 %v4464, 64
        %v4542 = vpop.permute.xlu0 %4541
        %4543 = vrot.lane.b32.xlu0 %v4465, 64
        %v4544 = vpop.permute.xlu0 %4543
        %4545 = vrot.lane.b32.xlu0 %v4466, 64
        %v4546 = vpop.permute.xlu0 %4545
        %4547 = vrot.lane.b32.xlu0 %v4467, 64
        %v4548 = vpop.permute.xlu0 %4547
        %4549 = vrot.lane.b32.xlu0 %v4468, 64
        %v4550 = vpop.permute.xlu0 %4549
        %4551 = vrot.lane.b32.xlu0 %v4469, 64
        %v4552 = vpop.permute.xlu0 %4551
        %4553 = vrot.lane.b32.xlu0 %v4470, 64
        %v4554 = vpop.permute.xlu0 %4553
        %4555 = vrot.lane.b32.xlu0 %v4471, 64
        %v4556 = vpop.permute.xlu0 %4555
        %4557 = vrot.lane.b32.xlu0 %v4472, 64
        %v4558 = vpop.permute.xlu0 %4557
        %4559 = vrot.lane.b32.xlu0 %v4473, 64
        %v4560 = vpop.permute.xlu0 %4559
        %4561 = vrot.lane.b32.xlu0 %v4474, 64
        %v4562 = vpop.permute.xlu0 %4561
        %4563 = vrot.lane.b32.xlu0 %v4475, 64
        %v4564 = vpop.permute.xlu0 %4563
        %4565 = vrot.lane.b32.xlu0 %v4476, 64
        %v4566 = vpop.permute.xlu0 %4565
        %4567 = vrot.lane.b32.xlu0 %v4477, 64
        %v4568 = vpop.permute.xlu0 %4567
        %4569 = vrot.lane.b32.xlu0 %v4478, 64
        %v4570 = vpop.permute.xlu0 %4569
        %4571 = vrot.lane.b32.xlu0 %v4479, 64
        %v4572 = vpop.permute.xlu0 %4571
        %4573 = vrot.lane.b32.xlu0 %v4480, 64
        %v4574 = vpop.permute.xlu0 %4573
        %4575 = vrot.lane.b32.xlu0 %v4481, 64
        %v4576 = vpop.permute.xlu0 %4575
        %4577 = vrot.lane.b32.xlu0 %v4482, 64
        %v4578 = vpop.permute.xlu0 %4577
        %v4611 = vsel %vm723, %v4351, %v4516
        %v4612 = vsel %vm723, %v4352, %v4518
        %v4613 = vsel %vm723, %v4353, %v4520
        %v4614 = vsel %vm723, %v4354, %v4522
        %v4615 = vsel %vm723, %v4355, %v4524
        %v4616 = vsel %vm723, %v4356, %v4526
        %v4617 = vsel %vm723, %v4357, %v4528
        %v4618 = vsel %vm723, %v4358, %v4530
        %v4619 = vsel %vm723, %v4359, %v4532
        %v4620 = vsel %vm723, %v4360, %v4534
        %v4621 = vsel %vm723, %v4361, %v4536
        %v4622 = vsel %vm723, %v4362, %v4538
        %v4623 = vsel %vm723, %v4363, %v4540
        %v4624 = vsel %vm723, %v4364, %v4542
        %v4625 = vsel %vm723, %v4365, %v4544
        %v4626 = vsel %vm723, %v4366, %v4546
        %v4627 = vsel %vm723, %v4367, %v4548
        %v4628 = vsel %vm723, %v4368, %v4550
        %v4629 = vsel %vm723, %v4369, %v4552
        %v4630 = vsel %vm723, %v4370, %v4554
        %v4631 = vsel %vm723, %v4371, %v4556
        %v4632 = vsel %vm723, %v4372, %v4558
        %v4633 = vsel %vm723, %v4373, %v4560
        %v4634 = vsel %vm723, %v4374, %v4562
        %v4635 = vsel %vm723, %v4375, %v4564
        %v4636 = vsel %vm723, %v4376, %v4566
        %v4637 = vsel %vm723, %v4377, %v4568
        %v4638 = vsel %vm723, %v4378, %v4570
        %v4639 = vsel %vm723, %v4379, %v4572
        %v4640 = vsel %vm723, %v4380, %v4574
        %v4641 = vsel %vm723, %v4381, %v4576
        %v4642 = vsel %vm723, %v4382, %v4578
        %4643 = vst [vmem:[%s244] sm:$0xff] %v4611
        %4644 = vst [vmem:[%s244 + $0x8] sm:$0xff] %v4612
        %4645 = vst [vmem:[%s244 + $0x10] sm:$0xff] %v4613
        %4646 = vst [vmem:[%s244 + $0x18] sm:$0xff] %v4614
        %4647 = vst [vmem:[%s244 + $0x20] sm:$0xff] %v4615
        %4648 = vst [vmem:[%s244 + $0x28] sm:$0xff] %v4616
        %4649 = vst [vmem:[%s244 + $0x30] sm:$0xff] %v4617
        %4650 = vst [vmem:[%s244 + $0x38] sm:$0xff] %v4618
        %4651 = vst [vmem:[%s244 + $0x40] sm:$0xff] %v4619
        %4652 = vst [vmem:[%s244 + $0x48] sm:$0xff] %v4620
        %4653 = vst [vmem:[%s244 + $0x50] sm:$0xff] %v4621
        %4654 = vst [vmem:[%s244 + $0x58] sm:$0xff] %v4622
        %4655 = vst [vmem:[%s244 + $0x60] sm:$0xff] %v4623
        %4656 = vst [vmem:[%s244 + $0x68] sm:$0xff] %v4624
        %4657 = vst [vmem:[%s244 + $0x70] sm:$0xff] %v4625
        %4658 = vst [vmem:[%s244 + $0x78] sm:$0xff] %v4626
        %4659 = vst [vmem:[%s244 + $0x80] sm:$0xff] %v4627
        %4660 = vst [vmem:[%s244 + $0x88] sm:$0xff] %v4628
        %4661 = vst [vmem:[%s244 + $0x90] sm:$0xff] %v4629
        %4662 = vst [vmem:[%s244 + $0x98] sm:$0xff] %v4630
        %4663 = vst [vmem:[%s244 + $0xa0] sm:$0xff] %v4631
        %4664 = vst [vmem:[%s244 + $0xa8] sm:$0xff] %v4632
        %4665 = vst [vmem:[%s244 + $0xb0] sm:$0xff] %v4633
        %4666 = vst [vmem:[%s244 + $0xb8] sm:$0xff] %v4634
        %4667 = vst [vmem:[%s244 + $0xc0] sm:$0xff] %v4635
        %4668 = vst [vmem:[%s244 + $0xc8] sm:$0xff] %v4636
        %4669 = vst [vmem:[%s244 + $0xd0] sm:$0xff] %v4637
        %4670 = vst [vmem:[%s244 + $0xd8] sm:$0xff] %v4638
        %4671 = vst [vmem:[%s244 + $0xe0] sm:$0xff] %v4639
        %4672 = vst [vmem:[%s244 + $0xe8] sm:$0xff] %v4640
        %4673 = vst [vmem:[%s244 + $0xf0] sm:$0xff] %v4641
        %4674 = vst [vmem:[%s244 + $0xf8] sm:$0xff] %v4642
        %s4675 = sand.u32 %s159, 1
        %s4676 = scalar_lea.sflag [#allocation7], %s4675
        %s4677 = sand.u32 %s159, 1
        %s4678 = smul.addr %s4677, 256
        %s4679 = scalar_lea.vmem [#allocation6], %s4678
        // Predicated region
        $region45: #{tpu_custom_call.1} parent=43 // pred_check
          %p4680 = pneg %p169
        $region46: #{tpu_custom_call.1} parent=43 // pred_check_branch
          %4682 = sbr.rel (%p4680) target = $region48
        $region47: #{tpu_custom_call.1} parent=43 // pred_region
          %4684 = vsyncadd %s4676, 0
          %s4685 = smul.addr %s20, 32
          %s4686 = smul.addr %s4685, 8
          %s4687 = scalar_lea.hbm %s6, %s4686
          %s4688 = sshll.u32 %s4679, 4
          %s4689 = int_to_ptr.vmem [resolvable:$true] %s4688
          %s4690 = sshll.u32 %s4687, 4
          %s4691 = int_to_ptr.hbm [resolvable:$true] %s4690
          %4696 = dma.vmem_to_hbm [thread:$0]  %s4689, 4096, %s4691, %s4676, 128, 128, 8
        $region48: #{tpu_custom_call.1} parent=43 // pred_fallthru
          _
      $region44: #{tpu_custom_call.1} parent=5 // pred_fallthru
        _
      %p4697 = scmp.le.s32.totalorder 2, %s15
      // Predicated region
      $region49: #{tpu_custom_call.1} parent=5 // pred_check
        %p4698 = pneg %p4697
      $region50: #{tpu_custom_call.1} parent=5 // pred_check_branch
        %4700 = sbr.rel (%p4698) target = $region52
      $region51: #{tpu_custom_call.1} parent=5 // pred_region
        %s4701 = ssub.s32 %s15, 2
        // Predicated region
        $region53: #{tpu_custom_call.1} parent=51 // pred_check
          %p4702 = pneg %p175
        $region54: #{tpu_custom_call.1} parent=51 // pred_check_branch
          %4704 = sbr.rel (%p4702) target = $region56
        $region55: #{tpu_custom_call.1} parent=51 // pred_region
          %s4705 = sand.u32 %s160, 1
          %s4706 = scalar_lea.sflag [#allocation7], %s4705
          %s4707 = sand.u32 %s160, 1
          %s4708 = smul.addr %s4707, 256
          %s4709 = scalar_lea.vmem [#allocation6], %s4708
          %4711 = dma.done %s4706, 4096
        $region56: #{tpu_custom_call.1} parent=51 // pred_fallthru
          _
      $region52: #{tpu_custom_call.1} parent=5 // pred_fallthru
        _
    $region6: #{tpu_custom_call.1} parent=1 // loop_footer
      %s19 = sadd.s32 1, %s15
    $region7: #{tpu_custom_call.1} parent=1 // loop_footer_branch
      %14 = sbr.rel target = $region3
    $region8: #{tpu_custom_call.1} parent=1 // loop_exit
      _
    %4712 = vsyncpa [#allocation7], 1
    %s4713 = scalar_lea.sflag [#allocation7], 1
    %4714 = vsyncpa %s4713, 1

</llo_original>
